<compile_context>
chip_gen: v7x
topology: tpu7x:2x2x1
jax: 0.10.0
libtpu: 0.0.40
codegen_flags: <defaults>
</compile_context>

<pallas_src>
import functools

import jax
import jax.numpy as jnp
import numpy as np
from jax.experimental import pallas as pl
from jax.experimental.pallas import tpu as pltpu


def _create_rotation_indices(n: int, num_rotations: int):
    """Same enumeration as the PyTorch module: (i, j) with i < j, row-major."""
    indices = []
    for i in range(n):
        for j in range(i + 1, n):
            indices.append((i, j))
            if len(indices) >= num_rotations:
                return indices
    return indices


def _givens_kernel(theta_ref, q_ref, *, num_heads: int, dim: int, indices,
                   fast_path: bool):
    # theta_ref: (H, R) f32 angles in SMEM (raw parameter layout).
    # q_ref:     (D, H*D) lane-dense output slab in VMEM: q[i, h*D + j] = Q_h[i, j].
    hd = num_heads * dim
    f32 = jnp.float32

    # ---- hoisted, loop-invariant lane bookkeeping (pure VPU, no div/rem) ----
    col = jax.lax.broadcasted_iota(jnp.int32, (1, hd), 1)             # lane index
    head_masks = [
        jnp.logical_and(col >= h * dim, col < (h + 1) * dim)          # (1, hd) bool
        for h in range(num_heads)
    ]
    col_mod = col                                                      # within-head column
    for h in range(1, num_heads):
        col_mod = jnp.where(head_masks[h], col - h * dim, col_mod)

    row_idx = jax.lax.broadcasted_iota(jnp.int32, (dim, hd), 0)       # (D, hd)
    eye = jnp.equal(row_idx, col_mod).astype(f32)                     # per-head identity slab

    def cos_sin(k):
        # Per-head angle splat: theta[h, k] (SMEM scalar) broadcast over that
        # head's D lanes, then cos/sin on the EUP (1 vreg each). Independent of
        # the carried row, so it sits off the serial chain.
        th = jnp.zeros((1, hd), f32)
        for h in range(num_heads):
            th = jnp.where(head_masks[h], theta_ref[h, k], th)
        return jnp.cos(th), jnp.sin(th)

    if fast_path:
        # Module-default enumeration: every rotation shares row i0 and each j
        # appears at most once, so row j is still the identity row e_j when
        # rotation k touches it.  Only row i0 is carried in registers.
        i0 = indices[0][0]
        q_ref[...] = eye.astype(q_ref.dtype)                          # one slab store
        row_i = (col_mod == i0).astype(f32)                           # carried row i0, (1, hd)
        for k, (_, j) in enumerate(indices):
            c, s = cos_sin(k)
            ej = col_mod == j                                         # (1, hd) mask (j varies)
            new_j = jnp.where(ej, c, 0.0) - s * row_i                 # -s*Qi + c*e_j
            q_ref[j:j + 1, :] = new_j.astype(q_ref.dtype)             # direct row store
            row_i = c * row_i + jnp.where(ej, s, 0.0)                 # c*Qi + s*e_j (2-op chain)
        q_ref[i0:i0 + 1, :] = row_i.astype(q_ref.dtype)
    else:
        # General fallback: register-resident slab, row-masked updates.
        # (Row iota / identity hoisted above; i, j are static so slices are free.)
        q = eye
        for k, (i, j) in enumerate(indices):
            c, s = cos_sin(k)
            qi = q[i:i + 1, :]
            qj = q[j:j + 1, :]
            new_i = c * qi + s * qj
            new_j = c * qj - s * qi
            q = jnp.where(row_idx == i, new_i, q)
            q = jnp.where(row_idx == j, new_j, q)
        q_ref[...] = q.astype(q_ref.dtype)


def givens_rotation_per_head(thetas: jax.Array, dim: int, indices,
                             *, lane_dense_output: bool = False) -> jax.Array:
    """Pallas implementation of GivensRotationPerHead.forward().

    Args:
      thetas:  (H, R) rotation angles (the module's nn.Parameter).
      dim:     D, the rotation matrix dimension.
      indices: list of static (i, j) rotation index pairs, i < j.
      lane_dense_output: if True, return the lane-dense (D, H*D) head-blocked
        slab (q[i, h*D + j] = Q_h[i, j]) and skip the reshape/transpose.

    Returns:
      Q: (H, D, D) per-head orthogonal rotation matrices (dtype of `thetas`),
         or the (D, H*D) slab if lane_dense_output=True.
    """
    H, R = thetas.shape
    indices = tuple(indices)
    assert len(indices) == R, "thetas second dim must match len(indices)"
    hd = H * dim

    # Fast-path preconditions (hold for the module's default enumeration as
    # long as num_rotations <= dim - 1): fixed i, all j distinct, no j == i.
    fast_path = (
        len(indices) > 0
        and all(i == indices[0][0] for i, _ in indices)
        and len({j for _, j in indices}) == len(indices)
        and all(j != indices[0][0] for _, j in indices)
        and all(0 <= i < dim and 0 <= j < dim for i, j in indices)
    )

    kernel = functools.partial(_givens_kernel, num_heads=H, dim=dim,
                               indices=indices, fast_path=fast_path)

    out_bytes = dim * hd * jnp.dtype(thetas.dtype).itemsize
    cost = pl.CostEstimate(
        flops=8 * R * hd,                 # ~8 VPU ops per rotation per lane
        transcendentals=2 * R * hd,       # cos + sin per rotation per lane
        bytes_accessed=H * R * 4 + out_bytes,
    )

    q_flat = pl.pallas_call(
        kernel,
        out_shape=jax.ShapeDtypeStruct((dim, hd), thetas.dtype),
        in_specs=[pl.BlockSpec(memory_space=pltpu.MemorySpace.SMEM)],
        out_specs=pl.BlockSpec(memory_space=pltpu.MemorySpace.VMEM),
        cost_estimate=cost,
    )(thetas.astype(jnp.float32))

    if lane_dense_output:
        return q_flat
    # (D, H*D) lane-dense slab -> (H, D, D) module layout.
    return jnp.transpose(q_flat.reshape(dim, H, dim), (1, 0, 2))


def givens_rotation_per_head_ref(thetas: jax.Array, dim: int, indices) -> jax.Array:
    """Pure-JAX reference mirroring the PyTorch apply_batch_givens loop."""
    H = thetas.shape[0]
    Q = jnp.tile(jnp.eye(dim, dtype=jnp.float32)[None], (H, 1, 1))
    th = thetas.astype(jnp.float32)
    for k, (i, j) in enumerate(indices):
        theta = th[:, k]
        c = jnp.cos(theta)[:, None]
        s = jnp.sin(theta)[:, None]
        Qi = Q[:, i, :]
        Qj = Q[:, j, :]
        Q = Q.at[:, i, :].set(c * Qi + s * Qj)
        Q = Q.at[:, j, :].set(-s * Qi + c * Qj)
    return Q.astype(thetas.dtype)


if __name__ == "__main__":
    # Module configuration (small, consistent with the PyTorch __init__).
    num_heads = 4
    dim = 32
    num_rotations = 16

    indices = _create_rotation_indices(dim, num_rotations)

    # Deterministic parameter init (torch.randn(H, R) * 0.01 analogue).
    key = jax.random.PRNGKey(0)
    thetas = jax.random.normal(key, (num_heads, len(indices)),
                               dtype=jnp.float32) * 0.01

    q_kernel = givens_rotation_per_head(thetas, dim, indices)
    q_kernel = jax.block_until_ready(q_kernel)

    q_ref = givens_rotation_per_head_ref(thetas, dim, indices)
    q_ref = jax.block_until_ready(q_ref)

    np.testing.assert_allclose(np.asarray(q_kernel), np.asarray(q_ref),
                               rtol=1e-5, atol=1e-5)

    # Sanity: each head's Q should be orthogonal (Q @ Q^T ~= I).
    qqT = jnp.einsum("hij,hkj->hik", q_kernel, q_kernel)
    eye = jnp.tile(jnp.eye(dim, dtype=jnp.float32)[None], (num_heads, 1, 1))
    np.testing.assert_allclose(np.asarray(qqT), np.asarray(eye),
                               rtol=1e-4, atol=1e-4)

    print("KERNEL_OK")
</pallas_src>

<mosaic_0001>
module attributes {stable_mosaic.version = 11 : i64} {
  func.func @_givens_kernel(%arg0: memref<4x16xf32, #tpu.memory_space<smem>>, %arg1: memref<32x128xf32, #tpu.memory_space<vmem>>) attributes {dimension_semantics = [], scalar_prefetch = 0 : i64, scratch_operands = 0 : i64, tpu.core_type = #tpu.core_type<tc>} {
    %0 = tpu.iota {dimensions = array<i32: 1>} : vector<1x128xi32>
    %c0_i32 = arith.constant 0 : i32
    %1 = vector.broadcast %c0_i32 : i32 to vector<1x128xi32>
    %2 = arith.cmpi sge, %0, %1 : vector<1x128xi32>
    %c32_i32 = arith.constant 32 : i32
    %3 = vector.broadcast %c32_i32 : i32 to vector<1x128xi32>
    %4 = arith.cmpi slt, %0, %3 : vector<1x128xi32>
    %5 = arith.andi %2, %4 : vector<1x128xi1>
    %c32_i32_0 = arith.constant 32 : i32
    %6 = vector.broadcast %c32_i32_0 : i32 to vector<1x128xi32>
    %7 = arith.cmpi sge, %0, %6 : vector<1x128xi32>
    %c64_i32 = arith.constant 64 : i32
    %8 = vector.broadcast %c64_i32 : i32 to vector<1x128xi32>
    %9 = arith.cmpi slt, %0, %8 : vector<1x128xi32>
    %10 = arith.andi %7, %9 : vector<1x128xi1>
    %c64_i32_1 = arith.constant 64 : i32
    %11 = vector.broadcast %c64_i32_1 : i32 to vector<1x128xi32>
    %12 = arith.cmpi sge, %0, %11 : vector<1x128xi32>
    %c96_i32 = arith.constant 96 : i32
    %13 = vector.broadcast %c96_i32 : i32 to vector<1x128xi32>
    %14 = arith.cmpi slt, %0, %13 : vector<1x128xi32>
    %15 = arith.andi %12, %14 : vector<1x128xi1>
    %c96_i32_2 = arith.constant 96 : i32
    %16 = vector.broadcast %c96_i32_2 : i32 to vector<1x128xi32>
    %17 = arith.cmpi sge, %0, %16 : vector<1x128xi32>
    %c128_i32 = arith.constant 128 : i32
    %18 = vector.broadcast %c128_i32 : i32 to vector<1x128xi32>
    %19 = arith.cmpi slt, %0, %18 : vector<1x128xi32>
    %20 = arith.andi %17, %19 : vector<1x128xi1>
    %c32_i32_3 = arith.constant 32 : i32
    %21 = vector.broadcast %c32_i32_3 : i32 to vector<1x128xi32>
    %22 = arith.subi %0, %21 : vector<1x128xi32>
    %23 = arith.select %10, %22, %0 : vector<1x128xi1>, vector<1x128xi32>
    %c64_i32_4 = arith.constant 64 : i32
    %24 = vector.broadcast %c64_i32_4 : i32 to vector<1x128xi32>
    %25 = arith.subi %0, %24 : vector<1x128xi32>
    %26 = arith.select %15, %25, %23 : vector<1x128xi1>, vector<1x128xi32>
    %c96_i32_5 = arith.constant 96 : i32
    %27 = vector.broadcast %c96_i32_5 : i32 to vector<1x128xi32>
    %28 = arith.subi %0, %27 : vector<1x128xi32>
    %29 = arith.select %20, %28, %26 : vector<1x128xi1>, vector<1x128xi32>
    %30 = tpu.iota {dimensions = array<i32: 0>} : vector<32x128xi32>
    %31 = vector.broadcast %29 : vector<1x128xi32> to vector<32x128xi32>
    %32 = arith.cmpi eq, %30, %31 : vector<32x128xi32>
    %33 = arith.extui %32 : vector<32x128xi1> to vector<32x128xi32>
    %34 = arith.sitofp %33 : vector<32x128xi32> to vector<32x128xf32>
    %c0 = arith.constant 0 : index
    %c0_6 = arith.constant 0 : index
    %35 = vector.load %arg1[%c0, %c0_6] : memref<32x128xf32, #tpu.memory_space<vmem>>, vector<32x128xf32>
    tpu.vector_store %arg1[%c0, %c0_6], %34 {strides = array<i32>} : memref<32x128xf32, #tpu.memory_space<vmem>>, vector<32x128xf32>,
    %c0_i32_7 = arith.constant 0 : i32
    %36 = vector.broadcast %c0_i32_7 : i32 to vector<1x128xi32>
    %37 = arith.cmpi eq, %29, %36 : vector<1x128xi32>
    %38 = arith.extui %37 : vector<1x128xi1> to vector<1x128xi32>
    %39 = arith.sitofp %38 : vector<1x128xi32> to vector<1x128xf32>
    %cst = arith.constant 0.000000e+00 : f32
    %40 = vector.broadcast %cst : f32 to vector<1x128xf32>
    %c0_8 = arith.constant 0 : index
    %c0_9 = arith.constant 0 : index
    %41 = memref.load %arg0[%c0_8, %c0_9] : memref<4x16xf32, #tpu.memory_space<smem>>
    %42 = vector.broadcast %41 : f32 to vector<1x128xf32>
    %43 = arith.select %5, %42, %40 : vector<1x128xi1>, vector<1x128xf32>
    %c1 = arith.constant 1 : index
    %c0_10 = arith.constant 0 : index
    %44 = memref.load %arg0[%c1, %c0_10] : memref<4x16xf32, #tpu.memory_space<smem>>
    %45 = vector.broadcast %44 : f32 to vector<1x128xf32>
    %46 = arith.select %10, %45, %43 : vector<1x128xi1>, vector<1x128xf32>
    %c2 = arith.constant 2 : index
    %c0_11 = arith.constant 0 : index
    %47 = memref.load %arg0[%c2, %c0_11] : memref<4x16xf32, #tpu.memory_space<smem>>
    %48 = vector.broadcast %47 : f32 to vector<1x128xf32>
    %49 = arith.select %15, %48, %46 : vector<1x128xi1>, vector<1x128xf32>
    %c3 = arith.constant 3 : index
    %c0_12 = arith.constant 0 : index
    %50 = memref.load %arg0[%c3, %c0_12] : memref<4x16xf32, #tpu.memory_space<smem>>
    %51 = vector.broadcast %50 : f32 to vector<1x128xf32>
    %52 = arith.select %20, %51, %49 : vector<1x128xi1>, vector<1x128xf32>
    %53 = math.cos %52 : vector<1x128xf32>
    %54 = math.sin %52 : vector<1x128xf32>
    %c1_i32 = arith.constant 1 : i32
    %55 = vector.broadcast %c1_i32 : i32 to vector<1x128xi32>
    %56 = arith.cmpi eq, %29, %55 : vector<1x128xi32>
    %cst_13 = arith.constant 0.000000e+00 : f32
    %57 = vector.broadcast %cst_13 : f32 to vector<1x128xf32>
    %58 = arith.select %56, %53, %57 : vector<1x128xi1>, vector<1x128xf32>
    %59 = arith.mulf %54, %39 : vector<1x128xf32>
    %60 = arith.subf %58, %59 : vector<1x128xf32>
    %c1_14 = arith.constant 1 : index
    %c0_15 = arith.constant 0 : index
    %61 = vector.load %arg1[%c1_14, %c0_15] : memref<32x128xf32, #tpu.memory_space<vmem>>, vector<1x128xf32>
    tpu.vector_store %arg1[%c1_14, %c0_15], %60 {strides = array<i32>} : memref<32x128xf32, #tpu.memory_space<vmem>>, vector<1x128xf32>,
    %62 = arith.mulf %53, %39 : vector<1x128xf32>
    %cst_16 = arith.constant 0.000000e+00 : f32
    %63 = vector.broadcast %cst_16 : f32 to vector<1x128xf32>
    %64 = arith.select %56, %54, %63 : vector<1x128xi1>, vector<1x128xf32>
    %65 = arith.addf %62, %64 : vector<1x128xf32>
    %cst_17 = arith.constant 0.000000e+00 : f32
    %66 = vector.broadcast %cst_17 : f32 to vector<1x128xf32>
    %c0_18 = arith.constant 0 : index
    %c1_19 = arith.constant 1 : index
    %67 = memref.load %arg0[%c0_18, %c1_19] : memref<4x16xf32, #tpu.memory_space<smem>>
    %68 = vector.broadcast %67 : f32 to vector<1x128xf32>
    %69 = arith.select %5, %68, %66 : vector<1x128xi1>, vector<1x128xf32>
    %c1_20 = arith.constant 1 : index
    %c1_21 = arith.constant 1 : index
    %70 = memref.load %arg0[%c1_20, %c1_21] : memref<4x16xf32, #tpu.memory_space<smem>>
    %71 = vector.broadcast %70 : f32 to vector<1x128xf32>
    %72 = arith.select %10, %71, %69 : vector<1x128xi1>, vector<1x128xf32>
    %c2_22 = arith.constant 2 : index
    %c1_23 = arith.constant 1 : index
    %73 = memref.load %arg0[%c2_22, %c1_23] : memref<4x16xf32, #tpu.memory_space<smem>>
    %74 = vector.broadcast %73 : f32 to vector<1x128xf32>
    %75 = arith.select %15, %74, %72 : vector<1x128xi1>, vector<1x128xf32>
    %c3_24 = arith.constant 3 : index
    %c1_25 = arith.constant 1 : index
    %76 = memref.load %arg0[%c3_24, %c1_25] : memref<4x16xf32, #tpu.memory_space<smem>>
    %77 = vector.broadcast %76 : f32 to vector<1x128xf32>
    %78 = arith.select %20, %77, %75 : vector<1x128xi1>, vector<1x128xf32>
    %79 = math.cos %78 : vector<1x128xf32>
    %80 = math.sin %78 : vector<1x128xf32>
    %c2_i32 = arith.constant 2 : i32
    %81 = vector.broadcast %c2_i32 : i32 to vector<1x128xi32>
    %82 = arith.cmpi eq, %29, %81 : vector<1x128xi32>
    %cst_26 = arith.constant 0.000000e+00 : f32
    %83 = vector.broadcast %cst_26 : f32 to vector<1x128xf32>
    %84 = arith.select %82, %79, %83 : vector<1x128xi1>, vector<1x128xf32>
    %85 = arith.mulf %80, %65 : vector<1x128xf32>
    %86 = arith.subf %84, %85 : vector<1x128xf32>
    %c2_27 = arith.constant 2 : index
    %c0_28 = arith.constant 0 : index
    %87 = vector.load %arg1[%c2_27, %c0_28] : memref<32x128xf32, #tpu.memory_space<vmem>>, vector<1x128xf32>
    tpu.vector_store %arg1[%c2_27, %c0_28], %86 {strides = array<i32>} : memref<32x128xf32, #tpu.memory_space<vmem>>, vector<1x128xf32>,
    %88 = arith.mulf %79, %65 : vector<1x128xf32>
    %cst_29 = arith.constant 0.000000e+00 : f32
    %89 = vector.broadcast %cst_29 : f32 to vector<1x128xf32>
    %90 = arith.select %82, %80, %89 : vector<1x128xi1>, vector<1x128xf32>
    %91 = arith.addf %88, %90 : vector<1x128xf32>
    %cst_30 = arith.constant 0.000000e+00 : f32
    %92 = vector.broadcast %cst_30 : f32 to vector<1x128xf32>
    %c0_31 = arith.constant 0 : index
    %c2_32 = arith.constant 2 : index
    %93 = memref.load %arg0[%c0_31, %c2_32] : memref<4x16xf32, #tpu.memory_space<smem>>
    %94 = vector.broadcast %93 : f32 to vector<1x128xf32>
    %95 = arith.select %5, %94, %92 : vector<1x128xi1>, vector<1x128xf32>
    %c1_33 = arith.constant 1 : index
    %c2_34 = arith.constant 2 : index
    %96 = memref.load %arg0[%c1_33, %c2_34] : memref<4x16xf32, #tpu.memory_space<smem>>
    %97 = vector.broadcast %96 : f32 to vector<1x128xf32>
    %98 = arith.select %10, %97, %95 : vector<1x128xi1>, vector<1x128xf32>
    %c2_35 = arith.constant 2 : index
    %c2_36 = arith.constant 2 : index
    %99 = memref.load %arg0[%c2_35, %c2_36] : memref<4x16xf32, #tpu.memory_space<smem>>
    %100 = vector.broadcast %99 : f32 to vector<1x128xf32>
    %101 = arith.select %15, %100, %98 : vector<1x128xi1>, vector<1x128xf32>
    %c3_37 = arith.constant 3 : index
    %c2_38 = arith.constant 2 : index
    %102 = memref.load %arg0[%c3_37, %c2_38] : memref<4x16xf32, #tpu.memory_space<smem>>
    %103 = vector.broadcast %102 : f32 to vector<1x128xf32>
    %104 = arith.select %20, %103, %101 : vector<1x128xi1>, vector<1x128xf32>
    %105 = math.cos %104 : vector<1x128xf32>
    %106 = math.sin %104 : vector<1x128xf32>
    %c3_i32 = arith.constant 3 : i32
    %107 = vector.broadcast %c3_i32 : i32 to vector<1x128xi32>
    %108 = arith.cmpi eq, %29, %107 : vector<1x128xi32>
    %cst_39 = arith.constant 0.000000e+00 : f32
    %109 = vector.broadcast %cst_39 : f32 to vector<1x128xf32>
    %110 = arith.select %108, %105, %109 : vector<1x128xi1>, vector<1x128xf32>
    %111 = arith.mulf %106, %91 : vector<1x128xf32>
    %112 = arith.subf %110, %111 : vector<1x128xf32>
    %c3_40 = arith.constant 3 : index
    %c0_41 = arith.constant 0 : index
    %113 = vector.load %arg1[%c3_40, %c0_41] : memref<32x128xf32, #tpu.memory_space<vmem>>, vector<1x128xf32>
    tpu.vector_store %arg1[%c3_40, %c0_41], %112 {strides = array<i32>} : memref<32x128xf32, #tpu.memory_space<vmem>>, vector<1x128xf32>,
    %114 = arith.mulf %105, %91 : vector<1x128xf32>
    %cst_42 = arith.constant 0.000000e+00 : f32
    %115 = vector.broadcast %cst_42 : f32 to vector<1x128xf32>
    %116 = arith.select %108, %106, %115 : vector<1x128xi1>, vector<1x128xf32>
    %117 = arith.addf %114, %116 : vector<1x128xf32>
    %cst_43 = arith.constant 0.000000e+00 : f32
    %118 = vector.broadcast %cst_43 : f32 to vector<1x128xf32>
    %c0_44 = arith.constant 0 : index
    %c3_45 = arith.constant 3 : index
    %119 = memref.load %arg0[%c0_44, %c3_45] : memref<4x16xf32, #tpu.memory_space<smem>>
    %120 = vector.broadcast %119 : f32 to vector<1x128xf32>
    %121 = arith.select %5, %120, %118 : vector<1x128xi1>, vector<1x128xf32>
    %c1_46 = arith.constant 1 : index
    %c3_47 = arith.constant 3 : index
    %122 = memref.load %arg0[%c1_46, %c3_47] : memref<4x16xf32, #tpu.memory_space<smem>>
    %123 = vector.broadcast %122 : f32 to vector<1x128xf32>
    %124 = arith.select %10, %123, %121 : vector<1x128xi1>, vector<1x128xf32>
    %c2_48 = arith.constant 2 : index
    %c3_49 = arith.constant 3 : index
    %125 = memref.load %arg0[%c2_48, %c3_49] : memref<4x16xf32, #tpu.memory_space<smem>>
    %126 = vector.broadcast %125 : f32 to vector<1x128xf32>
    %127 = arith.select %15, %126, %124 : vector<1x128xi1>, vector<1x128xf32>
    %c3_50 = arith.constant 3 : index
    %c3_51 = arith.constant 3 : index
    %128 = memref.load %arg0[%c3_50, %c3_51] : memref<4x16xf32, #tpu.memory_space<smem>>
    %129 = vector.broadcast %128 : f32 to vector<1x128xf32>
    %130 = arith.select %20, %129, %127 : vector<1x128xi1>, vector<1x128xf32>
    %131 = math.cos %130 : vector<1x128xf32>
    %132 = math.sin %130 : vector<1x128xf32>
    %c4_i32 = arith.constant 4 : i32
    %133 = vector.broadcast %c4_i32 : i32 to vector<1x128xi32>
    %134 = arith.cmpi eq, %29, %133 : vector<1x128xi32>
    %cst_52 = arith.constant 0.000000e+00 : f32
    %135 = vector.broadcast %cst_52 : f32 to vector<1x128xf32>
    %136 = arith.select %134, %131, %135 : vector<1x128xi1>, vector<1x128xf32>
    %137 = arith.mulf %132, %117 : vector<1x128xf32>
    %138 = arith.subf %136, %137 : vector<1x128xf32>
    %c4 = arith.constant 4 : index
    %c0_53 = arith.constant 0 : index
    %139 = vector.load %arg1[%c4, %c0_53] : memref<32x128xf32, #tpu.memory_space<vmem>>, vector<1x128xf32>
    tpu.vector_store %arg1[%c4, %c0_53], %138 {strides = array<i32>} : memref<32x128xf32, #tpu.memory_space<vmem>>, vector<1x128xf32>,
    %140 = arith.mulf %131, %117 : vector<1x128xf32>
    %cst_54 = arith.constant 0.000000e+00 : f32
    %141 = vector.broadcast %cst_54 : f32 to vector<1x128xf32>
    %142 = arith.select %134, %132, %141 : vector<1x128xi1>, vector<1x128xf32>
    %143 = arith.addf %140, %142 : vector<1x128xf32>
    %cst_55 = arith.constant 0.000000e+00 : f32
    %144 = vector.broadcast %cst_55 : f32 to vector<1x128xf32>
    %c0_56 = arith.constant 0 : index
    %c4_57 = arith.constant 4 : index
    %145 = memref.load %arg0[%c0_56, %c4_57] : memref<4x16xf32, #tpu.memory_space<smem>>
    %146 = vector.broadcast %145 : f32 to vector<1x128xf32>
    %147 = arith.select %5, %146, %144 : vector<1x128xi1>, vector<1x128xf32>
    %c1_58 = arith.constant 1 : index
    %c4_59 = arith.constant 4 : index
    %148 = memref.load %arg0[%c1_58, %c4_59] : memref<4x16xf32, #tpu.memory_space<smem>>
    %149 = vector.broadcast %148 : f32 to vector<1x128xf32>
    %150 = arith.select %10, %149, %147 : vector<1x128xi1>, vector<1x128xf32>
    %c2_60 = arith.constant 2 : index
    %c4_61 = arith.constant 4 : index
    %151 = memref.load %arg0[%c2_60, %c4_61] : memref<4x16xf32, #tpu.memory_space<smem>>
    %152 = vector.broadcast %151 : f32 to vector<1x128xf32>
    %153 = arith.select %15, %152, %150 : vector<1x128xi1>, vector<1x128xf32>
    %c3_62 = arith.constant 3 : index
    %c4_63 = arith.constant 4 : index
    %154 = memref.load %arg0[%c3_62, %c4_63] : memref<4x16xf32, #tpu.memory_space<smem>>
    %155 = vector.broadcast %154 : f32 to vector<1x128xf32>
    %156 = arith.select %20, %155, %153 : vector<1x128xi1>, vector<1x128xf32>
    %157 = math.cos %156 : vector<1x128xf32>
    %158 = math.sin %156 : vector<1x128xf32>
    %c5_i32 = arith.constant 5 : i32
    %159 = vector.broadcast %c5_i32 : i32 to vector<1x128xi32>
    %160 = arith.cmpi eq, %29, %159 : vector<1x128xi32>
    %cst_64 = arith.constant 0.000000e+00 : f32
    %161 = vector.broadcast %cst_64 : f32 to vector<1x128xf32>
    %162 = arith.select %160, %157, %161 : vector<1x128xi1>, vector<1x128xf32>
    %163 = arith.mulf %158, %143 : vector<1x128xf32>
    %164 = arith.subf %162, %163 : vector<1x128xf32>
    %c5 = arith.constant 5 : index
    %c0_65 = arith.constant 0 : index
    %165 = vector.load %arg1[%c5, %c0_65] : memref<32x128xf32, #tpu.memory_space<vmem>>, vector<1x128xf32>
    tpu.vector_store %arg1[%c5, %c0_65], %164 {strides = array<i32>} : memref<32x128xf32, #tpu.memory_space<vmem>>, vector<1x128xf32>,
    %166 = arith.mulf %157, %143 : vector<1x128xf32>
    %cst_66 = arith.constant 0.000000e+00 : f32
    %167 = vector.broadcast %cst_66 : f32 to vector<1x128xf32>
    %168 = arith.select %160, %158, %167 : vector<1x128xi1>, vector<1x128xf32>
    %169 = arith.addf %166, %168 : vector<1x128xf32>
    %cst_67 = arith.constant 0.000000e+00 : f32
    %170 = vector.broadcast %cst_67 : f32 to vector<1x128xf32>
    %c0_68 = arith.constant 0 : index
    %c5_69 = arith.constant 5 : index
    %171 = memref.load %arg0[%c0_68, %c5_69] : memref<4x16xf32, #tpu.memory_space<smem>>
    %172 = vector.broadcast %171 : f32 to vector<1x128xf32>
    %173 = arith.select %5, %172, %170 : vector<1x128xi1>, vector<1x128xf32>
    %c1_70 = arith.constant 1 : index
    %c5_71 = arith.constant 5 : index
    %174 = memref.load %arg0[%c1_70, %c5_71] : memref<4x16xf32, #tpu.memory_space<smem>>
    %175 = vector.broadcast %174 : f32 to vector<1x128xf32>
    %176 = arith.select %10, %175, %173 : vector<1x128xi1>, vector<1x128xf32>
    %c2_72 = arith.constant 2 : index
    %c5_73 = arith.constant 5 : index
    %177 = memref.load %arg0[%c2_72, %c5_73] : memref<4x16xf32, #tpu.memory_space<smem>>
    %178 = vector.broadcast %177 : f32 to vector<1x128xf32>
    %179 = arith.select %15, %178, %176 : vector<1x128xi1>, vector<1x128xf32>
    %c3_74 = arith.constant 3 : index
    %c5_75 = arith.constant 5 : index
    %180 = memref.load %arg0[%c3_74, %c5_75] : memref<4x16xf32, #tpu.memory_space<smem>>
    %181 = vector.broadcast %180 : f32 to vector<1x128xf32>
    %182 = arith.select %20, %181, %179 : vector<1x128xi1>, vector<1x128xf32>
    %183 = math.cos %182 : vector<1x128xf32>
    %184 = math.sin %182 : vector<1x128xf32>
    %c6_i32 = arith.constant 6 : i32
    %185 = vector.broadcast %c6_i32 : i32 to vector<1x128xi32>
    %186 = arith.cmpi eq, %29, %185 : vector<1x128xi32>
    %cst_76 = arith.constant 0.000000e+00 : f32
    %187 = vector.broadcast %cst_76 : f32 to vector<1x128xf32>
    %188 = arith.select %186, %183, %187 : vector<1x128xi1>, vector<1x128xf32>
    %189 = arith.mulf %184, %169 : vector<1x128xf32>
    %190 = arith.subf %188, %189 : vector<1x128xf32>
    %c6 = arith.constant 6 : index
    %c0_77 = arith.constant 0 : index
    %191 = vector.load %arg1[%c6, %c0_77] : memref<32x128xf32, #tpu.memory_space<vmem>>, vector<1x128xf32>
    tpu.vector_store %arg1[%c6, %c0_77], %190 {strides = array<i32>} : memref<32x128xf32, #tpu.memory_space<vmem>>, vector<1x128xf32>,
    %192 = arith.mulf %183, %169 : vector<1x128xf32>
    %cst_78 = arith.constant 0.000000e+00 : f32
    %193 = vector.broadcast %cst_78 : f32 to vector<1x128xf32>
    %194 = arith.select %186, %184, %193 : vector<1x128xi1>, vector<1x128xf32>
    %195 = arith.addf %192, %194 : vector<1x128xf32>
    %cst_79 = arith.constant 0.000000e+00 : f32
    %196 = vector.broadcast %cst_79 : f32 to vector<1x128xf32>
    %c0_80 = arith.constant 0 : index
    %c6_81 = arith.constant 6 : index
    %197 = memref.load %arg0[%c0_80, %c6_81] : memref<4x16xf32, #tpu.memory_space<smem>>
    %198 = vector.broadcast %197 : f32 to vector<1x128xf32>
    %199 = arith.select %5, %198, %196 : vector<1x128xi1>, vector<1x128xf32>
    %c1_82 = arith.constant 1 : index
    %c6_83 = arith.constant 6 : index
    %200 = memref.load %arg0[%c1_82, %c6_83] : memref<4x16xf32, #tpu.memory_space<smem>>
    %201 = vector.broadcast %200 : f32 to vector<1x128xf32>
    %202 = arith.select %10, %201, %199 : vector<1x128xi1>, vector<1x128xf32>
    %c2_84 = arith.constant 2 : index
    %c6_85 = arith.constant 6 : index
    %203 = memref.load %arg0[%c2_84, %c6_85] : memref<4x16xf32, #tpu.memory_space<smem>>
    %204 = vector.broadcast %203 : f32 to vector<1x128xf32>
    %205 = arith.select %15, %204, %202 : vector<1x128xi1>, vector<1x128xf32>
    %c3_86 = arith.constant 3 : index
    %c6_87 = arith.constant 6 : index
    %206 = memref.load %arg0[%c3_86, %c6_87] : memref<4x16xf32, #tpu.memory_space<smem>>
    %207 = vector.broadcast %206 : f32 to vector<1x128xf32>
    %208 = arith.select %20, %207, %205 : vector<1x128xi1>, vector<1x128xf32>
    %209 = math.cos %208 : vector<1x128xf32>
    %210 = math.sin %208 : vector<1x128xf32>
    %c7_i32 = arith.constant 7 : i32
    %211 = vector.broadcast %c7_i32 : i32 to vector<1x128xi32>
    %212 = arith.cmpi eq, %29, %211 : vector<1x128xi32>
    %cst_88 = arith.constant 0.000000e+00 : f32
    %213 = vector.broadcast %cst_88 : f32 to vector<1x128xf32>
    %214 = arith.select %212, %209, %213 : vector<1x128xi1>, vector<1x128xf32>
    %215 = arith.mulf %210, %195 : vector<1x128xf32>
    %216 = arith.subf %214, %215 : vector<1x128xf32>
    %c7 = arith.constant 7 : index
    %c0_89 = arith.constant 0 : index
    %217 = vector.load %arg1[%c7, %c0_89] : memref<32x128xf32, #tpu.memory_space<vmem>>, vector<1x128xf32>
    tpu.vector_store %arg1[%c7, %c0_89], %216 {strides = array<i32>} : memref<32x128xf32, #tpu.memory_space<vmem>>, vector<1x128xf32>,
    %218 = arith.mulf %209, %195 : vector<1x128xf32>
    %cst_90 = arith.constant 0.000000e+00 : f32
    %219 = vector.broadcast %cst_90 : f32 to vector<1x128xf32>
    %220 = arith.select %212, %210, %219 : vector<1x128xi1>, vector<1x128xf32>
    %221 = arith.addf %218, %220 : vector<1x128xf32>
    %cst_91 = arith.constant 0.000000e+00 : f32
    %222 = vector.broadcast %cst_91 : f32 to vector<1x128xf32>
    %c0_92 = arith.constant 0 : index
    %c7_93 = arith.constant 7 : index
    %223 = memref.load %arg0[%c0_92, %c7_93] : memref<4x16xf32, #tpu.memory_space<smem>>
    %224 = vector.broadcast %223 : f32 to vector<1x128xf32>
    %225 = arith.select %5, %224, %222 : vector<1x128xi1>, vector<1x128xf32>
    %c1_94 = arith.constant 1 : index
    %c7_95 = arith.constant 7 : index
    %226 = memref.load %arg0[%c1_94, %c7_95] : memref<4x16xf32, #tpu.memory_space<smem>>
    %227 = vector.broadcast %226 : f32 to vector<1x128xf32>
    %228 = arith.select %10, %227, %225 : vector<1x128xi1>, vector<1x128xf32>
    %c2_96 = arith.constant 2 : index
    %c7_97 = arith.constant 7 : index
    %229 = memref.load %arg0[%c2_96, %c7_97] : memref<4x16xf32, #tpu.memory_space<smem>>
    %230 = vector.broadcast %229 : f32 to vector<1x128xf32>
    %231 = arith.select %15, %230, %228 : vector<1x128xi1>, vector<1x128xf32>
    %c3_98 = arith.constant 3 : index
    %c7_99 = arith.constant 7 : index
    %232 = memref.load %arg0[%c3_98, %c7_99] : memref<4x16xf32, #tpu.memory_space<smem>>
    %233 = vector.broadcast %232 : f32 to vector<1x128xf32>
    %234 = arith.select %20, %233, %231 : vector<1x128xi1>, vector<1x128xf32>
    %235 = math.cos %234 : vector<1x128xf32>
    %236 = math.sin %234 : vector<1x128xf32>
    %c8_i32 = arith.constant 8 : i32
    %237 = vector.broadcast %c8_i32 : i32 to vector<1x128xi32>
    %238 = arith.cmpi eq, %29, %237 : vector<1x128xi32>
    %cst_100 = arith.constant 0.000000e+00 : f32
    %239 = vector.broadcast %cst_100 : f32 to vector<1x128xf32>
    %240 = arith.select %238, %235, %239 : vector<1x128xi1>, vector<1x128xf32>
    %241 = arith.mulf %236, %221 : vector<1x128xf32>
    %242 = arith.subf %240, %241 : vector<1x128xf32>
    %c8 = arith.constant 8 : index
    %c0_101 = arith.constant 0 : index
    %243 = vector.load %arg1[%c8, %c0_101] : memref<32x128xf32, #tpu.memory_space<vmem>>, vector<1x128xf32>
    tpu.vector_store %arg1[%c8, %c0_101], %242 {strides = array<i32>} : memref<32x128xf32, #tpu.memory_space<vmem>>, vector<1x128xf32>,
    %244 = arith.mulf %235, %221 : vector<1x128xf32>
    %cst_102 = arith.constant 0.000000e+00 : f32
    %245 = vector.broadcast %cst_102 : f32 to vector<1x128xf32>
    %246 = arith.select %238, %236, %245 : vector<1x128xi1>, vector<1x128xf32>
    %247 = arith.addf %244, %246 : vector<1x128xf32>
    %cst_103 = arith.constant 0.000000e+00 : f32
    %248 = vector.broadcast %cst_103 : f32 to vector<1x128xf32>
    %c0_104 = arith.constant 0 : index
    %c8_105 = arith.constant 8 : index
    %249 = memref.load %arg0[%c0_104, %c8_105] : memref<4x16xf32, #tpu.memory_space<smem>>
    %250 = vector.broadcast %249 : f32 to vector<1x128xf32>
    %251 = arith.select %5, %250, %248 : vector<1x128xi1>, vector<1x128xf32>
    %c1_106 = arith.constant 1 : index
    %c8_107 = arith.constant 8 : index
    %252 = memref.load %arg0[%c1_106, %c8_107] : memref<4x16xf32, #tpu.memory_space<smem>>
    %253 = vector.broadcast %252 : f32 to vector<1x128xf32>
    %254 = arith.select %10, %253, %251 : vector<1x128xi1>, vector<1x128xf32>
    %c2_108 = arith.constant 2 : index
    %c8_109 = arith.constant 8 : index
    %255 = memref.load %arg0[%c2_108, %c8_109] : memref<4x16xf32, #tpu.memory_space<smem>>
    %256 = vector.broadcast %255 : f32 to vector<1x128xf32>
    %257 = arith.select %15, %256, %254 : vector<1x128xi1>, vector<1x128xf32>
    %c3_110 = arith.constant 3 : index
    %c8_111 = arith.constant 8 : index
    %258 = memref.load %arg0[%c3_110, %c8_111] : memref<4x16xf32, #tpu.memory_space<smem>>
    %259 = vector.broadcast %258 : f32 to vector<1x128xf32>
    %260 = arith.select %20, %259, %257 : vector<1x128xi1>, vector<1x128xf32>
    %261 = math.cos %260 : vector<1x128xf32>
    %262 = math.sin %260 : vector<1x128xf32>
    %c9_i32 = arith.constant 9 : i32
    %263 = vector.broadcast %c9_i32 : i32 to vector<1x128xi32>
    %264 = arith.cmpi eq, %29, %263 : vector<1x128xi32>
    %cst_112 = arith.constant 0.000000e+00 : f32
    %265 = vector.broadcast %cst_112 : f32 to vector<1x128xf32>
    %266 = arith.select %264, %261, %265 : vector<1x128xi1>, vector<1x128xf32>
    %267 = arith.mulf %262, %247 : vector<1x128xf32>
    %268 = arith.subf %266, %267 : vector<1x128xf32>
    %c9 = arith.constant 9 : index
    %c0_113 = arith.constant 0 : index
    %269 = vector.load %arg1[%c9, %c0_113] : memref<32x128xf32, #tpu.memory_space<vmem>>, vector<1x128xf32>
    tpu.vector_store %arg1[%c9, %c0_113], %268 {strides = array<i32>} : memref<32x128xf32, #tpu.memory_space<vmem>>, vector<1x128xf32>,
    %270 = arith.mulf %261, %247 : vector<1x128xf32>
    %cst_114 = arith.constant 0.000000e+00 : f32
    %271 = vector.broadcast %cst_114 : f32 to vector<1x128xf32>
    %272 = arith.select %264, %262, %271 : vector<1x128xi1>, vector<1x128xf32>
    %273 = arith.addf %270, %272 : vector<1x128xf32>
    %cst_115 = arith.constant 0.000000e+00 : f32
    %274 = vector.broadcast %cst_115 : f32 to vector<1x128xf32>
    %c0_116 = arith.constant 0 : index
    %c9_117 = arith.constant 9 : index
    %275 = memref.load %arg0[%c0_116, %c9_117] : memref<4x16xf32, #tpu.memory_space<smem>>
    %276 = vector.broadcast %275 : f32 to vector<1x128xf32>
    %277 = arith.select %5, %276, %274 : vector<1x128xi1>, vector<1x128xf32>
    %c1_118 = arith.constant 1 : index
    %c9_119 = arith.constant 9 : index
    %278 = memref.load %arg0[%c1_118, %c9_119] : memref<4x16xf32, #tpu.memory_space<smem>>
    %279 = vector.broadcast %278 : f32 to vector<1x128xf32>
    %280 = arith.select %10, %279, %277 : vector<1x128xi1>, vector<1x128xf32>
    %c2_120 = arith.constant 2 : index
    %c9_121 = arith.constant 9 : index
    %281 = memref.load %arg0[%c2_120, %c9_121] : memref<4x16xf32, #tpu.memory_space<smem>>
    %282 = vector.broadcast %281 : f32 to vector<1x128xf32>
    %283 = arith.select %15, %282, %280 : vector<1x128xi1>, vector<1x128xf32>
    %c3_122 = arith.constant 3 : index
    %c9_123 = arith.constant 9 : index
    %284 = memref.load %arg0[%c3_122, %c9_123] : memref<4x16xf32, #tpu.memory_space<smem>>
    %285 = vector.broadcast %284 : f32 to vector<1x128xf32>
    %286 = arith.select %20, %285, %283 : vector<1x128xi1>, vector<1x128xf32>
    %287 = math.cos %286 : vector<1x128xf32>
    %288 = math.sin %286 : vector<1x128xf32>
    %c10_i32 = arith.constant 10 : i32
    %289 = vector.broadcast %c10_i32 : i32 to vector<1x128xi32>
    %290 = arith.cmpi eq, %29, %289 : vector<1x128xi32>
    %cst_124 = arith.constant 0.000000e+00 : f32
    %291 = vector.broadcast %cst_124 : f32 to vector<1x128xf32>
    %292 = arith.select %290, %287, %291 : vector<1x128xi1>, vector<1x128xf32>
    %293 = arith.mulf %288, %273 : vector<1x128xf32>
    %294 = arith.subf %292, %293 : vector<1x128xf32>
    %c10 = arith.constant 10 : index
    %c0_125 = arith.constant 0 : index
    %295 = vector.load %arg1[%c10, %c0_125] : memref<32x128xf32, #tpu.memory_space<vmem>>, vector<1x128xf32>
    tpu.vector_store %arg1[%c10, %c0_125], %294 {strides = array<i32>} : memref<32x128xf32, #tpu.memory_space<vmem>>, vector<1x128xf32>,
    %296 = arith.mulf %287, %273 : vector<1x128xf32>
    %cst_126 = arith.constant 0.000000e+00 : f32
    %297 = vector.broadcast %cst_126 : f32 to vector<1x128xf32>
    %298 = arith.select %290, %288, %297 : vector<1x128xi1>, vector<1x128xf32>
    %299 = arith.addf %296, %298 : vector<1x128xf32>
    %cst_127 = arith.constant 0.000000e+00 : f32
    %300 = vector.broadcast %cst_127 : f32 to vector<1x128xf32>
    %c0_128 = arith.constant 0 : index
    %c10_129 = arith.constant 10 : index
    %301 = memref.load %arg0[%c0_128, %c10_129] : memref<4x16xf32, #tpu.memory_space<smem>>
    %302 = vector.broadcast %301 : f32 to vector<1x128xf32>
    %303 = arith.select %5, %302, %300 : vector<1x128xi1>, vector<1x128xf32>
    %c1_130 = arith.constant 1 : index
    %c10_131 = arith.constant 10 : index
    %304 = memref.load %arg0[%c1_130, %c10_131] : memref<4x16xf32, #tpu.memory_space<smem>>
    %305 = vector.broadcast %304 : f32 to vector<1x128xf32>
    %306 = arith.select %10, %305, %303 : vector<1x128xi1>, vector<1x128xf32>
    %c2_132 = arith.constant 2 : index
    %c10_133 = arith.constant 10 : index
    %307 = memref.load %arg0[%c2_132, %c10_133] : memref<4x16xf32, #tpu.memory_space<smem>>
    %308 = vector.broadcast %307 : f32 to vector<1x128xf32>
    %309 = arith.select %15, %308, %306 : vector<1x128xi1>, vector<1x128xf32>
    %c3_134 = arith.constant 3 : index
    %c10_135 = arith.constant 10 : index
    %310 = memref.load %arg0[%c3_134, %c10_135] : memref<4x16xf32, #tpu.memory_space<smem>>
    %311 = vector.broadcast %310 : f32 to vector<1x128xf32>
    %312 = arith.select %20, %311, %309 : vector<1x128xi1>, vector<1x128xf32>
    %313 = math.cos %312 : vector<1x128xf32>
    %314 = math.sin %312 : vector<1x128xf32>
    %c11_i32 = arith.constant 11 : i32
    %315 = vector.broadcast %c11_i32 : i32 to vector<1x128xi32>
    %316 = arith.cmpi eq, %29, %315 : vector<1x128xi32>
    %cst_136 = arith.constant 0.000000e+00 : f32
    %317 = vector.broadcast %cst_136 : f32 to vector<1x128xf32>
    %318 = arith.select %316, %313, %317 : vector<1x128xi1>, vector<1x128xf32>
    %319 = arith.mulf %314, %299 : vector<1x128xf32>
    %320 = arith.subf %318, %319 : vector<1x128xf32>
    %c11 = arith.constant 11 : index
    %c0_137 = arith.constant 0 : index
    %321 = vector.load %arg1[%c11, %c0_137] : memref<32x128xf32, #tpu.memory_space<vmem>>, vector<1x128xf32>
    tpu.vector_store %arg1[%c11, %c0_137], %320 {strides = array<i32>} : memref<32x128xf32, #tpu.memory_space<vmem>>, vector<1x128xf32>,
    %322 = arith.mulf %313, %299 : vector<1x128xf32>
    %cst_138 = arith.constant 0.000000e+00 : f32
    %323 = vector.broadcast %cst_138 : f32 to vector<1x128xf32>
    %324 = arith.select %316, %314, %323 : vector<1x128xi1>, vector<1x128xf32>
    %325 = arith.addf %322, %324 : vector<1x128xf32>
    %cst_139 = arith.constant 0.000000e+00 : f32
    %326 = vector.broadcast %cst_139 : f32 to vector<1x128xf32>
    %c0_140 = arith.constant 0 : index
    %c11_141 = arith.constant 11 : index
    %327 = memref.load %arg0[%c0_140, %c11_141] : memref<4x16xf32, #tpu.memory_space<smem>>
    %328 = vector.broadcast %327 : f32 to vector<1x128xf32>
    %329 = arith.select %5, %328, %326 : vector<1x128xi1>, vector<1x128xf32>
    %c1_142 = arith.constant 1 : index
    %c11_143 = arith.constant 11 : index
    %330 = memref.load %arg0[%c1_142, %c11_143] : memref<4x16xf32, #tpu.memory_space<smem>>
    %331 = vector.broadcast %330 : f32 to vector<1x128xf32>
    %332 = arith.select %10, %331, %329 : vector<1x128xi1>, vector<1x128xf32>
    %c2_144 = arith.constant 2 : index
    %c11_145 = arith.constant 11 : index
    %333 = memref.load %arg0[%c2_144, %c11_145] : memref<4x16xf32, #tpu.memory_space<smem>>
    %334 = vector.broadcast %333 : f32 to vector<1x128xf32>
    %335 = arith.select %15, %334, %332 : vector<1x128xi1>, vector<1x128xf32>
    %c3_146 = arith.constant 3 : index
    %c11_147 = arith.constant 11 : index
    %336 = memref.load %arg0[%c3_146, %c11_147] : memref<4x16xf32, #tpu.memory_space<smem>>
    %337 = vector.broadcast %336 : f32 to vector<1x128xf32>
    %338 = arith.select %20, %337, %335 : vector<1x128xi1>, vector<1x128xf32>
    %339 = math.cos %338 : vector<1x128xf32>
    %340 = math.sin %338 : vector<1x128xf32>
    %c12_i32 = arith.constant 12 : i32
    %341 = vector.broadcast %c12_i32 : i32 to vector<1x128xi32>
    %342 = arith.cmpi eq, %29, %341 : vector<1x128xi32>
    %cst_148 = arith.constant 0.000000e+00 : f32
    %343 = vector.broadcast %cst_148 : f32 to vector<1x128xf32>
    %344 = arith.select %342, %339, %343 : vector<1x128xi1>, vector<1x128xf32>
    %345 = arith.mulf %340, %325 : vector<1x128xf32>
    %346 = arith.subf %344, %345 : vector<1x128xf32>
    %c12 = arith.constant 12 : index
    %c0_149 = arith.constant 0 : index
    %347 = vector.load %arg1[%c12, %c0_149] : memref<32x128xf32, #tpu.memory_space<vmem>>, vector<1x128xf32>
    tpu.vector_store %arg1[%c12, %c0_149], %346 {strides = array<i32>} : memref<32x128xf32, #tpu.memory_space<vmem>>, vector<1x128xf32>,
    %348 = arith.mulf %339, %325 : vector<1x128xf32>
    %cst_150 = arith.constant 0.000000e+00 : f32
    %349 = vector.broadcast %cst_150 : f32 to vector<1x128xf32>
    %350 = arith.select %342, %340, %349 : vector<1x128xi1>, vector<1x128xf32>
    %351 = arith.addf %348, %350 : vector<1x128xf32>
    %cst_151 = arith.constant 0.000000e+00 : f32
    %352 = vector.broadcast %cst_151 : f32 to vector<1x128xf32>
    %c0_152 = arith.constant 0 : index
    %c12_153 = arith.constant 12 : index
    %353 = memref.load %arg0[%c0_152, %c12_153] : memref<4x16xf32, #tpu.memory_space<smem>>
    %354 = vector.broadcast %353 : f32 to vector<1x128xf32>
    %355 = arith.select %5, %354, %352 : vector<1x128xi1>, vector<1x128xf32>
    %c1_154 = arith.constant 1 : index
    %c12_155 = arith.constant 12 : index
    %356 = memref.load %arg0[%c1_154, %c12_155] : memref<4x16xf32, #tpu.memory_space<smem>>
    %357 = vector.broadcast %356 : f32 to vector<1x128xf32>
    %358 = arith.select %10, %357, %355 : vector<1x128xi1>, vector<1x128xf32>
    %c2_156 = arith.constant 2 : index
    %c12_157 = arith.constant 12 : index
    %359 = memref.load %arg0[%c2_156, %c12_157] : memref<4x16xf32, #tpu.memory_space<smem>>
    %360 = vector.broadcast %359 : f32 to vector<1x128xf32>
    %361 = arith.select %15, %360, %358 : vector<1x128xi1>, vector<1x128xf32>
    %c3_158 = arith.constant 3 : index
    %c12_159 = arith.constant 12 : index
    %362 = memref.load %arg0[%c3_158, %c12_159] : memref<4x16xf32, #tpu.memory_space<smem>>
    %363 = vector.broadcast %362 : f32 to vector<1x128xf32>
    %364 = arith.select %20, %363, %361 : vector<1x128xi1>, vector<1x128xf32>
    %365 = math.cos %364 : vector<1x128xf32>
    %366 = math.sin %364 : vector<1x128xf32>
    %c13_i32 = arith.constant 13 : i32
    %367 = vector.broadcast %c13_i32 : i32 to vector<1x128xi32>
    %368 = arith.cmpi eq, %29, %367 : vector<1x128xi32>
    %cst_160 = arith.constant 0.000000e+00 : f32
    %369 = vector.broadcast %cst_160 : f32 to vector<1x128xf32>
    %370 = arith.select %368, %365, %369 : vector<1x128xi1>, vector<1x128xf32>
    %371 = arith.mulf %366, %351 : vector<1x128xf32>
    %372 = arith.subf %370, %371 : vector<1x128xf32>
    %c13 = arith.constant 13 : index
    %c0_161 = arith.constant 0 : index
    %373 = vector.load %arg1[%c13, %c0_161] : memref<32x128xf32, #tpu.memory_space<vmem>>, vector<1x128xf32>
    tpu.vector_store %arg1[%c13, %c0_161], %372 {strides = array<i32>} : memref<32x128xf32, #tpu.memory_space<vmem>>, vector<1x128xf32>,
    %374 = arith.mulf %365, %351 : vector<1x128xf32>
    %cst_162 = arith.constant 0.000000e+00 : f32
    %375 = vector.broadcast %cst_162 : f32 to vector<1x128xf32>
    %376 = arith.select %368, %366, %375 : vector<1x128xi1>, vector<1x128xf32>
    %377 = arith.addf %374, %376 : vector<1x128xf32>
    %cst_163 = arith.constant 0.000000e+00 : f32
    %378 = vector.broadcast %cst_163 : f32 to vector<1x128xf32>
    %c0_164 = arith.constant 0 : index
    %c13_165 = arith.constant 13 : index
    %379 = memref.load %arg0[%c0_164, %c13_165] : memref<4x16xf32, #tpu.memory_space<smem>>
    %380 = vector.broadcast %379 : f32 to vector<1x128xf32>
    %381 = arith.select %5, %380, %378 : vector<1x128xi1>, vector<1x128xf32>
    %c1_166 = arith.constant 1 : index
    %c13_167 = arith.constant 13 : index
    %382 = memref.load %arg0[%c1_166, %c13_167] : memref<4x16xf32, #tpu.memory_space<smem>>
    %383 = vector.broadcast %382 : f32 to vector<1x128xf32>
    %384 = arith.select %10, %383, %381 : vector<1x128xi1>, vector<1x128xf32>
    %c2_168 = arith.constant 2 : index
    %c13_169 = arith.constant 13 : index
    %385 = memref.load %arg0[%c2_168, %c13_169] : memref<4x16xf32, #tpu.memory_space<smem>>
    %386 = vector.broadcast %385 : f32 to vector<1x128xf32>
    %387 = arith.select %15, %386, %384 : vector<1x128xi1>, vector<1x128xf32>
    %c3_170 = arith.constant 3 : index
    %c13_171 = arith.constant 13 : index
    %388 = memref.load %arg0[%c3_170, %c13_171] : memref<4x16xf32, #tpu.memory_space<smem>>
    %389 = vector.broadcast %388 : f32 to vector<1x128xf32>
    %390 = arith.select %20, %389, %387 : vector<1x128xi1>, vector<1x128xf32>
    %391 = math.cos %390 : vector<1x128xf32>
    %392 = math.sin %390 : vector<1x128xf32>
    %c14_i32 = arith.constant 14 : i32
    %393 = vector.broadcast %c14_i32 : i32 to vector<1x128xi32>
    %394 = arith.cmpi eq, %29, %393 : vector<1x128xi32>
    %cst_172 = arith.constant 0.000000e+00 : f32
    %395 = vector.broadcast %cst_172 : f32 to vector<1x128xf32>
    %396 = arith.select %394, %391, %395 : vector<1x128xi1>, vector<1x128xf32>
    %397 = arith.mulf %392, %377 : vector<1x128xf32>
    %398 = arith.subf %396, %397 : vector<1x128xf32>
    %c14 = arith.constant 14 : index
    %c0_173 = arith.constant 0 : index
    %399 = vector.load %arg1[%c14, %c0_173] : memref<32x128xf32, #tpu.memory_space<vmem>>, vector<1x128xf32>
    tpu.vector_store %arg1[%c14, %c0_173], %398 {strides = array<i32>} : memref<32x128xf32, #tpu.memory_space<vmem>>, vector<1x128xf32>,
    %400 = arith.mulf %391, %377 : vector<1x128xf32>
    %cst_174 = arith.constant 0.000000e+00 : f32
    %401 = vector.broadcast %cst_174 : f32 to vector<1x128xf32>
    %402 = arith.select %394, %392, %401 : vector<1x128xi1>, vector<1x128xf32>
    %403 = arith.addf %400, %402 : vector<1x128xf32>
    %cst_175 = arith.constant 0.000000e+00 : f32
    %404 = vector.broadcast %cst_175 : f32 to vector<1x128xf32>
    %c0_176 = arith.constant 0 : index
    %c14_177 = arith.constant 14 : index
    %405 = memref.load %arg0[%c0_176, %c14_177] : memref<4x16xf32, #tpu.memory_space<smem>>
    %406 = vector.broadcast %405 : f32 to vector<1x128xf32>
    %407 = arith.select %5, %406, %404 : vector<1x128xi1>, vector<1x128xf32>
    %c1_178 = arith.constant 1 : index
    %c14_179 = arith.constant 14 : index
    %408 = memref.load %arg0[%c1_178, %c14_179] : memref<4x16xf32, #tpu.memory_space<smem>>
    %409 = vector.broadcast %408 : f32 to vector<1x128xf32>
    %410 = arith.select %10, %409, %407 : vector<1x128xi1>, vector<1x128xf32>
    %c2_180 = arith.constant 2 : index
    %c14_181 = arith.constant 14 : index
    %411 = memref.load %arg0[%c2_180, %c14_181] : memref<4x16xf32, #tpu.memory_space<smem>>
    %412 = vector.broadcast %411 : f32 to vector<1x128xf32>
    %413 = arith.select %15, %412, %410 : vector<1x128xi1>, vector<1x128xf32>
    %c3_182 = arith.constant 3 : index
    %c14_183 = arith.constant 14 : index
    %414 = memref.load %arg0[%c3_182, %c14_183] : memref<4x16xf32, #tpu.memory_space<smem>>
    %415 = vector.broadcast %414 : f32 to vector<1x128xf32>
    %416 = arith.select %20, %415, %413 : vector<1x128xi1>, vector<1x128xf32>
    %417 = math.cos %416 : vector<1x128xf32>
    %418 = math.sin %416 : vector<1x128xf32>
    %c15_i32 = arith.constant 15 : i32
    %419 = vector.broadcast %c15_i32 : i32 to vector<1x128xi32>
    %420 = arith.cmpi eq, %29, %419 : vector<1x128xi32>
    %cst_184 = arith.constant 0.000000e+00 : f32
    %421 = vector.broadcast %cst_184 : f32 to vector<1x128xf32>
    %422 = arith.select %420, %417, %421 : vector<1x128xi1>, vector<1x128xf32>
    %423 = arith.mulf %418, %403 : vector<1x128xf32>
    %424 = arith.subf %422, %423 : vector<1x128xf32>
    %c15 = arith.constant 15 : index
    %c0_185 = arith.constant 0 : index
    %425 = vector.load %arg1[%c15, %c0_185] : memref<32x128xf32, #tpu.memory_space<vmem>>, vector<1x128xf32>
    tpu.vector_store %arg1[%c15, %c0_185], %424 {strides = array<i32>} : memref<32x128xf32, #tpu.memory_space<vmem>>, vector<1x128xf32>,
    %426 = arith.mulf %417, %403 : vector<1x128xf32>
    %cst_186 = arith.constant 0.000000e+00 : f32
    %427 = vector.broadcast %cst_186 : f32 to vector<1x128xf32>
    %428 = arith.select %420, %418, %427 : vector<1x128xi1>, vector<1x128xf32>
    %429 = arith.addf %426, %428 : vector<1x128xf32>
    %cst_187 = arith.constant 0.000000e+00 : f32
    %430 = vector.broadcast %cst_187 : f32 to vector<1x128xf32>
    %c0_188 = arith.constant 0 : index
    %c15_189 = arith.constant 15 : index
    %431 = memref.load %arg0[%c0_188, %c15_189] : memref<4x16xf32, #tpu.memory_space<smem>>
    %432 = vector.broadcast %431 : f32 to vector<1x128xf32>
    %433 = arith.select %5, %432, %430 : vector<1x128xi1>, vector<1x128xf32>
    %c1_190 = arith.constant 1 : index
    %c15_191 = arith.constant 15 : index
    %434 = memref.load %arg0[%c1_190, %c15_191] : memref<4x16xf32, #tpu.memory_space<smem>>
    %435 = vector.broadcast %434 : f32 to vector<1x128xf32>
    %436 = arith.select %10, %435, %433 : vector<1x128xi1>, vector<1x128xf32>
    %c2_192 = arith.constant 2 : index
    %c15_193 = arith.constant 15 : index
    %437 = memref.load %arg0[%c2_192, %c15_193] : memref<4x16xf32, #tpu.memory_space<smem>>
    %438 = vector.broadcast %437 : f32 to vector<1x128xf32>
    %439 = arith.select %15, %438, %436 : vector<1x128xi1>, vector<1x128xf32>
    %c3_194 = arith.constant 3 : index
    %c15_195 = arith.constant 15 : index
    %440 = memref.load %arg0[%c3_194, %c15_195] : memref<4x16xf32, #tpu.memory_space<smem>>
    %441 = vector.broadcast %440 : f32 to vector<1x128xf32>
    %442 = arith.select %20, %441, %439 : vector<1x128xi1>, vector<1x128xf32>
    %443 = math.cos %442 : vector<1x128xf32>
    %444 = math.sin %442 : vector<1x128xf32>
    %c16_i32 = arith.constant 16 : i32
    %445 = vector.broadcast %c16_i32 : i32 to vector<1x128xi32>
    %446 = arith.cmpi eq, %29, %445 : vector<1x128xi32>
    %cst_196 = arith.constant 0.000000e+00 : f32
    %447 = vector.broadcast %cst_196 : f32 to vector<1x128xf32>
    %448 = arith.select %446, %443, %447 : vector<1x128xi1>, vector<1x128xf32>
    %449 = arith.mulf %444, %429 : vector<1x128xf32>
    %450 = arith.subf %448, %449 : vector<1x128xf32>
    %c16 = arith.constant 16 : index
    %c0_197 = arith.constant 0 : index
    %451 = vector.load %arg1[%c16, %c0_197] : memref<32x128xf32, #tpu.memory_space<vmem>>, vector<1x128xf32>
    tpu.vector_store %arg1[%c16, %c0_197], %450 {strides = array<i32>} : memref<32x128xf32, #tpu.memory_space<vmem>>, vector<1x128xf32>,
    %452 = arith.mulf %443, %429 : vector<1x128xf32>
    %cst_198 = arith.constant 0.000000e+00 : f32
    %453 = vector.broadcast %cst_198 : f32 to vector<1x128xf32>
    %454 = arith.select %446, %444, %453 : vector<1x128xi1>, vector<1x128xf32>
    %455 = arith.addf %452, %454 : vector<1x128xf32>
    %c0_199 = arith.constant 0 : index
    %c0_200 = arith.constant 0 : index
    %456 = vector.load %arg1[%c0_199, %c0_200] : memref<32x128xf32, #tpu.memory_space<vmem>>, vector<1x128xf32>
    tpu.vector_store %arg1[%c0_199, %c0_200], %455 {strides = array<i32>} : memref<32x128xf32, #tpu.memory_space<vmem>>, vector<1x128xf32>,
    return
  }
}

</mosaic_0001>

<llo_original>
// kernel: tpu_custom_call.1
$region0: #{tpu_custom_call.1}
  #allocation0 [shape = 'u32[]', space=smem, size = 0x4, offset = 0x4, fixed_abs, tag = 'smem constant byte address 0x4 - core index']
  #allocation1 [shape = 'u32[144,128]{1,0:T(1,128)}', space=vmem, size = 0x12000, scoped, tag = 'internal scratch']
  %s0 = inlined_call_operand.hbm [shape: f32[4,16], index: 0, kind: input, shape index: {}]
  %s1 = inlined_call_operand.hbm [shape: f32[32,128], index: 1, kind: output, shape index: {}]
  %s2 = sld [smem:[#allocation0]]
  $region18: #{tpu_custom_call.1} parent=0
    _
  %s4 = ssub.s32 1, %s2
  %s5 = scalar_select 0, %s4, %s2
  $region1: #{tpu_custom_call.1} parent=0
    #allocation2 [shape = 'u8[2048]{0}', space=smem, size = 0x800, scoped, tag = 'input window, operand 0, single buffered']
    #allocation3 [shape = 's32[1]{0}', space=sflag, size = 0x4, scoped, tag = 'scoped memory for tpu_custom_call.1']
    #allocation4 [shape = 's32[1]{0}', space=sflag, size = 0x4, scoped, tag = 'scoped memory for tpu_custom_call.1']
    #allocation5 [shape = 'u8[16384]{0}', space=vmem, size = 0x4000, scoped, tag = 'output window, operand 0, single buffered']
    %6 = vsyncpa [#allocation4], 0
    %7 = vsyncpa [#allocation3], 0
    // Predicated region
    $region2: #{tpu_custom_call.1} parent=1 // pred_check
      _
    $region3: #{tpu_custom_call.1} parent=1 // pred_check_branch
      %9 = sbr.rel (0) target = $region5
    $region4: #{tpu_custom_call.1} parent=1 // pred_region
      %s11 = ssub.s32 64, 64
      %12 = vsyncadd [#allocation4], %s11
      %15 = dma.hbm_to_smem %s0, 64, [#allocation2], [#allocation4]
    $region5: #{tpu_custom_call.1} parent=1 // pred_fallthru
      _
    // Predicated region
    $region6: #{tpu_custom_call.1} parent=1 // pred_check
      _
    $region7: #{tpu_custom_call.1} parent=1 // pred_check_branch
      %17 = sbr.rel (0) target = $region9
    $region8: #{tpu_custom_call.1} parent=1 // pred_region
      %18 = dma.done [#allocation4], 64
    $region9: #{tpu_custom_call.1} parent=1 // pred_fallthru
      _
    %19 = sfence
    %v20 = vlaneseq
    %v21 = vand.u32 %v20, 127
    %vm22 = vcmp.ge.s32.totalorder %v21, 0
    %vm23 = vcmp.lt.s32.totalorder %v21, 32
    %vm24 = vmand %vm22, %vm23
    %vm25 = vcmp.ge.s32.totalorder %v21, 32
    %vm26 = vcmp.lt.s32.totalorder %v21, 64
    %vm27 = vmand %vm25, %vm26
    %vm28 = vcmp.ge.s32.totalorder %v21, 64
    %vm29 = vcmp.lt.s32.totalorder %v21, 96
    %vm30 = vmand %vm28, %vm29
    %vm31 = vcmp.ge.s32.totalorder %v21, 96
    %vm32 = vcmp.lt.s32.totalorder %v21, 128
    %vm33 = vmand %vm31, %vm32
    %v34 = vsub.s32 %v21, 32
    %v35 = vsel %vm27, %v34, %v21
    %v36 = vsub.s32 %v21, 64
    %v37 = vsel %vm30, %v36, %v35
    %v38 = vsub.s32 %v21, 96
    %v39 = vsel %vm33, %v38, %v37
    %v40 = vlaneseq
    %v41 = vshrl.u32 %v40, 7
    %v42 = vadd.s32 %v41, 8
    %v43 = vadd.s32 %v41, 16
    %v44 = vadd.s32 %v41, 24
    %vm45 = vcmp.eq.s32.totalorder %v41, %v39
    %vm46 = vcmp.eq.s32.totalorder %v42, %v39
    %vm47 = vcmp.eq.s32.totalorder %v43, %v39
    %vm48 = vcmp.eq.s32.totalorder %v44, %v39
    %v49 = vsel %vm45, 1, 0
    %v50 = vsel %vm46, 1, 0
    %v51 = vsel %vm47, 1, 0
    %v52 = vsel %vm48, 1, 0
    %v53 = vcvt.s32.f32 %v49
    %v54 = vcvt.s32.f32 %v50
    %v55 = vcvt.s32.f32 %v51
    %v56 = vcvt.s32.f32 %v52
    %57 = vst [vmem:[#allocation5] sm:$0xff] %v53
    %58 = vst [vmem:[#allocation5 + $0x8] sm:$0xff] %v54
    %59 = vst [vmem:[#allocation5 + $0x10] sm:$0xff] %v55
    %60 = vst [vmem:[#allocation5 + $0x18] sm:$0xff] %v56
    %vm61 = vcmp.eq.s32.totalorder %v39, 0
    %v62 = vsel %vm61, 1, 0
    %v63 = vcvt.s32.f32 %v62
    %s64 = sld [smem:[#allocation2]]
    %v65 = vstv %s64
    %v66 = vsel %vm24, %v65, 0.0
    %s67 = sld [smem:[#allocation2 + $0x80]]
    %v68 = vstv %s67
    %v69 = vsel %vm27, %v68, %v66
    %s70 = sld [smem:[#allocation2 + $0x100]]
    %v71 = vstv %s70
    %v72 = vsel %vm30, %v71, %v69
    %s73 = sld [smem:[#allocation2 + $0x180]]
    %v74 = vstv %s73
    %v75 = vsel %vm33, %v74, %v72
    %v76 = vand.u32 2147483647, %v75
    %vm77 = vcmp.le.f32.partialorder %v76, 0.7853982
    %vm78 = vcmp.lt.s32.totalorder %v75, 0
    %v79 = vand.u32 %v75, 2139095040
    %v80 = vshrl.u32 %v79, 23
    %v81 = vsub.s32 %v80, 127
    %v82 = vand.u32 2147483647, %v75
    %v83 = vand.u32 %v82, 8388607
    %v84 = vor.u32 %v83, 8388608
    %v85 = vsub.s32 0, %v84
    %v86 = vadd.s32 %v81, 1
    %vm87 = vcmp.gt.s32.totalorder %v86, 0
    %v88 = vsel %vm87, %v86, 0
    %v89 = vshrl.u32 %v88, 5
    %v90 = vand.u32 %v88, 31
    %v91 = vsub.s32 32, %v90
    %v92 = vshrl.u32 683565275, %v91
    %v93 = vshll.u32 683565275, %v90
    %v94 = vshrl.u32 2475754826, %v91
    %v95 = vor.u32 %v93, %v94
    %v96 = vshll.u32 2475754826, %v90
    %v97 = vshrl.u32 2131351028, %v91
    %v98 = vor.u32 %v96, %v97
    %v99 = vshll.u32 2131351028, %v90
    %v100 = vshrl.u32 2102212464, %v91
    %v101 = vor.u32 %v99, %v100
    %v102 = vshll.u32 2102212464, %v90
    %v103 = vshrl.u32 920167782, %v91
    %v104 = vor.u32 %v102, %v103
    %v105 = vshll.u32 920167782, %v90
    %v106 = vshrl.u32 1326507024, %v91
    %v107 = vor.u32 %v105, %v106
    %vm108 = vcmp.lt.s32.totalorder %v89, 1
    %vm109 = vcmp.lt.s32.totalorder %v89, 2
    %vm110 = vcmp.lt.s32.totalorder %v89, 3
    %vm111 = vcmp.lt.s32.totalorder %v89, 4
    %v112 = vsel %vm108, %v92, %v95
    %v113 = vsel %vm111, %v101, 2102212464
    %v114 = vsel %vm110, %v98, %v113
    %v115 = vsel %vm109, %v112, %v114
    %v116 = vsel %vm108, %v95, %v98
    %v117 = vsel %vm111, %v104, 920167782
    %v118 = vsel %vm110, %v101, %v117
    %v119 = vsel %vm109, %v116, %v118
    %v120 = vsel %vm108, %v98, %v101
    %v121 = vsel %vm111, %v107, 1326507024
    %v122 = vsel %vm110, %v104, %v121
    %v123 = vsel %vm109, %v120, %v122
    %v124 = vshll.u32 %v84, 8
    %v125 = vmul.u32.u64.compose %v124, %v123
    %v126 = vextract.low.u32 %v125
    %v127 = vextract.high.u32 %v125
    %v128 = vmul.u32.u64.compose %v124, %v119
    %v129 = vextract.low.u32 %v128
    %v130 = vextract.high.u32 %v128
    %v131 = vmul.u32 %v124, %v115
    %v132 = vadd.s32 %v127, %v129
    %vm133 = vc.u32 %v127, %v129
    %v134 = vadd.s32 %v130, 1
    %v135 = vsel %vm133, %v134, %v130
    %v136 = vadd.s32 %v131, %v135
    %v137 = vadd.s32 %v136, 536870912
    %v138 = vshrl.u32 %v137, 30
    %v139 = vshll.u32 %v138, 30
    %v140 = vsub.s32 %v136, %v139
    %vm141 = vcmp.lt.s32.totalorder %v140, 0
    %v142 = vsub.s32 0, %v140
    %v143 = vsel %vm141, %v142, %v140
    %v144 = vclz %v143
    %v145 = vsub.s32 %v144, 2
    %vm146 = vcmp.gt.s32.totalorder 0, %v145
    %v147 = vsel %vm146, 0, %v145
    %v148 = vsub.s32 32, %v147
    %v149 = vshll.u32 %v140, %v147
    %v150 = vshrl.u32 %v132, %v148
    %v151 = vor.u32 %v149, %v150
    %v152 = vsub.s32 4294967266, %v147
    %v153 = vadd.s32 %v152, 127
    %v154 = vshll.u32 %v153, 23
    %v155 = vor.u32 4788187, %v154
    %v156 = vand.u32 2147483647, %v155
    %v158 = vcvt.s32.f32 %v151
    %v159 = vmul.f32 %v158, %v156
    %v160 = vxor.u32 %v159, 2147483648
    %v161 = vsel %vm78, %v160, %v159
    %v162 = vsub.s32 4, %v138
    %v163 = vsel %vm78, %v162, %v138
    %v164 = vsel %vm77, %v75, %v161
    %v165 = vsel %vm77, 0, %v163
    %v166 = vcosq.f32.pop %v164
    %v167 = vsinq.f32.pop %v164
    %vm168 = vweird.f32 %v75
    %v169 = vand.u32 %v165, 3
    %vm170 = vcmp.lt.s32.totalorder %v169, 2
    %vm171 = vcmp.eq.s32.totalorder %v169, 0
    %v172 = vxor.u32 %v167, 2147483648
    %v173 = vsel %vm171, %v166, %v172
    %vm174 = vcmp.eq.s32.totalorder %v169, 2
    %v175 = vxor.u32 %v166, 2147483648
    %v176 = vsel %vm174, %v175, %v167
    %v177 = vsel %vm170, %v173, %v176
    %v178 = vsel %vm168, nan, %v177
    %v179 = vand.u32 2147483647, %v75
    %vm180 = vcmp.le.f32.partialorder %v179, 0.7853982
    %vm181 = vcmp.lt.s32.totalorder %v75, 0
    %v182 = vand.u32 %v75, 2139095040
    %v183 = vshrl.u32 %v182, 23
    %v184 = vsub.s32 %v183, 127
    %v185 = vand.u32 2147483647, %v75
    %v186 = vand.u32 %v185, 8388607
    %v187 = vor.u32 %v186, 8388608
    %v188 = vsub.s32 0, %v187
    %v189 = vadd.s32 %v184, 1
    %vm190 = vcmp.gt.s32.totalorder %v189, 0
    %v191 = vsel %vm190, %v189, 0
    %v192 = vshrl.u32 %v191, 5
    %v193 = vand.u32 %v191, 31
    %v194 = vsub.s32 32, %v193
    %v195 = vshrl.u32 683565275, %v194
    %v196 = vshll.u32 683565275, %v193
    %v197 = vshrl.u32 2475754826, %v194
    %v198 = vor.u32 %v196, %v197
    %v199 = vshll.u32 2475754826, %v193
    %v200 = vshrl.u32 2131351028, %v194
    %v201 = vor.u32 %v199, %v200
    %v202 = vshll.u32 2131351028, %v193
    %v203 = vshrl.u32 2102212464, %v194
    %v204 = vor.u32 %v202, %v203
    %v205 = vshll.u32 2102212464, %v193
    %v206 = vshrl.u32 920167782, %v194
    %v207 = vor.u32 %v205, %v206
    %v208 = vshll.u32 920167782, %v193
    %v209 = vshrl.u32 1326507024, %v194
    %v210 = vor.u32 %v208, %v209
    %vm211 = vcmp.lt.s32.totalorder %v192, 1
    %vm212 = vcmp.lt.s32.totalorder %v192, 2
    %vm213 = vcmp.lt.s32.totalorder %v192, 3
    %vm214 = vcmp.lt.s32.totalorder %v192, 4
    %v215 = vsel %vm211, %v195, %v198
    %v216 = vsel %vm214, %v204, 2102212464
    %v217 = vsel %vm213, %v201, %v216
    %v218 = vsel %vm212, %v215, %v217
    %v219 = vsel %vm211, %v198, %v201
    %v220 = vsel %vm214, %v207, 920167782
    %v221 = vsel %vm213, %v204, %v220
    %v222 = vsel %vm212, %v219, %v221
    %v223 = vsel %vm211, %v201, %v204
    %v224 = vsel %vm214, %v210, 1326507024
    %v225 = vsel %vm213, %v207, %v224
    %v226 = vsel %vm212, %v223, %v225
    %v227 = vshll.u32 %v187, 8
    %v228 = vmul.u32.u64.compose %v227, %v226
    %v229 = vextract.low.u32 %v228
    %v230 = vextract.high.u32 %v228
    %v231 = vmul.u32.u64.compose %v227, %v222
    %v232 = vextract.low.u32 %v231
    %v233 = vextract.high.u32 %v231
    %v234 = vmul.u32 %v227, %v218
    %v235 = vadd.s32 %v230, %v232
    %vm236 = vc.u32 %v230, %v232
    %v237 = vadd.s32 %v233, 1
    %v238 = vsel %vm236, %v237, %v233
    %v239 = vadd.s32 %v234, %v238
    %v240 = vadd.s32 %v239, 536870912
    %v241 = vshrl.u32 %v240, 30
    %v242 = vshll.u32 %v241, 30
    %v243 = vsub.s32 %v239, %v242
    %vm244 = vcmp.lt.s32.totalorder %v243, 0
    %v245 = vsub.s32 0, %v243
    %v246 = vsel %vm244, %v245, %v243
    %v247 = vclz %v246
    %v248 = vsub.s32 %v247, 2
    %vm249 = vcmp.gt.s32.totalorder 0, %v248
    %v250 = vsel %vm249, 0, %v248
    %v251 = vsub.s32 32, %v250
    %v252 = vshll.u32 %v243, %v250
    %v253 = vshrl.u32 %v235, %v251
    %v254 = vor.u32 %v252, %v253
    %v255 = vsub.s32 4294967266, %v250
    %v256 = vadd.s32 %v255, 127
    %v257 = vshll.u32 %v256, 23
    %v258 = vor.u32 4788187, %v257
    %v259 = vand.u32 2147483647, %v258
    %v261 = vcvt.s32.f32 %v254
    %v262 = vmul.f32 %v261, %v259
    %v263 = vxor.u32 %v262, 2147483648
    %v264 = vsel %vm181, %v263, %v262
    %v265 = vsub.s32 4, %v241
    %v266 = vsel %vm181, %v265, %v241
    %v267 = vsel %vm180, %v75, %v264
    %v268 = vsel %vm180, 0, %v266
    %v269 = vcosq.f32.pop %v267
    %v270 = vsinq.f32.pop %v267
    %vm271 = vweird.f32 %v75
    %v272 = vadd.s32 %v268, 3
    %v273 = vand.u32 %v272, 3
    %vm274 = vcmp.lt.s32.totalorder %v273, 2
    %vm275 = vcmp.eq.s32.totalorder %v273, 0
    %v276 = vxor.u32 %v270, 2147483648
    %v277 = vsel %vm275, %v269, %v276
    %vm278 = vcmp.eq.s32.totalorder %v273, 2
    %v279 = vxor.u32 %v269, 2147483648
    %v280 = vsel %vm278, %v279, %v270
    %v281 = vsel %vm274, %v277, %v280
    %v282 = vsel %vm271, nan, %v281
    %vm283 = vcmp.eq.s32.totalorder %v39, 1
    %v284 = vsel %vm283, %v178, 0.0
    %v285 = vmul.f32 %v282, %v63
    %v286 = vsub.f32 %v284, %v285
    %287 = vst [vmem:[#allocation5 + $0x1] sm:$0x1] %v286
    %v288 = vmul.f32 %v178, %v63
    %v289 = vsel %vm283, %v282, 0.0
    %v290 = vadd.f32 %v288, %v289
    %s291 = sld [smem:[#allocation2 + $0x1]]
    %v292 = vstv %s291
    %v293 = vsel %vm24, %v292, 0.0
    %s294 = sld [smem:[#allocation2 + $0x81]]
    %v295 = vstv %s294
    %v296 = vsel %vm27, %v295, %v293
    %s297 = sld [smem:[#allocation2 + $0x101]]
    %v298 = vstv %s297
    %v299 = vsel %vm30, %v298, %v296
    %s300 = sld [smem:[#allocation2 + $0x181]]
    %v301 = vstv %s300
    %v302 = vsel %vm33, %v301, %v299
    %v303 = vand.u32 2147483647, %v302
    %vm304 = vcmp.le.f32.partialorder %v303, 0.7853982
    %vm305 = vcmp.lt.s32.totalorder %v302, 0
    %v306 = vand.u32 %v302, 2139095040
    %v307 = vshrl.u32 %v306, 23
    %v308 = vsub.s32 %v307, 127
    %v309 = vand.u32 2147483647, %v302
    %v310 = vand.u32 %v309, 8388607
    %v311 = vor.u32 %v310, 8388608
    %v312 = vsub.s32 0, %v311
    %v313 = vadd.s32 %v308, 1
    %vm314 = vcmp.gt.s32.totalorder %v313, 0
    %v315 = vsel %vm314, %v313, 0
    %v316 = vshrl.u32 %v315, 5
    %v317 = vand.u32 %v315, 31
    %v318 = vsub.s32 32, %v317
    %v319 = vshrl.u32 683565275, %v318
    %v320 = vshll.u32 683565275, %v317
    %v321 = vshrl.u32 2475754826, %v318
    %v322 = vor.u32 %v320, %v321
    %v323 = vshll.u32 2475754826, %v317
    %v324 = vshrl.u32 2131351028, %v318
    %v325 = vor.u32 %v323, %v324
    %v326 = vshll.u32 2131351028, %v317
    %v327 = vshrl.u32 2102212464, %v318
    %v328 = vor.u32 %v326, %v327
    %v329 = vshll.u32 2102212464, %v317
    %v330 = vshrl.u32 920167782, %v318
    %v331 = vor.u32 %v329, %v330
    %v332 = vshll.u32 920167782, %v317
    %v333 = vshrl.u32 1326507024, %v318
    %v334 = vor.u32 %v332, %v333
    %vm335 = vcmp.lt.s32.totalorder %v316, 1
    %vm336 = vcmp.lt.s32.totalorder %v316, 2
    %vm337 = vcmp.lt.s32.totalorder %v316, 3
    %vm338 = vcmp.lt.s32.totalorder %v316, 4
    %v339 = vsel %vm335, %v319, %v322
    %v340 = vsel %vm338, %v328, 2102212464
    %v341 = vsel %vm337, %v325, %v340
    %v342 = vsel %vm336, %v339, %v341
    %v343 = vsel %vm335, %v322, %v325
    %v344 = vsel %vm338, %v331, 920167782
    %v345 = vsel %vm337, %v328, %v344
    %v346 = vsel %vm336, %v343, %v345
    %v347 = vsel %vm335, %v325, %v328
    %v348 = vsel %vm338, %v334, 1326507024
    %v349 = vsel %vm337, %v331, %v348
    %v350 = vsel %vm336, %v347, %v349
    %v351 = vshll.u32 %v311, 8
    %v352 = vmul.u32.u64.compose %v351, %v350
    %v353 = vextract.low.u32 %v352
    %v354 = vextract.high.u32 %v352
    %v355 = vmul.u32.u64.compose %v351, %v346
    %v356 = vextract.low.u32 %v355
    %v357 = vextract.high.u32 %v355
    %v358 = vmul.u32 %v351, %v342
    %v359 = vadd.s32 %v354, %v356
    %vm360 = vc.u32 %v354, %v356
    %v361 = vadd.s32 %v357, 1
    %v362 = vsel %vm360, %v361, %v357
    %v363 = vadd.s32 %v358, %v362
    %v364 = vadd.s32 %v363, 536870912
    %v365 = vshrl.u32 %v364, 30
    %v366 = vshll.u32 %v365, 30
    %v367 = vsub.s32 %v363, %v366
    %vm368 = vcmp.lt.s32.totalorder %v367, 0
    %v369 = vsub.s32 0, %v367
    %v370 = vsel %vm368, %v369, %v367
    %v371 = vclz %v370
    %v372 = vsub.s32 %v371, 2
    %vm373 = vcmp.gt.s32.totalorder 0, %v372
    %v374 = vsel %vm373, 0, %v372
    %v375 = vsub.s32 32, %v374
    %v376 = vshll.u32 %v367, %v374
    %v377 = vshrl.u32 %v359, %v375
    %v378 = vor.u32 %v376, %v377
    %v379 = vsub.s32 4294967266, %v374
    %v380 = vadd.s32 %v379, 127
    %v381 = vshll.u32 %v380, 23
    %v382 = vor.u32 4788187, %v381
    %v383 = vand.u32 2147483647, %v382
    %v385 = vcvt.s32.f32 %v378
    %v386 = vmul.f32 %v385, %v383
    %v387 = vxor.u32 %v386, 2147483648
    %v388 = vsel %vm305, %v387, %v386
    %v389 = vsub.s32 4, %v365
    %v390 = vsel %vm305, %v389, %v365
    %v391 = vsel %vm304, %v302, %v388
    %v392 = vsel %vm304, 0, %v390
    %v393 = vcosq.f32.pop %v391
    %v394 = vsinq.f32.pop %v391
    %vm395 = vweird.f32 %v302
    %v396 = vand.u32 %v392, 3
    %vm397 = vcmp.lt.s32.totalorder %v396, 2
    %vm398 = vcmp.eq.s32.totalorder %v396, 0
    %v399 = vxor.u32 %v394, 2147483648
    %v400 = vsel %vm398, %v393, %v399
    %vm401 = vcmp.eq.s32.totalorder %v396, 2
    %v402 = vxor.u32 %v393, 2147483648
    %v403 = vsel %vm401, %v402, %v394
    %v404 = vsel %vm397, %v400, %v403
    %v405 = vsel %vm395, nan, %v404
    %v406 = vand.u32 2147483647, %v302
    %vm407 = vcmp.le.f32.partialorder %v406, 0.7853982
    %vm408 = vcmp.lt.s32.totalorder %v302, 0
    %v409 = vand.u32 %v302, 2139095040
    %v410 = vshrl.u32 %v409, 23
    %v411 = vsub.s32 %v410, 127
    %v412 = vand.u32 2147483647, %v302
    %v413 = vand.u32 %v412, 8388607
    %v414 = vor.u32 %v413, 8388608
    %v415 = vsub.s32 0, %v414
    %v416 = vadd.s32 %v411, 1
    %vm417 = vcmp.gt.s32.totalorder %v416, 0
    %v418 = vsel %vm417, %v416, 0
    %v419 = vshrl.u32 %v418, 5
    %v420 = vand.u32 %v418, 31
    %v421 = vsub.s32 32, %v420
    %v422 = vshrl.u32 683565275, %v421
    %v423 = vshll.u32 683565275, %v420
    %v424 = vshrl.u32 2475754826, %v421
    %v425 = vor.u32 %v423, %v424
    %v426 = vshll.u32 2475754826, %v420
    %v427 = vshrl.u32 2131351028, %v421
    %v428 = vor.u32 %v426, %v427
    %v429 = vshll.u32 2131351028, %v420
    %v430 = vshrl.u32 2102212464, %v421
    %v431 = vor.u32 %v429, %v430
    %v432 = vshll.u32 2102212464, %v420
    %v433 = vshrl.u32 920167782, %v421
    %v434 = vor.u32 %v432, %v433
    %v435 = vshll.u32 920167782, %v420
    %v436 = vshrl.u32 1326507024, %v421
    %v437 = vor.u32 %v435, %v436
    %vm438 = vcmp.lt.s32.totalorder %v419, 1
    %vm439 = vcmp.lt.s32.totalorder %v419, 2
    %vm440 = vcmp.lt.s32.totalorder %v419, 3
    %vm441 = vcmp.lt.s32.totalorder %v419, 4
    %v442 = vsel %vm438, %v422, %v425
    %v443 = vsel %vm441, %v431, 2102212464
    %v444 = vsel %vm440, %v428, %v443
    %v445 = vsel %vm439, %v442, %v444
    %v446 = vsel %vm438, %v425, %v428
    %v447 = vsel %vm441, %v434, 920167782
    %v448 = vsel %vm440, %v431, %v447
    %v449 = vsel %vm439, %v446, %v448
    %v450 = vsel %vm438, %v428, %v431
    %v451 = vsel %vm441, %v437, 1326507024
    %v452 = vsel %vm440, %v434, %v451
    %v453 = vsel %vm439, %v450, %v452
    %v454 = vshll.u32 %v414, 8
    %v455 = vmul.u32.u64.compose %v454, %v453
    %v456 = vextract.low.u32 %v455
    %v457 = vextract.high.u32 %v455
    %v458 = vmul.u32.u64.compose %v454, %v449
    %v459 = vextract.low.u32 %v458
    %v460 = vextract.high.u32 %v458
    %v461 = vmul.u32 %v454, %v445
    %v462 = vadd.s32 %v457, %v459
    %vm463 = vc.u32 %v457, %v459
    %v464 = vadd.s32 %v460, 1
    %v465 = vsel %vm463, %v464, %v460
    %v466 = vadd.s32 %v461, %v465
    %v467 = vadd.s32 %v466, 536870912
    %v468 = vshrl.u32 %v467, 30
    %v469 = vshll.u32 %v468, 30
    %v470 = vsub.s32 %v466, %v469
    %vm471 = vcmp.lt.s32.totalorder %v470, 0
    %v472 = vsub.s32 0, %v470
    %v473 = vsel %vm471, %v472, %v470
    %v474 = vclz %v473
    %v475 = vsub.s32 %v474, 2
    %vm476 = vcmp.gt.s32.totalorder 0, %v475
    %v477 = vsel %vm476, 0, %v475
    %v478 = vsub.s32 32, %v477
    %v479 = vshll.u32 %v470, %v477
    %v480 = vshrl.u32 %v462, %v478
    %v481 = vor.u32 %v479, %v480
    %v482 = vsub.s32 4294967266, %v477
    %v483 = vadd.s32 %v482, 127
    %v484 = vshll.u32 %v483, 23
    %v485 = vor.u32 4788187, %v484
    %v486 = vand.u32 2147483647, %v485
    %v488 = vcvt.s32.f32 %v481
    %v489 = vmul.f32 %v488, %v486
    %v490 = vxor.u32 %v489, 2147483648
    %v491 = vsel %vm408, %v490, %v489
    %v492 = vsub.s32 4, %v468
    %v493 = vsel %vm408, %v492, %v468
    %v494 = vsel %vm407, %v302, %v491
    %v495 = vsel %vm407, 0, %v493
    %v496 = vcosq.f32.pop %v494
    %v497 = vsinq.f32.pop %v494
    %vm498 = vweird.f32 %v302
    %v499 = vadd.s32 %v495, 3
    %v500 = vand.u32 %v499, 3
    %vm501 = vcmp.lt.s32.totalorder %v500, 2
    %vm502 = vcmp.eq.s32.totalorder %v500, 0
    %v503 = vxor.u32 %v497, 2147483648
    %v504 = vsel %vm502, %v496, %v503
    %vm505 = vcmp.eq.s32.totalorder %v500, 2
    %v506 = vxor.u32 %v496, 2147483648
    %v507 = vsel %vm505, %v506, %v497
    %v508 = vsel %vm501, %v504, %v507
    %v509 = vsel %vm498, nan, %v508
    %vm510 = vcmp.eq.s32.totalorder %v39, 2
    %v511 = vsel %vm510, %v405, 0.0
    %v512 = vmul.f32 %v509, %v290
    %v513 = vsub.f32 %v511, %v512
    %514 = vst [vmem:[#allocation5 + $0x2] sm:$0x1] %v513
    %v515 = vmul.f32 %v405, %v290
    %v516 = vsel %vm510, %v509, 0.0
    %v517 = vadd.f32 %v515, %v516
    %s518 = sld [smem:[#allocation2 + $0x2]]
    %v519 = vstv %s518
    %v520 = vsel %vm24, %v519, 0.0
    %s521 = sld [smem:[#allocation2 + $0x82]]
    %v522 = vstv %s521
    %v523 = vsel %vm27, %v522, %v520
    %s524 = sld [smem:[#allocation2 + $0x102]]
    %v525 = vstv %s524
    %v526 = vsel %vm30, %v525, %v523
    %s527 = sld [smem:[#allocation2 + $0x182]]
    %v528 = vstv %s527
    %v529 = vsel %vm33, %v528, %v526
    %v530 = vand.u32 2147483647, %v529
    %vm531 = vcmp.le.f32.partialorder %v530, 0.7853982
    %vm532 = vcmp.lt.s32.totalorder %v529, 0
    %v533 = vand.u32 %v529, 2139095040
    %v534 = vshrl.u32 %v533, 23
    %v535 = vsub.s32 %v534, 127
    %v536 = vand.u32 2147483647, %v529
    %v537 = vand.u32 %v536, 8388607
    %v538 = vor.u32 %v537, 8388608
    %v539 = vsub.s32 0, %v538
    %v540 = vadd.s32 %v535, 1
    %vm541 = vcmp.gt.s32.totalorder %v540, 0
    %v542 = vsel %vm541, %v540, 0
    %v543 = vshrl.u32 %v542, 5
    %v544 = vand.u32 %v542, 31
    %v545 = vsub.s32 32, %v544
    %v546 = vshrl.u32 683565275, %v545
    %v547 = vshll.u32 683565275, %v544
    %v548 = vshrl.u32 2475754826, %v545
    %v549 = vor.u32 %v547, %v548
    %v550 = vshll.u32 2475754826, %v544
    %v551 = vshrl.u32 2131351028, %v545
    %v552 = vor.u32 %v550, %v551
    %v553 = vshll.u32 2131351028, %v544
    %v554 = vshrl.u32 2102212464, %v545
    %v555 = vor.u32 %v553, %v554
    %v556 = vshll.u32 2102212464, %v544
    %v557 = vshrl.u32 920167782, %v545
    %v558 = vor.u32 %v556, %v557
    %v559 = vshll.u32 920167782, %v544
    %v560 = vshrl.u32 1326507024, %v545
    %v561 = vor.u32 %v559, %v560
    %vm562 = vcmp.lt.s32.totalorder %v543, 1
    %vm563 = vcmp.lt.s32.totalorder %v543, 2
    %vm564 = vcmp.lt.s32.totalorder %v543, 3
    %vm565 = vcmp.lt.s32.totalorder %v543, 4
    %v566 = vsel %vm562, %v546, %v549
    %v567 = vsel %vm565, %v555, 2102212464
    %v568 = vsel %vm564, %v552, %v567
    %v569 = vsel %vm563, %v566, %v568
    %v570 = vsel %vm562, %v549, %v552
    %v571 = vsel %vm565, %v558, 920167782
    %v572 = vsel %vm564, %v555, %v571
    %v573 = vsel %vm563, %v570, %v572
    %v574 = vsel %vm562, %v552, %v555
    %v575 = vsel %vm565, %v561, 1326507024
    %v576 = vsel %vm564, %v558, %v575
    %v577 = vsel %vm563, %v574, %v576
    %v578 = vshll.u32 %v538, 8
    %v579 = vmul.u32.u64.compose %v578, %v577
    %v580 = vextract.low.u32 %v579
    %v581 = vextract.high.u32 %v579
    %v582 = vmul.u32.u64.compose %v578, %v573
    %v583 = vextract.low.u32 %v582
    %v584 = vextract.high.u32 %v582
    %v585 = vmul.u32 %v578, %v569
    %v586 = vadd.s32 %v581, %v583
    %vm587 = vc.u32 %v581, %v583
    %v588 = vadd.s32 %v584, 1
    %v589 = vsel %vm587, %v588, %v584
    %v590 = vadd.s32 %v585, %v589
    %v591 = vadd.s32 %v590, 536870912
    %v592 = vshrl.u32 %v591, 30
    %v593 = vshll.u32 %v592, 30
    %v594 = vsub.s32 %v590, %v593
    %vm595 = vcmp.lt.s32.totalorder %v594, 0
    %v596 = vsub.s32 0, %v594
    %v597 = vsel %vm595, %v596, %v594
    %v598 = vclz %v597
    %v599 = vsub.s32 %v598, 2
    %vm600 = vcmp.gt.s32.totalorder 0, %v599
    %v601 = vsel %vm600, 0, %v599
    %v602 = vsub.s32 32, %v601
    %v603 = vshll.u32 %v594, %v601
    %v604 = vshrl.u32 %v586, %v602
    %v605 = vor.u32 %v603, %v604
    %v606 = vsub.s32 4294967266, %v601
    %v607 = vadd.s32 %v606, 127
    %v608 = vshll.u32 %v607, 23
    %v609 = vor.u32 4788187, %v608
    %v610 = vand.u32 2147483647, %v609
    %v612 = vcvt.s32.f32 %v605
    %v613 = vmul.f32 %v612, %v610
    %v614 = vxor.u32 %v613, 2147483648
    %v615 = vsel %vm532, %v614, %v613
    %v616 = vsub.s32 4, %v592
    %v617 = vsel %vm532, %v616, %v592
    %v618 = vsel %vm531, %v529, %v615
    %v619 = vsel %vm531, 0, %v617
    %v620 = vcosq.f32.pop %v618
    %v621 = vsinq.f32.pop %v618
    %vm622 = vweird.f32 %v529
    %v623 = vand.u32 %v619, 3
    %vm624 = vcmp.lt.s32.totalorder %v623, 2
    %vm625 = vcmp.eq.s32.totalorder %v623, 0
    %v626 = vxor.u32 %v621, 2147483648
    %v627 = vsel %vm625, %v620, %v626
    %vm628 = vcmp.eq.s32.totalorder %v623, 2
    %v629 = vxor.u32 %v620, 2147483648
    %v630 = vsel %vm628, %v629, %v621
    %v631 = vsel %vm624, %v627, %v630
    %v632 = vsel %vm622, nan, %v631
    %v633 = vand.u32 2147483647, %v529
    %vm634 = vcmp.le.f32.partialorder %v633, 0.7853982
    %vm635 = vcmp.lt.s32.totalorder %v529, 0
    %v636 = vand.u32 %v529, 2139095040
    %v637 = vshrl.u32 %v636, 23
    %v638 = vsub.s32 %v637, 127
    %v639 = vand.u32 2147483647, %v529
    %v640 = vand.u32 %v639, 8388607
    %v641 = vor.u32 %v640, 8388608
    %v642 = vsub.s32 0, %v641
    %v643 = vadd.s32 %v638, 1
    %vm644 = vcmp.gt.s32.totalorder %v643, 0
    %v645 = vsel %vm644, %v643, 0
    %v646 = vshrl.u32 %v645, 5
    %v647 = vand.u32 %v645, 31
    %v648 = vsub.s32 32, %v647
    %v649 = vshrl.u32 683565275, %v648
    %v650 = vshll.u32 683565275, %v647
    %v651 = vshrl.u32 2475754826, %v648
    %v652 = vor.u32 %v650, %v651
    %v653 = vshll.u32 2475754826, %v647
    %v654 = vshrl.u32 2131351028, %v648
    %v655 = vor.u32 %v653, %v654
    %v656 = vshll.u32 2131351028, %v647
    %v657 = vshrl.u32 2102212464, %v648
    %v658 = vor.u32 %v656, %v657
    %v659 = vshll.u32 2102212464, %v647
    %v660 = vshrl.u32 920167782, %v648
    %v661 = vor.u32 %v659, %v660
    %v662 = vshll.u32 920167782, %v647
    %v663 = vshrl.u32 1326507024, %v648
    %v664 = vor.u32 %v662, %v663
    %vm665 = vcmp.lt.s32.totalorder %v646, 1
    %vm666 = vcmp.lt.s32.totalorder %v646, 2
    %vm667 = vcmp.lt.s32.totalorder %v646, 3
    %vm668 = vcmp.lt.s32.totalorder %v646, 4
    %v669 = vsel %vm665, %v649, %v652
    %v670 = vsel %vm668, %v658, 2102212464
    %v671 = vsel %vm667, %v655, %v670
    %v672 = vsel %vm666, %v669, %v671
    %v673 = vsel %vm665, %v652, %v655
    %v674 = vsel %vm668, %v661, 920167782
    %v675 = vsel %vm667, %v658, %v674
    %v676 = vsel %vm666, %v673, %v675
    %v677 = vsel %vm665, %v655, %v658
    %v678 = vsel %vm668, %v664, 1326507024
    %v679 = vsel %vm667, %v661, %v678
    %v680 = vsel %vm666, %v677, %v679
    %v681 = vshll.u32 %v641, 8
    %v682 = vmul.u32.u64.compose %v681, %v680
    %v683 = vextract.low.u32 %v682
    %v684 = vextract.high.u32 %v682
    %v685 = vmul.u32.u64.compose %v681, %v676
    %v686 = vextract.low.u32 %v685
    %v687 = vextract.high.u32 %v685
    %v688 = vmul.u32 %v681, %v672
    %v689 = vadd.s32 %v684, %v686
    %vm690 = vc.u32 %v684, %v686
    %v691 = vadd.s32 %v687, 1
    %v692 = vsel %vm690, %v691, %v687
    %v693 = vadd.s32 %v688, %v692
    %v694 = vadd.s32 %v693, 536870912
    %v695 = vshrl.u32 %v694, 30
    %v696 = vshll.u32 %v695, 30
    %v697 = vsub.s32 %v693, %v696
    %vm698 = vcmp.lt.s32.totalorder %v697, 0
    %v699 = vsub.s32 0, %v697
    %v700 = vsel %vm698, %v699, %v697
    %v701 = vclz %v700
    %v702 = vsub.s32 %v701, 2
    %vm703 = vcmp.gt.s32.totalorder 0, %v702
    %v704 = vsel %vm703, 0, %v702
    %v705 = vsub.s32 32, %v704
    %v706 = vshll.u32 %v697, %v704
    %v707 = vshrl.u32 %v689, %v705
    %v708 = vor.u32 %v706, %v707
    %v709 = vsub.s32 4294967266, %v704
    %v710 = vadd.s32 %v709, 127
    %v711 = vshll.u32 %v710, 23
    %v712 = vor.u32 4788187, %v711
    %v713 = vand.u32 2147483647, %v712
    %v715 = vcvt.s32.f32 %v708
    %v716 = vmul.f32 %v715, %v713
    %v717 = vxor.u32 %v716, 2147483648
    %v718 = vsel %vm635, %v717, %v716
    %v719 = vsub.s32 4, %v695
    %v720 = vsel %vm635, %v719, %v695
    %v721 = vsel %vm634, %v529, %v718
    %v722 = vsel %vm634, 0, %v720
    %v723 = vcosq.f32.pop %v721
    %v724 = vsinq.f32.pop %v721
    %vm725 = vweird.f32 %v529
    %v726 = vadd.s32 %v722, 3
    %v727 = vand.u32 %v726, 3
    %vm728 = vcmp.lt.s32.totalorder %v727, 2
    %vm729 = vcmp.eq.s32.totalorder %v727, 0
    %v730 = vxor.u32 %v724, 2147483648
    %v731 = vsel %vm729, %v723, %v730
    %vm732 = vcmp.eq.s32.totalorder %v727, 2
    %v733 = vxor.u32 %v723, 2147483648
    %v734 = vsel %vm732, %v733, %v724
    %v735 = vsel %vm728, %v731, %v734
    %v736 = vsel %vm725, nan, %v735
    %vm737 = vcmp.eq.s32.totalorder %v39, 3
    %v738 = vsel %vm737, %v632, 0.0
    %v739 = vmul.f32 %v736, %v517
    %v740 = vsub.f32 %v738, %v739
    %741 = vst [vmem:[#allocation5 + $0x3] sm:$0x1] %v740
    %v742 = vmul.f32 %v632, %v517
    %v743 = vsel %vm737, %v736, 0.0
    %v744 = vadd.f32 %v742, %v743
    %s745 = sld [smem:[#allocation2 + $0x3]]
    %v746 = vstv %s745
    %v747 = vsel %vm24, %v746, 0.0
    %s748 = sld [smem:[#allocation2 + $0x83]]
    %v749 = vstv %s748
    %v750 = vsel %vm27, %v749, %v747
    %s751 = sld [smem:[#allocation2 + $0x103]]
    %v752 = vstv %s751
    %v753 = vsel %vm30, %v752, %v750
    %s754 = sld [smem:[#allocation2 + $0x183]]
    %v755 = vstv %s754
    %v756 = vsel %vm33, %v755, %v753
    %v757 = vand.u32 2147483647, %v756
    %vm758 = vcmp.le.f32.partialorder %v757, 0.7853982
    %vm759 = vcmp.lt.s32.totalorder %v756, 0
    %v760 = vand.u32 %v756, 2139095040
    %v761 = vshrl.u32 %v760, 23
    %v762 = vsub.s32 %v761, 127
    %v763 = vand.u32 2147483647, %v756
    %v764 = vand.u32 %v763, 8388607
    %v765 = vor.u32 %v764, 8388608
    %v766 = vsub.s32 0, %v765
    %v767 = vadd.s32 %v762, 1
    %vm768 = vcmp.gt.s32.totalorder %v767, 0
    %v769 = vsel %vm768, %v767, 0
    %v770 = vshrl.u32 %v769, 5
    %v771 = vand.u32 %v769, 31
    %v772 = vsub.s32 32, %v771
    %v773 = vshrl.u32 683565275, %v772
    %v774 = vshll.u32 683565275, %v771
    %v775 = vshrl.u32 2475754826, %v772
    %v776 = vor.u32 %v774, %v775
    %v777 = vshll.u32 2475754826, %v771
    %v778 = vshrl.u32 2131351028, %v772
    %v779 = vor.u32 %v777, %v778
    %v780 = vshll.u32 2131351028, %v771
    %v781 = vshrl.u32 2102212464, %v772
    %v782 = vor.u32 %v780, %v781
    %v783 = vshll.u32 2102212464, %v771
    %v784 = vshrl.u32 920167782, %v772
    %v785 = vor.u32 %v783, %v784
    %v786 = vshll.u32 920167782, %v771
    %v787 = vshrl.u32 1326507024, %v772
    %v788 = vor.u32 %v786, %v787
    %vm789 = vcmp.lt.s32.totalorder %v770, 1
    %vm790 = vcmp.lt.s32.totalorder %v770, 2
    %vm791 = vcmp.lt.s32.totalorder %v770, 3
    %vm792 = vcmp.lt.s32.totalorder %v770, 4
    %v793 = vsel %vm789, %v773, %v776
    %v794 = vsel %vm792, %v782, 2102212464
    %v795 = vsel %vm791, %v779, %v794
    %v796 = vsel %vm790, %v793, %v795
    %v797 = vsel %vm789, %v776, %v779
    %v798 = vsel %vm792, %v785, 920167782
    %v799 = vsel %vm791, %v782, %v798
    %v800 = vsel %vm790, %v797, %v799
    %v801 = vsel %vm789, %v779, %v782
    %v802 = vsel %vm792, %v788, 1326507024
    %v803 = vsel %vm791, %v785, %v802
    %v804 = vsel %vm790, %v801, %v803
    %v805 = vshll.u32 %v765, 8
    %v806 = vmul.u32.u64.compose %v805, %v804
    %v807 = vextract.low.u32 %v806
    %v808 = vextract.high.u32 %v806
    %v809 = vmul.u32.u64.compose %v805, %v800
    %v810 = vextract.low.u32 %v809
    %v811 = vextract.high.u32 %v809
    %v812 = vmul.u32 %v805, %v796
    %v813 = vadd.s32 %v808, %v810
    %vm814 = vc.u32 %v808, %v810
    %v815 = vadd.s32 %v811, 1
    %v816 = vsel %vm814, %v815, %v811
    %v817 = vadd.s32 %v812, %v816
    %v818 = vadd.s32 %v817, 536870912
    %v819 = vshrl.u32 %v818, 30
    %v820 = vshll.u32 %v819, 30
    %v821 = vsub.s32 %v817, %v820
    %vm822 = vcmp.lt.s32.totalorder %v821, 0
    %v823 = vsub.s32 0, %v821
    %v824 = vsel %vm822, %v823, %v821
    %v825 = vclz %v824
    %v826 = vsub.s32 %v825, 2
    %vm827 = vcmp.gt.s32.totalorder 0, %v826
    %v828 = vsel %vm827, 0, %v826
    %v829 = vsub.s32 32, %v828
    %v830 = vshll.u32 %v821, %v828
    %v831 = vshrl.u32 %v813, %v829
    %v832 = vor.u32 %v830, %v831
    %v833 = vsub.s32 4294967266, %v828
    %v834 = vadd.s32 %v833, 127
    %v835 = vshll.u32 %v834, 23
    %v836 = vor.u32 4788187, %v835
    %v837 = vand.u32 2147483647, %v836
    %v839 = vcvt.s32.f32 %v832
    %v840 = vmul.f32 %v839, %v837
    %v841 = vxor.u32 %v840, 2147483648
    %v842 = vsel %vm759, %v841, %v840
    %v843 = vsub.s32 4, %v819
    %v844 = vsel %vm759, %v843, %v819
    %v845 = vsel %vm758, %v756, %v842
    %v846 = vsel %vm758, 0, %v844
    %v847 = vcosq.f32.pop %v845
    %v848 = vsinq.f32.pop %v845
    %vm849 = vweird.f32 %v756
    %v850 = vand.u32 %v846, 3
    %vm851 = vcmp.lt.s32.totalorder %v850, 2
    %vm852 = vcmp.eq.s32.totalorder %v850, 0
    %v853 = vxor.u32 %v848, 2147483648
    %v854 = vsel %vm852, %v847, %v853
    %vm855 = vcmp.eq.s32.totalorder %v850, 2
    %v856 = vxor.u32 %v847, 2147483648
    %v857 = vsel %vm855, %v856, %v848
    %v858 = vsel %vm851, %v854, %v857
    %v859 = vsel %vm849, nan, %v858
    %v860 = vand.u32 2147483647, %v756
    %vm861 = vcmp.le.f32.partialorder %v860, 0.7853982
    %vm862 = vcmp.lt.s32.totalorder %v756, 0
    %v863 = vand.u32 %v756, 2139095040
    %v864 = vshrl.u32 %v863, 23
    %v865 = vsub.s32 %v864, 127
    %v866 = vand.u32 2147483647, %v756
    %v867 = vand.u32 %v866, 8388607
    %v868 = vor.u32 %v867, 8388608
    %v869 = vsub.s32 0, %v868
    %v870 = vadd.s32 %v865, 1
    %vm871 = vcmp.gt.s32.totalorder %v870, 0
    %v872 = vsel %vm871, %v870, 0
    %v873 = vshrl.u32 %v872, 5
    %v874 = vand.u32 %v872, 31
    %v875 = vsub.s32 32, %v874
    %v876 = vshrl.u32 683565275, %v875
    %v877 = vshll.u32 683565275, %v874
    %v878 = vshrl.u32 2475754826, %v875
    %v879 = vor.u32 %v877, %v878
    %v880 = vshll.u32 2475754826, %v874
    %v881 = vshrl.u32 2131351028, %v875
    %v882 = vor.u32 %v880, %v881
    %v883 = vshll.u32 2131351028, %v874
    %v884 = vshrl.u32 2102212464, %v875
    %v885 = vor.u32 %v883, %v884
    %v886 = vshll.u32 2102212464, %v874
    %v887 = vshrl.u32 920167782, %v875
    %v888 = vor.u32 %v886, %v887
    %v889 = vshll.u32 920167782, %v874
    %v890 = vshrl.u32 1326507024, %v875
    %v891 = vor.u32 %v889, %v890
    %vm892 = vcmp.lt.s32.totalorder %v873, 1
    %vm893 = vcmp.lt.s32.totalorder %v873, 2
    %vm894 = vcmp.lt.s32.totalorder %v873, 3
    %vm895 = vcmp.lt.s32.totalorder %v873, 4
    %v896 = vsel %vm892, %v876, %v879
    %v897 = vsel %vm895, %v885, 2102212464
    %v898 = vsel %vm894, %v882, %v897
    %v899 = vsel %vm893, %v896, %v898
    %v900 = vsel %vm892, %v879, %v882
    %v901 = vsel %vm895, %v888, 920167782
    %v902 = vsel %vm894, %v885, %v901
    %v903 = vsel %vm893, %v900, %v902
    %v904 = vsel %vm892, %v882, %v885
    %v905 = vsel %vm895, %v891, 1326507024
    %v906 = vsel %vm894, %v888, %v905
    %v907 = vsel %vm893, %v904, %v906
    %v908 = vshll.u32 %v868, 8
    %v909 = vmul.u32.u64.compose %v908, %v907
    %v910 = vextract.low.u32 %v909
    %v911 = vextract.high.u32 %v909
    %v912 = vmul.u32.u64.compose %v908, %v903
    %v913 = vextract.low.u32 %v912
    %v914 = vextract.high.u32 %v912
    %v915 = vmul.u32 %v908, %v899
    %v916 = vadd.s32 %v911, %v913
    %vm917 = vc.u32 %v911, %v913
    %v918 = vadd.s32 %v914, 1
    %v919 = vsel %vm917, %v918, %v914
    %v920 = vadd.s32 %v915, %v919
    %v921 = vadd.s32 %v920, 536870912
    %v922 = vshrl.u32 %v921, 30
    %v923 = vshll.u32 %v922, 30
    %v924 = vsub.s32 %v920, %v923
    %vm925 = vcmp.lt.s32.totalorder %v924, 0
    %v926 = vsub.s32 0, %v924
    %v927 = vsel %vm925, %v926, %v924
    %v928 = vclz %v927
    %v929 = vsub.s32 %v928, 2
    %vm930 = vcmp.gt.s32.totalorder 0, %v929
    %v931 = vsel %vm930, 0, %v929
    %v932 = vsub.s32 32, %v931
    %v933 = vshll.u32 %v924, %v931
    %v934 = vshrl.u32 %v916, %v932
    %v935 = vor.u32 %v933, %v934
    %v936 = vsub.s32 4294967266, %v931
    %v937 = vadd.s32 %v936, 127
    %v938 = vshll.u32 %v937, 23
    %v939 = vor.u32 4788187, %v938
    %v940 = vand.u32 2147483647, %v939
    %v942 = vcvt.s32.f32 %v935
    %v943 = vmul.f32 %v942, %v940
    %v944 = vxor.u32 %v943, 2147483648
    %v945 = vsel %vm862, %v944, %v943
    %v946 = vsub.s32 4, %v922
    %v947 = vsel %vm862, %v946, %v922
    %v948 = vsel %vm861, %v756, %v945
    %v949 = vsel %vm861, 0, %v947
    %v950 = vcosq.f32.pop %v948
    %v951 = vsinq.f32.pop %v948
    %vm952 = vweird.f32 %v756
    %v953 = vadd.s32 %v949, 3
    %v954 = vand.u32 %v953, 3
    %vm955 = vcmp.lt.s32.totalorder %v954, 2
    %vm956 = vcmp.eq.s32.totalorder %v954, 0
    %v957 = vxor.u32 %v951, 2147483648
    %v958 = vsel %vm956, %v950, %v957
    %vm959 = vcmp.eq.s32.totalorder %v954, 2
    %v960 = vxor.u32 %v950, 2147483648
    %v961 = vsel %vm959, %v960, %v951
    %v962 = vsel %vm955, %v958, %v961
    %v963 = vsel %vm952, nan, %v962
    %vm964 = vcmp.eq.s32.totalorder %v39, 4
    %v965 = vsel %vm964, %v859, 0.0
    %v966 = vmul.f32 %v963, %v744
    %v967 = vsub.f32 %v965, %v966
    %968 = vst [vmem:[#allocation5 + $0x4] sm:$0x1] %v967
    %v969 = vmul.f32 %v859, %v744
    %v970 = vsel %vm964, %v963, 0.0
    %v971 = vadd.f32 %v969, %v970
    %s972 = sld [smem:[#allocation2 + $0x4]]
    %v973 = vstv %s972
    %v974 = vsel %vm24, %v973, 0.0
    %s975 = sld [smem:[#allocation2 + $0x84]]
    %v976 = vstv %s975
    %v977 = vsel %vm27, %v976, %v974
    %s978 = sld [smem:[#allocation2 + $0x104]]
    %v979 = vstv %s978
    %v980 = vsel %vm30, %v979, %v977
    %s981 = sld [smem:[#allocation2 + $0x184]]
    %v982 = vstv %s981
    %v983 = vsel %vm33, %v982, %v980
    %v984 = vand.u32 2147483647, %v983
    %vm985 = vcmp.le.f32.partialorder %v984, 0.7853982
    %vm986 = vcmp.lt.s32.totalorder %v983, 0
    %v987 = vand.u32 %v983, 2139095040
    %v988 = vshrl.u32 %v987, 23
    %v989 = vsub.s32 %v988, 127
    %v990 = vand.u32 2147483647, %v983
    %v991 = vand.u32 %v990, 8388607
    %v992 = vor.u32 %v991, 8388608
    %v993 = vsub.s32 0, %v992
    %v994 = vadd.s32 %v989, 1
    %vm995 = vcmp.gt.s32.totalorder %v994, 0
    %v996 = vsel %vm995, %v994, 0
    %v997 = vshrl.u32 %v996, 5
    %v998 = vand.u32 %v996, 31
    %v999 = vsub.s32 32, %v998
    %v1000 = vshrl.u32 683565275, %v999
    %v1001 = vshll.u32 683565275, %v998
    %v1002 = vshrl.u32 2475754826, %v999
    %v1003 = vor.u32 %v1001, %v1002
    %v1004 = vshll.u32 2475754826, %v998
    %v1005 = vshrl.u32 2131351028, %v999
    %v1006 = vor.u32 %v1004, %v1005
    %v1007 = vshll.u32 2131351028, %v998
    %v1008 = vshrl.u32 2102212464, %v999
    %v1009 = vor.u32 %v1007, %v1008
    %v1010 = vshll.u32 2102212464, %v998
    %v1011 = vshrl.u32 920167782, %v999
    %v1012 = vor.u32 %v1010, %v1011
    %v1013 = vshll.u32 920167782, %v998
    %v1014 = vshrl.u32 1326507024, %v999
    %v1015 = vor.u32 %v1013, %v1014
    %vm1016 = vcmp.lt.s32.totalorder %v997, 1
    %vm1017 = vcmp.lt.s32.totalorder %v997, 2
    %vm1018 = vcmp.lt.s32.totalorder %v997, 3
    %vm1019 = vcmp.lt.s32.totalorder %v997, 4
    %v1020 = vsel %vm1016, %v1000, %v1003
    %v1021 = vsel %vm1019, %v1009, 2102212464
    %v1022 = vsel %vm1018, %v1006, %v1021
    %v1023 = vsel %vm1017, %v1020, %v1022
    %v1024 = vsel %vm1016, %v1003, %v1006
    %v1025 = vsel %vm1019, %v1012, 920167782
    %v1026 = vsel %vm1018, %v1009, %v1025
    %v1027 = vsel %vm1017, %v1024, %v1026
    %v1028 = vsel %vm1016, %v1006, %v1009
    %v1029 = vsel %vm1019, %v1015, 1326507024
    %v1030 = vsel %vm1018, %v1012, %v1029
    %v1031 = vsel %vm1017, %v1028, %v1030
    %v1032 = vshll.u32 %v992, 8
    %v1033 = vmul.u32.u64.compose %v1032, %v1031
    %v1034 = vextract.low.u32 %v1033
    %v1035 = vextract.high.u32 %v1033
    %v1036 = vmul.u32.u64.compose %v1032, %v1027
    %v1037 = vextract.low.u32 %v1036
    %v1038 = vextract.high.u32 %v1036
    %v1039 = vmul.u32 %v1032, %v1023
    %v1040 = vadd.s32 %v1035, %v1037
    %vm1041 = vc.u32 %v1035, %v1037
    %v1042 = vadd.s32 %v1038, 1
    %v1043 = vsel %vm1041, %v1042, %v1038
    %v1044 = vadd.s32 %v1039, %v1043
    %v1045 = vadd.s32 %v1044, 536870912
    %v1046 = vshrl.u32 %v1045, 30
    %v1047 = vshll.u32 %v1046, 30
    %v1048 = vsub.s32 %v1044, %v1047
    %vm1049 = vcmp.lt.s32.totalorder %v1048, 0
    %v1050 = vsub.s32 0, %v1048
    %v1051 = vsel %vm1049, %v1050, %v1048
    %v1052 = vclz %v1051
    %v1053 = vsub.s32 %v1052, 2
    %vm1054 = vcmp.gt.s32.totalorder 0, %v1053
    %v1055 = vsel %vm1054, 0, %v1053
    %v1056 = vsub.s32 32, %v1055
    %v1057 = vshll.u32 %v1048, %v1055
    %v1058 = vshrl.u32 %v1040, %v1056
    %v1059 = vor.u32 %v1057, %v1058
    %v1060 = vsub.s32 4294967266, %v1055
    %v1061 = vadd.s32 %v1060, 127
    %v1062 = vshll.u32 %v1061, 23
    %v1063 = vor.u32 4788187, %v1062
    %v1064 = vand.u32 2147483647, %v1063
    %v1066 = vcvt.s32.f32 %v1059
    %v1067 = vmul.f32 %v1066, %v1064
    %v1068 = vxor.u32 %v1067, 2147483648
    %v1069 = vsel %vm986, %v1068, %v1067
    %v1070 = vsub.s32 4, %v1046
    %v1071 = vsel %vm986, %v1070, %v1046
    %v1072 = vsel %vm985, %v983, %v1069
    %v1073 = vsel %vm985, 0, %v1071
    %v1074 = vcosq.f32.pop %v1072
    %v1075 = vsinq.f32.pop %v1072
    %vm1076 = vweird.f32 %v983
    %v1077 = vand.u32 %v1073, 3
    %vm1078 = vcmp.lt.s32.totalorder %v1077, 2
    %vm1079 = vcmp.eq.s32.totalorder %v1077, 0
    %v1080 = vxor.u32 %v1075, 2147483648
    %v1081 = vsel %vm1079, %v1074, %v1080
    %vm1082 = vcmp.eq.s32.totalorder %v1077, 2
    %v1083 = vxor.u32 %v1074, 2147483648
    %v1084 = vsel %vm1082, %v1083, %v1075
    %v1085 = vsel %vm1078, %v1081, %v1084
    %v1086 = vsel %vm1076, nan, %v1085
    %v1087 = vand.u32 2147483647, %v983
    %vm1088 = vcmp.le.f32.partialorder %v1087, 0.7853982
    %vm1089 = vcmp.lt.s32.totalorder %v983, 0
    %v1090 = vand.u32 %v983, 2139095040
    %v1091 = vshrl.u32 %v1090, 23
    %v1092 = vsub.s32 %v1091, 127
    %v1093 = vand.u32 2147483647, %v983
    %v1094 = vand.u32 %v1093, 8388607
    %v1095 = vor.u32 %v1094, 8388608
    %v1096 = vsub.s32 0, %v1095
    %v1097 = vadd.s32 %v1092, 1
    %vm1098 = vcmp.gt.s32.totalorder %v1097, 0
    %v1099 = vsel %vm1098, %v1097, 0
    %v1100 = vshrl.u32 %v1099, 5
    %v1101 = vand.u32 %v1099, 31
    %v1102 = vsub.s32 32, %v1101
    %v1103 = vshrl.u32 683565275, %v1102
    %v1104 = vshll.u32 683565275, %v1101
    %v1105 = vshrl.u32 2475754826, %v1102
    %v1106 = vor.u32 %v1104, %v1105
    %v1107 = vshll.u32 2475754826, %v1101
    %v1108 = vshrl.u32 2131351028, %v1102
    %v1109 = vor.u32 %v1107, %v1108
    %v1110 = vshll.u32 2131351028, %v1101
    %v1111 = vshrl.u32 2102212464, %v1102
    %v1112 = vor.u32 %v1110, %v1111
    %v1113 = vshll.u32 2102212464, %v1101
    %v1114 = vshrl.u32 920167782, %v1102
    %v1115 = vor.u32 %v1113, %v1114
    %v1116 = vshll.u32 920167782, %v1101
    %v1117 = vshrl.u32 1326507024, %v1102
    %v1118 = vor.u32 %v1116, %v1117
    %vm1119 = vcmp.lt.s32.totalorder %v1100, 1
    %vm1120 = vcmp.lt.s32.totalorder %v1100, 2
    %vm1121 = vcmp.lt.s32.totalorder %v1100, 3
    %vm1122 = vcmp.lt.s32.totalorder %v1100, 4
    %v1123 = vsel %vm1119, %v1103, %v1106
    %v1124 = vsel %vm1122, %v1112, 2102212464
    %v1125 = vsel %vm1121, %v1109, %v1124
    %v1126 = vsel %vm1120, %v1123, %v1125
    %v1127 = vsel %vm1119, %v1106, %v1109
    %v1128 = vsel %vm1122, %v1115, 920167782
    %v1129 = vsel %vm1121, %v1112, %v1128
    %v1130 = vsel %vm1120, %v1127, %v1129
    %v1131 = vsel %vm1119, %v1109, %v1112
    %v1132 = vsel %vm1122, %v1118, 1326507024
    %v1133 = vsel %vm1121, %v1115, %v1132
    %v1134 = vsel %vm1120, %v1131, %v1133
    %v1135 = vshll.u32 %v1095, 8
    %v1136 = vmul.u32.u64.compose %v1135, %v1134
    %v1137 = vextract.low.u32 %v1136
    %v1138 = vextract.high.u32 %v1136
    %v1139 = vmul.u32.u64.compose %v1135, %v1130
    %v1140 = vextract.low.u32 %v1139
    %v1141 = vextract.high.u32 %v1139
    %v1142 = vmul.u32 %v1135, %v1126
    %v1143 = vadd.s32 %v1138, %v1140
    %vm1144 = vc.u32 %v1138, %v1140
    %v1145 = vadd.s32 %v1141, 1
    %v1146 = vsel %vm1144, %v1145, %v1141
    %v1147 = vadd.s32 %v1142, %v1146
    %v1148 = vadd.s32 %v1147, 536870912
    %v1149 = vshrl.u32 %v1148, 30
    %v1150 = vshll.u32 %v1149, 30
    %v1151 = vsub.s32 %v1147, %v1150
    %vm1152 = vcmp.lt.s32.totalorder %v1151, 0
    %v1153 = vsub.s32 0, %v1151
    %v1154 = vsel %vm1152, %v1153, %v1151
    %v1155 = vclz %v1154
    %v1156 = vsub.s32 %v1155, 2
    %vm1157 = vcmp.gt.s32.totalorder 0, %v1156
    %v1158 = vsel %vm1157, 0, %v1156
    %v1159 = vsub.s32 32, %v1158
    %v1160 = vshll.u32 %v1151, %v1158
    %v1161 = vshrl.u32 %v1143, %v1159
    %v1162 = vor.u32 %v1160, %v1161
    %v1163 = vsub.s32 4294967266, %v1158
    %v1164 = vadd.s32 %v1163, 127
    %v1165 = vshll.u32 %v1164, 23
    %v1166 = vor.u32 4788187, %v1165
    %v1167 = vand.u32 2147483647, %v1166
    %v1169 = vcvt.s32.f32 %v1162
    %v1170 = vmul.f32 %v1169, %v1167
    %v1171 = vxor.u32 %v1170, 2147483648
    %v1172 = vsel %vm1089, %v1171, %v1170
    %v1173 = vsub.s32 4, %v1149
    %v1174 = vsel %vm1089, %v1173, %v1149
    %v1175 = vsel %vm1088, %v983, %v1172
    %v1176 = vsel %vm1088, 0, %v1174
    %v1177 = vcosq.f32.pop %v1175
    %v1178 = vsinq.f32.pop %v1175
    %vm1179 = vweird.f32 %v983
    %v1180 = vadd.s32 %v1176, 3
    %v1181 = vand.u32 %v1180, 3
    %vm1182 = vcmp.lt.s32.totalorder %v1181, 2
    %vm1183 = vcmp.eq.s32.totalorder %v1181, 0
    %v1184 = vxor.u32 %v1178, 2147483648
    %v1185 = vsel %vm1183, %v1177, %v1184
    %vm1186 = vcmp.eq.s32.totalorder %v1181, 2
    %v1187 = vxor.u32 %v1177, 2147483648
    %v1188 = vsel %vm1186, %v1187, %v1178
    %v1189 = vsel %vm1182, %v1185, %v1188
    %v1190 = vsel %vm1179, nan, %v1189
    %vm1191 = vcmp.eq.s32.totalorder %v39, 5
    %v1192 = vsel %vm1191, %v1086, 0.0
    %v1193 = vmul.f32 %v1190, %v971
    %v1194 = vsub.f32 %v1192, %v1193
    %1195 = vst [vmem:[#allocation5 + $0x5] sm:$0x1] %v1194
    %v1196 = vmul.f32 %v1086, %v971
    %v1197 = vsel %vm1191, %v1190, 0.0
    %v1198 = vadd.f32 %v1196, %v1197
    %s1199 = sld [smem:[#allocation2 + $0x5]]
    %v1200 = vstv %s1199
    %v1201 = vsel %vm24, %v1200, 0.0
    %s1202 = sld [smem:[#allocation2 + $0x85]]
    %v1203 = vstv %s1202
    %v1204 = vsel %vm27, %v1203, %v1201
    %s1205 = sld [smem:[#allocation2 + $0x105]]
    %v1206 = vstv %s1205
    %v1207 = vsel %vm30, %v1206, %v1204
    %s1208 = sld [smem:[#allocation2 + $0x185]]
    %v1209 = vstv %s1208
    %v1210 = vsel %vm33, %v1209, %v1207
    %v1211 = vand.u32 2147483647, %v1210
    %vm1212 = vcmp.le.f32.partialorder %v1211, 0.7853982
    %vm1213 = vcmp.lt.s32.totalorder %v1210, 0
    %v1214 = vand.u32 %v1210, 2139095040
    %v1215 = vshrl.u32 %v1214, 23
    %v1216 = vsub.s32 %v1215, 127
    %v1217 = vand.u32 2147483647, %v1210
    %v1218 = vand.u32 %v1217, 8388607
    %v1219 = vor.u32 %v1218, 8388608
    %v1220 = vsub.s32 0, %v1219
    %v1221 = vadd.s32 %v1216, 1
    %vm1222 = vcmp.gt.s32.totalorder %v1221, 0
    %v1223 = vsel %vm1222, %v1221, 0
    %v1224 = vshrl.u32 %v1223, 5
    %v1225 = vand.u32 %v1223, 31
    %v1226 = vsub.s32 32, %v1225
    %v1227 = vshrl.u32 683565275, %v1226
    %v1228 = vshll.u32 683565275, %v1225
    %v1229 = vshrl.u32 2475754826, %v1226
    %v1230 = vor.u32 %v1228, %v1229
    %v1231 = vshll.u32 2475754826, %v1225
    %v1232 = vshrl.u32 2131351028, %v1226
    %v1233 = vor.u32 %v1231, %v1232
    %v1234 = vshll.u32 2131351028, %v1225
    %v1235 = vshrl.u32 2102212464, %v1226
    %v1236 = vor.u32 %v1234, %v1235
    %v1237 = vshll.u32 2102212464, %v1225
    %v1238 = vshrl.u32 920167782, %v1226
    %v1239 = vor.u32 %v1237, %v1238
    %v1240 = vshll.u32 920167782, %v1225
    %v1241 = vshrl.u32 1326507024, %v1226
    %v1242 = vor.u32 %v1240, %v1241
    %vm1243 = vcmp.lt.s32.totalorder %v1224, 1
    %vm1244 = vcmp.lt.s32.totalorder %v1224, 2
    %vm1245 = vcmp.lt.s32.totalorder %v1224, 3
    %vm1246 = vcmp.lt.s32.totalorder %v1224, 4
    %v1247 = vsel %vm1243, %v1227, %v1230
    %v1248 = vsel %vm1246, %v1236, 2102212464
    %v1249 = vsel %vm1245, %v1233, %v1248
    %v1250 = vsel %vm1244, %v1247, %v1249
    %v1251 = vsel %vm1243, %v1230, %v1233
    %v1252 = vsel %vm1246, %v1239, 920167782
    %v1253 = vsel %vm1245, %v1236, %v1252
    %v1254 = vsel %vm1244, %v1251, %v1253
    %v1255 = vsel %vm1243, %v1233, %v1236
    %v1256 = vsel %vm1246, %v1242, 1326507024
    %v1257 = vsel %vm1245, %v1239, %v1256
    %v1258 = vsel %vm1244, %v1255, %v1257
    %v1259 = vshll.u32 %v1219, 8
    %v1260 = vmul.u32.u64.compose %v1259, %v1258
    %v1261 = vextract.low.u32 %v1260
    %v1262 = vextract.high.u32 %v1260
    %v1263 = vmul.u32.u64.compose %v1259, %v1254
    %v1264 = vextract.low.u32 %v1263
    %v1265 = vextract.high.u32 %v1263
    %v1266 = vmul.u32 %v1259, %v1250
    %v1267 = vadd.s32 %v1262, %v1264
    %vm1268 = vc.u32 %v1262, %v1264
    %v1269 = vadd.s32 %v1265, 1
    %v1270 = vsel %vm1268, %v1269, %v1265
    %v1271 = vadd.s32 %v1266, %v1270
    %v1272 = vadd.s32 %v1271, 536870912
    %v1273 = vshrl.u32 %v1272, 30
    %v1274 = vshll.u32 %v1273, 30
    %v1275 = vsub.s32 %v1271, %v1274
    %vm1276 = vcmp.lt.s32.totalorder %v1275, 0
    %v1277 = vsub.s32 0, %v1275
    %v1278 = vsel %vm1276, %v1277, %v1275
    %v1279 = vclz %v1278
    %v1280 = vsub.s32 %v1279, 2
    %vm1281 = vcmp.gt.s32.totalorder 0, %v1280
    %v1282 = vsel %vm1281, 0, %v1280
    %v1283 = vsub.s32 32, %v1282
    %v1284 = vshll.u32 %v1275, %v1282
    %v1285 = vshrl.u32 %v1267, %v1283
    %v1286 = vor.u32 %v1284, %v1285
    %v1287 = vsub.s32 4294967266, %v1282
    %v1288 = vadd.s32 %v1287, 127
    %v1289 = vshll.u32 %v1288, 23
    %v1290 = vor.u32 4788187, %v1289
    %v1291 = vand.u32 2147483647, %v1290
    %v1293 = vcvt.s32.f32 %v1286
    %v1294 = vmul.f32 %v1293, %v1291
    %v1295 = vxor.u32 %v1294, 2147483648
    %v1296 = vsel %vm1213, %v1295, %v1294
    %v1297 = vsub.s32 4, %v1273
    %v1298 = vsel %vm1213, %v1297, %v1273
    %v1299 = vsel %vm1212, %v1210, %v1296
    %v1300 = vsel %vm1212, 0, %v1298
    %v1301 = vcosq.f32.pop %v1299
    %v1302 = vsinq.f32.pop %v1299
    %vm1303 = vweird.f32 %v1210
    %v1304 = vand.u32 %v1300, 3
    %vm1305 = vcmp.lt.s32.totalorder %v1304, 2
    %vm1306 = vcmp.eq.s32.totalorder %v1304, 0
    %v1307 = vxor.u32 %v1302, 2147483648
    %v1308 = vsel %vm1306, %v1301, %v1307
    %vm1309 = vcmp.eq.s32.totalorder %v1304, 2
    %v1310 = vxor.u32 %v1301, 2147483648
    %v1311 = vsel %vm1309, %v1310, %v1302
    %v1312 = vsel %vm1305, %v1308, %v1311
    %v1313 = vsel %vm1303, nan, %v1312
    %v1314 = vand.u32 2147483647, %v1210
    %vm1315 = vcmp.le.f32.partialorder %v1314, 0.7853982
    %vm1316 = vcmp.lt.s32.totalorder %v1210, 0
    %v1317 = vand.u32 %v1210, 2139095040
    %v1318 = vshrl.u32 %v1317, 23
    %v1319 = vsub.s32 %v1318, 127
    %v1320 = vand.u32 2147483647, %v1210
    %v1321 = vand.u32 %v1320, 8388607
    %v1322 = vor.u32 %v1321, 8388608
    %v1323 = vsub.s32 0, %v1322
    %v1324 = vadd.s32 %v1319, 1
    %vm1325 = vcmp.gt.s32.totalorder %v1324, 0
    %v1326 = vsel %vm1325, %v1324, 0
    %v1327 = vshrl.u32 %v1326, 5
    %v1328 = vand.u32 %v1326, 31
    %v1329 = vsub.s32 32, %v1328
    %v1330 = vshrl.u32 683565275, %v1329
    %v1331 = vshll.u32 683565275, %v1328
    %v1332 = vshrl.u32 2475754826, %v1329
    %v1333 = vor.u32 %v1331, %v1332
    %v1334 = vshll.u32 2475754826, %v1328
    %v1335 = vshrl.u32 2131351028, %v1329
    %v1336 = vor.u32 %v1334, %v1335
    %v1337 = vshll.u32 2131351028, %v1328
    %v1338 = vshrl.u32 2102212464, %v1329
    %v1339 = vor.u32 %v1337, %v1338
    %v1340 = vshll.u32 2102212464, %v1328
    %v1341 = vshrl.u32 920167782, %v1329
    %v1342 = vor.u32 %v1340, %v1341
    %v1343 = vshll.u32 920167782, %v1328
    %v1344 = vshrl.u32 1326507024, %v1329
    %v1345 = vor.u32 %v1343, %v1344
    %vm1346 = vcmp.lt.s32.totalorder %v1327, 1
    %vm1347 = vcmp.lt.s32.totalorder %v1327, 2
    %vm1348 = vcmp.lt.s32.totalorder %v1327, 3
    %vm1349 = vcmp.lt.s32.totalorder %v1327, 4
    %v1350 = vsel %vm1346, %v1330, %v1333
    %v1351 = vsel %vm1349, %v1339, 2102212464
    %v1352 = vsel %vm1348, %v1336, %v1351
    %v1353 = vsel %vm1347, %v1350, %v1352
    %v1354 = vsel %vm1346, %v1333, %v1336
    %v1355 = vsel %vm1349, %v1342, 920167782
    %v1356 = vsel %vm1348, %v1339, %v1355
    %v1357 = vsel %vm1347, %v1354, %v1356
    %v1358 = vsel %vm1346, %v1336, %v1339
    %v1359 = vsel %vm1349, %v1345, 1326507024
    %v1360 = vsel %vm1348, %v1342, %v1359
    %v1361 = vsel %vm1347, %v1358, %v1360
    %v1362 = vshll.u32 %v1322, 8
    %v1363 = vmul.u32.u64.compose %v1362, %v1361
    %v1364 = vextract.low.u32 %v1363
    %v1365 = vextract.high.u32 %v1363
    %v1366 = vmul.u32.u64.compose %v1362, %v1357
    %v1367 = vextract.low.u32 %v1366
    %v1368 = vextract.high.u32 %v1366
    %v1369 = vmul.u32 %v1362, %v1353
    %v1370 = vadd.s32 %v1365, %v1367
    %vm1371 = vc.u32 %v1365, %v1367
    %v1372 = vadd.s32 %v1368, 1
    %v1373 = vsel %vm1371, %v1372, %v1368
    %v1374 = vadd.s32 %v1369, %v1373
    %v1375 = vadd.s32 %v1374, 536870912
    %v1376 = vshrl.u32 %v1375, 30
    %v1377 = vshll.u32 %v1376, 30
    %v1378 = vsub.s32 %v1374, %v1377
    %vm1379 = vcmp.lt.s32.totalorder %v1378, 0
    %v1380 = vsub.s32 0, %v1378
    %v1381 = vsel %vm1379, %v1380, %v1378
    %v1382 = vclz %v1381
    %v1383 = vsub.s32 %v1382, 2
    %vm1384 = vcmp.gt.s32.totalorder 0, %v1383
    %v1385 = vsel %vm1384, 0, %v1383
    %v1386 = vsub.s32 32, %v1385
    %v1387 = vshll.u32 %v1378, %v1385
    %v1388 = vshrl.u32 %v1370, %v1386
    %v1389 = vor.u32 %v1387, %v1388
    %v1390 = vsub.s32 4294967266, %v1385
    %v1391 = vadd.s32 %v1390, 127
    %v1392 = vshll.u32 %v1391, 23
    %v1393 = vor.u32 4788187, %v1392
    %v1394 = vand.u32 2147483647, %v1393
    %v1396 = vcvt.s32.f32 %v1389
    %v1397 = vmul.f32 %v1396, %v1394
    %v1398 = vxor.u32 %v1397, 2147483648
    %v1399 = vsel %vm1316, %v1398, %v1397
    %v1400 = vsub.s32 4, %v1376
    %v1401 = vsel %vm1316, %v1400, %v1376
    %v1402 = vsel %vm1315, %v1210, %v1399
    %v1403 = vsel %vm1315, 0, %v1401
    %v1404 = vcosq.f32.pop %v1402
    %v1405 = vsinq.f32.pop %v1402
    %vm1406 = vweird.f32 %v1210
    %v1407 = vadd.s32 %v1403, 3
    %v1408 = vand.u32 %v1407, 3
    %vm1409 = vcmp.lt.s32.totalorder %v1408, 2
    %vm1410 = vcmp.eq.s32.totalorder %v1408, 0
    %v1411 = vxor.u32 %v1405, 2147483648
    %v1412 = vsel %vm1410, %v1404, %v1411
    %vm1413 = vcmp.eq.s32.totalorder %v1408, 2
    %v1414 = vxor.u32 %v1404, 2147483648
    %v1415 = vsel %vm1413, %v1414, %v1405
    %v1416 = vsel %vm1409, %v1412, %v1415
    %v1417 = vsel %vm1406, nan, %v1416
    %vm1418 = vcmp.eq.s32.totalorder %v39, 6
    %v1419 = vsel %vm1418, %v1313, 0.0
    %v1420 = vmul.f32 %v1417, %v1198
    %v1421 = vsub.f32 %v1419, %v1420
    %1422 = vst [vmem:[#allocation5 + $0x6] sm:$0x1] %v1421
    %v1423 = vmul.f32 %v1313, %v1198
    %v1424 = vsel %vm1418, %v1417, 0.0
    %v1425 = vadd.f32 %v1423, %v1424
    %s1426 = sld [smem:[#allocation2 + $0x6]]
    %v1427 = vstv %s1426
    %v1428 = vsel %vm24, %v1427, 0.0
    %s1429 = sld [smem:[#allocation2 + $0x86]]
    %v1430 = vstv %s1429
    %v1431 = vsel %vm27, %v1430, %v1428
    %s1432 = sld [smem:[#allocation2 + $0x106]]
    %v1433 = vstv %s1432
    %v1434 = vsel %vm30, %v1433, %v1431
    %s1435 = sld [smem:[#allocation2 + $0x186]]
    %v1436 = vstv %s1435
    %v1437 = vsel %vm33, %v1436, %v1434
    %v1438 = vand.u32 2147483647, %v1437
    %vm1439 = vcmp.le.f32.partialorder %v1438, 0.7853982
    %vm1440 = vcmp.lt.s32.totalorder %v1437, 0
    %v1441 = vand.u32 %v1437, 2139095040
    %v1442 = vshrl.u32 %v1441, 23
    %v1443 = vsub.s32 %v1442, 127
    %v1444 = vand.u32 2147483647, %v1437
    %v1445 = vand.u32 %v1444, 8388607
    %v1446 = vor.u32 %v1445, 8388608
    %v1447 = vsub.s32 0, %v1446
    %v1448 = vadd.s32 %v1443, 1
    %vm1449 = vcmp.gt.s32.totalorder %v1448, 0
    %v1450 = vsel %vm1449, %v1448, 0
    %v1451 = vshrl.u32 %v1450, 5
    %v1452 = vand.u32 %v1450, 31
    %v1453 = vsub.s32 32, %v1452
    %v1454 = vshrl.u32 683565275, %v1453
    %v1455 = vshll.u32 683565275, %v1452
    %v1456 = vshrl.u32 2475754826, %v1453
    %v1457 = vor.u32 %v1455, %v1456
    %v1458 = vshll.u32 2475754826, %v1452
    %v1459 = vshrl.u32 2131351028, %v1453
    %v1460 = vor.u32 %v1458, %v1459
    %v1461 = vshll.u32 2131351028, %v1452
    %v1462 = vshrl.u32 2102212464, %v1453
    %v1463 = vor.u32 %v1461, %v1462
    %v1464 = vshll.u32 2102212464, %v1452
    %v1465 = vshrl.u32 920167782, %v1453
    %v1466 = vor.u32 %v1464, %v1465
    %v1467 = vshll.u32 920167782, %v1452
    %v1468 = vshrl.u32 1326507024, %v1453
    %v1469 = vor.u32 %v1467, %v1468
    %vm1470 = vcmp.lt.s32.totalorder %v1451, 1
    %vm1471 = vcmp.lt.s32.totalorder %v1451, 2
    %vm1472 = vcmp.lt.s32.totalorder %v1451, 3
    %vm1473 = vcmp.lt.s32.totalorder %v1451, 4
    %v1474 = vsel %vm1470, %v1454, %v1457
    %v1475 = vsel %vm1473, %v1463, 2102212464
    %v1476 = vsel %vm1472, %v1460, %v1475
    %v1477 = vsel %vm1471, %v1474, %v1476
    %v1478 = vsel %vm1470, %v1457, %v1460
    %v1479 = vsel %vm1473, %v1466, 920167782
    %v1480 = vsel %vm1472, %v1463, %v1479
    %v1481 = vsel %vm1471, %v1478, %v1480
    %v1482 = vsel %vm1470, %v1460, %v1463
    %v1483 = vsel %vm1473, %v1469, 1326507024
    %v1484 = vsel %vm1472, %v1466, %v1483
    %v1485 = vsel %vm1471, %v1482, %v1484
    %v1486 = vshll.u32 %v1446, 8
    %v1487 = vmul.u32.u64.compose %v1486, %v1485
    %v1488 = vextract.low.u32 %v1487
    %v1489 = vextract.high.u32 %v1487
    %v1490 = vmul.u32.u64.compose %v1486, %v1481
    %v1491 = vextract.low.u32 %v1490
    %v1492 = vextract.high.u32 %v1490
    %v1493 = vmul.u32 %v1486, %v1477
    %v1494 = vadd.s32 %v1489, %v1491
    %vm1495 = vc.u32 %v1489, %v1491
    %v1496 = vadd.s32 %v1492, 1
    %v1497 = vsel %vm1495, %v1496, %v1492
    %v1498 = vadd.s32 %v1493, %v1497
    %v1499 = vadd.s32 %v1498, 536870912
    %v1500 = vshrl.u32 %v1499, 30
    %v1501 = vshll.u32 %v1500, 30
    %v1502 = vsub.s32 %v1498, %v1501
    %vm1503 = vcmp.lt.s32.totalorder %v1502, 0
    %v1504 = vsub.s32 0, %v1502
    %v1505 = vsel %vm1503, %v1504, %v1502
    %v1506 = vclz %v1505
    %v1507 = vsub.s32 %v1506, 2
    %vm1508 = vcmp.gt.s32.totalorder 0, %v1507
    %v1509 = vsel %vm1508, 0, %v1507
    %v1510 = vsub.s32 32, %v1509
    %v1511 = vshll.u32 %v1502, %v1509
    %v1512 = vshrl.u32 %v1494, %v1510
    %v1513 = vor.u32 %v1511, %v1512
    %v1514 = vsub.s32 4294967266, %v1509
    %v1515 = vadd.s32 %v1514, 127
    %v1516 = vshll.u32 %v1515, 23
    %v1517 = vor.u32 4788187, %v1516
    %v1518 = vand.u32 2147483647, %v1517
    %v1520 = vcvt.s32.f32 %v1513
    %v1521 = vmul.f32 %v1520, %v1518
    %v1522 = vxor.u32 %v1521, 2147483648
    %v1523 = vsel %vm1440, %v1522, %v1521
    %v1524 = vsub.s32 4, %v1500
    %v1525 = vsel %vm1440, %v1524, %v1500
    %v1526 = vsel %vm1439, %v1437, %v1523
    %v1527 = vsel %vm1439, 0, %v1525
    %v1528 = vcosq.f32.pop %v1526
    %v1529 = vsinq.f32.pop %v1526
    %vm1530 = vweird.f32 %v1437
    %v1531 = vand.u32 %v1527, 3
    %vm1532 = vcmp.lt.s32.totalorder %v1531, 2
    %vm1533 = vcmp.eq.s32.totalorder %v1531, 0
    %v1534 = vxor.u32 %v1529, 2147483648
    %v1535 = vsel %vm1533, %v1528, %v1534
    %vm1536 = vcmp.eq.s32.totalorder %v1531, 2
    %v1537 = vxor.u32 %v1528, 2147483648
    %v1538 = vsel %vm1536, %v1537, %v1529
    %v1539 = vsel %vm1532, %v1535, %v1538
    %v1540 = vsel %vm1530, nan, %v1539
    %v1541 = vand.u32 2147483647, %v1437
    %vm1542 = vcmp.le.f32.partialorder %v1541, 0.7853982
    %vm1543 = vcmp.lt.s32.totalorder %v1437, 0
    %v1544 = vand.u32 %v1437, 2139095040
    %v1545 = vshrl.u32 %v1544, 23
    %v1546 = vsub.s32 %v1545, 127
    %v1547 = vand.u32 2147483647, %v1437
    %v1548 = vand.u32 %v1547, 8388607
    %v1549 = vor.u32 %v1548, 8388608
    %v1550 = vsub.s32 0, %v1549
    %v1551 = vadd.s32 %v1546, 1
    %vm1552 = vcmp.gt.s32.totalorder %v1551, 0
    %v1553 = vsel %vm1552, %v1551, 0
    %v1554 = vshrl.u32 %v1553, 5
    %v1555 = vand.u32 %v1553, 31
    %v1556 = vsub.s32 32, %v1555
    %v1557 = vshrl.u32 683565275, %v1556
    %v1558 = vshll.u32 683565275, %v1555
    %v1559 = vshrl.u32 2475754826, %v1556
    %v1560 = vor.u32 %v1558, %v1559
    %v1561 = vshll.u32 2475754826, %v1555
    %v1562 = vshrl.u32 2131351028, %v1556
    %v1563 = vor.u32 %v1561, %v1562
    %v1564 = vshll.u32 2131351028, %v1555
    %v1565 = vshrl.u32 2102212464, %v1556
    %v1566 = vor.u32 %v1564, %v1565
    %v1567 = vshll.u32 2102212464, %v1555
    %v1568 = vshrl.u32 920167782, %v1556
    %v1569 = vor.u32 %v1567, %v1568
    %v1570 = vshll.u32 920167782, %v1555
    %v1571 = vshrl.u32 1326507024, %v1556
    %v1572 = vor.u32 %v1570, %v1571
    %vm1573 = vcmp.lt.s32.totalorder %v1554, 1
    %vm1574 = vcmp.lt.s32.totalorder %v1554, 2
    %vm1575 = vcmp.lt.s32.totalorder %v1554, 3
    %vm1576 = vcmp.lt.s32.totalorder %v1554, 4
    %v1577 = vsel %vm1573, %v1557, %v1560
    %v1578 = vsel %vm1576, %v1566, 2102212464
    %v1579 = vsel %vm1575, %v1563, %v1578
    %v1580 = vsel %vm1574, %v1577, %v1579
    %v1581 = vsel %vm1573, %v1560, %v1563
    %v1582 = vsel %vm1576, %v1569, 920167782
    %v1583 = vsel %vm1575, %v1566, %v1582
    %v1584 = vsel %vm1574, %v1581, %v1583
    %v1585 = vsel %vm1573, %v1563, %v1566
    %v1586 = vsel %vm1576, %v1572, 1326507024
    %v1587 = vsel %vm1575, %v1569, %v1586
    %v1588 = vsel %vm1574, %v1585, %v1587
    %v1589 = vshll.u32 %v1549, 8
    %v1590 = vmul.u32.u64.compose %v1589, %v1588
    %v1591 = vextract.low.u32 %v1590
    %v1592 = vextract.high.u32 %v1590
    %v1593 = vmul.u32.u64.compose %v1589, %v1584
    %v1594 = vextract.low.u32 %v1593
    %v1595 = vextract.high.u32 %v1593
    %v1596 = vmul.u32 %v1589, %v1580
    %v1597 = vadd.s32 %v1592, %v1594
    %vm1598 = vc.u32 %v1592, %v1594
    %v1599 = vadd.s32 %v1595, 1
    %v1600 = vsel %vm1598, %v1599, %v1595
    %v1601 = vadd.s32 %v1596, %v1600
    %v1602 = vadd.s32 %v1601, 536870912
    %v1603 = vshrl.u32 %v1602, 30
    %v1604 = vshll.u32 %v1603, 30
    %v1605 = vsub.s32 %v1601, %v1604
    %vm1606 = vcmp.lt.s32.totalorder %v1605, 0
    %v1607 = vsub.s32 0, %v1605
    %v1608 = vsel %vm1606, %v1607, %v1605
    %v1609 = vclz %v1608
    %v1610 = vsub.s32 %v1609, 2
    %vm1611 = vcmp.gt.s32.totalorder 0, %v1610
    %v1612 = vsel %vm1611, 0, %v1610
    %v1613 = vsub.s32 32, %v1612
    %v1614 = vshll.u32 %v1605, %v1612
    %v1615 = vshrl.u32 %v1597, %v1613
    %v1616 = vor.u32 %v1614, %v1615
    %v1617 = vsub.s32 4294967266, %v1612
    %v1618 = vadd.s32 %v1617, 127
    %v1619 = vshll.u32 %v1618, 23
    %v1620 = vor.u32 4788187, %v1619
    %v1621 = vand.u32 2147483647, %v1620
    %v1623 = vcvt.s32.f32 %v1616
    %v1624 = vmul.f32 %v1623, %v1621
    %v1625 = vxor.u32 %v1624, 2147483648
    %v1626 = vsel %vm1543, %v1625, %v1624
    %v1627 = vsub.s32 4, %v1603
    %v1628 = vsel %vm1543, %v1627, %v1603
    %v1629 = vsel %vm1542, %v1437, %v1626
    %v1630 = vsel %vm1542, 0, %v1628
    %v1631 = vcosq.f32.pop %v1629
    %v1632 = vsinq.f32.pop %v1629
    %vm1633 = vweird.f32 %v1437
    %v1634 = vadd.s32 %v1630, 3
    %v1635 = vand.u32 %v1634, 3
    %vm1636 = vcmp.lt.s32.totalorder %v1635, 2
    %vm1637 = vcmp.eq.s32.totalorder %v1635, 0
    %v1638 = vxor.u32 %v1632, 2147483648
    %v1639 = vsel %vm1637, %v1631, %v1638
    %vm1640 = vcmp.eq.s32.totalorder %v1635, 2
    %v1641 = vxor.u32 %v1631, 2147483648
    %v1642 = vsel %vm1640, %v1641, %v1632
    %v1643 = vsel %vm1636, %v1639, %v1642
    %v1644 = vsel %vm1633, nan, %v1643
    %vm1645 = vcmp.eq.s32.totalorder %v39, 7
    %v1646 = vsel %vm1645, %v1540, 0.0
    %v1647 = vmul.f32 %v1644, %v1425
    %v1648 = vsub.f32 %v1646, %v1647
    %1649 = vst [vmem:[#allocation5 + $0x7] sm:$0x1] %v1648
    %v1650 = vmul.f32 %v1540, %v1425
    %v1651 = vsel %vm1645, %v1644, 0.0
    %v1652 = vadd.f32 %v1650, %v1651
    %s1653 = sld [smem:[#allocation2 + $0x7]]
    %v1654 = vstv %s1653
    %v1655 = vsel %vm24, %v1654, 0.0
    %s1656 = sld [smem:[#allocation2 + $0x87]]
    %v1657 = vstv %s1656
    %v1658 = vsel %vm27, %v1657, %v1655
    %s1659 = sld [smem:[#allocation2 + $0x107]]
    %v1660 = vstv %s1659
    %v1661 = vsel %vm30, %v1660, %v1658
    %s1662 = sld [smem:[#allocation2 + $0x187]]
    %v1663 = vstv %s1662
    %v1664 = vsel %vm33, %v1663, %v1661
    %v1665 = vand.u32 2147483647, %v1664
    %vm1666 = vcmp.le.f32.partialorder %v1665, 0.7853982
    %vm1667 = vcmp.lt.s32.totalorder %v1664, 0
    %v1668 = vand.u32 %v1664, 2139095040
    %v1669 = vshrl.u32 %v1668, 23
    %v1670 = vsub.s32 %v1669, 127
    %v1671 = vand.u32 2147483647, %v1664
    %v1672 = vand.u32 %v1671, 8388607
    %v1673 = vor.u32 %v1672, 8388608
    %v1674 = vsub.s32 0, %v1673
    %v1675 = vadd.s32 %v1670, 1
    %vm1676 = vcmp.gt.s32.totalorder %v1675, 0
    %v1677 = vsel %vm1676, %v1675, 0
    %v1678 = vshrl.u32 %v1677, 5
    %v1679 = vand.u32 %v1677, 31
    %v1680 = vsub.s32 32, %v1679
    %v1681 = vshrl.u32 683565275, %v1680
    %v1682 = vshll.u32 683565275, %v1679
    %v1683 = vshrl.u32 2475754826, %v1680
    %v1684 = vor.u32 %v1682, %v1683
    %v1685 = vshll.u32 2475754826, %v1679
    %v1686 = vshrl.u32 2131351028, %v1680
    %v1687 = vor.u32 %v1685, %v1686
    %v1688 = vshll.u32 2131351028, %v1679
    %v1689 = vshrl.u32 2102212464, %v1680
    %v1690 = vor.u32 %v1688, %v1689
    %v1691 = vshll.u32 2102212464, %v1679
    %v1692 = vshrl.u32 920167782, %v1680
    %v1693 = vor.u32 %v1691, %v1692
    %v1694 = vshll.u32 920167782, %v1679
    %v1695 = vshrl.u32 1326507024, %v1680
    %v1696 = vor.u32 %v1694, %v1695
    %vm1697 = vcmp.lt.s32.totalorder %v1678, 1
    %vm1698 = vcmp.lt.s32.totalorder %v1678, 2
    %vm1699 = vcmp.lt.s32.totalorder %v1678, 3
    %vm1700 = vcmp.lt.s32.totalorder %v1678, 4
    %v1701 = vsel %vm1697, %v1681, %v1684
    %v1702 = vsel %vm1700, %v1690, 2102212464
    %v1703 = vsel %vm1699, %v1687, %v1702
    %v1704 = vsel %vm1698, %v1701, %v1703
    %v1705 = vsel %vm1697, %v1684, %v1687
    %v1706 = vsel %vm1700, %v1693, 920167782
    %v1707 = vsel %vm1699, %v1690, %v1706
    %v1708 = vsel %vm1698, %v1705, %v1707
    %v1709 = vsel %vm1697, %v1687, %v1690
    %v1710 = vsel %vm1700, %v1696, 1326507024
    %v1711 = vsel %vm1699, %v1693, %v1710
    %v1712 = vsel %vm1698, %v1709, %v1711
    %v1713 = vshll.u32 %v1673, 8
    %v1714 = vmul.u32.u64.compose %v1713, %v1712
    %v1715 = vextract.low.u32 %v1714
    %v1716 = vextract.high.u32 %v1714
    %v1717 = vmul.u32.u64.compose %v1713, %v1708
    %v1718 = vextract.low.u32 %v1717
    %v1719 = vextract.high.u32 %v1717
    %v1720 = vmul.u32 %v1713, %v1704
    %v1721 = vadd.s32 %v1716, %v1718
    %vm1722 = vc.u32 %v1716, %v1718
    %v1723 = vadd.s32 %v1719, 1
    %v1724 = vsel %vm1722, %v1723, %v1719
    %v1725 = vadd.s32 %v1720, %v1724
    %v1726 = vadd.s32 %v1725, 536870912
    %v1727 = vshrl.u32 %v1726, 30
    %v1728 = vshll.u32 %v1727, 30
    %v1729 = vsub.s32 %v1725, %v1728
    %vm1730 = vcmp.lt.s32.totalorder %v1729, 0
    %v1731 = vsub.s32 0, %v1729
    %v1732 = vsel %vm1730, %v1731, %v1729
    %v1733 = vclz %v1732
    %v1734 = vsub.s32 %v1733, 2
    %vm1735 = vcmp.gt.s32.totalorder 0, %v1734
    %v1736 = vsel %vm1735, 0, %v1734
    %v1737 = vsub.s32 32, %v1736
    %v1738 = vshll.u32 %v1729, %v1736
    %v1739 = vshrl.u32 %v1721, %v1737
    %v1740 = vor.u32 %v1738, %v1739
    %v1741 = vsub.s32 4294967266, %v1736
    %v1742 = vadd.s32 %v1741, 127
    %v1743 = vshll.u32 %v1742, 23
    %v1744 = vor.u32 4788187, %v1743
    %v1745 = vand.u32 2147483647, %v1744
    %v1747 = vcvt.s32.f32 %v1740
    %v1748 = vmul.f32 %v1747, %v1745
    %v1749 = vxor.u32 %v1748, 2147483648
    %v1750 = vsel %vm1667, %v1749, %v1748
    %v1751 = vsub.s32 4, %v1727
    %v1752 = vsel %vm1667, %v1751, %v1727
    %v1753 = vsel %vm1666, %v1664, %v1750
    %v1754 = vsel %vm1666, 0, %v1752
    %v1755 = vcosq.f32.pop %v1753
    %v1756 = vsinq.f32.pop %v1753
    %vm1757 = vweird.f32 %v1664
    %v1758 = vand.u32 %v1754, 3
    %vm1759 = vcmp.lt.s32.totalorder %v1758, 2
    %vm1760 = vcmp.eq.s32.totalorder %v1758, 0
    %v1761 = vxor.u32 %v1756, 2147483648
    %v1762 = vsel %vm1760, %v1755, %v1761
    %vm1763 = vcmp.eq.s32.totalorder %v1758, 2
    %v1764 = vxor.u32 %v1755, 2147483648
    %v1765 = vsel %vm1763, %v1764, %v1756
    %v1766 = vsel %vm1759, %v1762, %v1765
    %v1767 = vsel %vm1757, nan, %v1766
    %v1768 = vand.u32 2147483647, %v1664
    %vm1769 = vcmp.le.f32.partialorder %v1768, 0.7853982
    %vm1770 = vcmp.lt.s32.totalorder %v1664, 0
    %v1771 = vand.u32 %v1664, 2139095040
    %v1772 = vshrl.u32 %v1771, 23
    %v1773 = vsub.s32 %v1772, 127
    %v1774 = vand.u32 2147483647, %v1664
    %v1775 = vand.u32 %v1774, 8388607
    %v1776 = vor.u32 %v1775, 8388608
    %v1777 = vsub.s32 0, %v1776
    %v1778 = vadd.s32 %v1773, 1
    %vm1779 = vcmp.gt.s32.totalorder %v1778, 0
    %v1780 = vsel %vm1779, %v1778, 0
    %v1781 = vshrl.u32 %v1780, 5
    %v1782 = vand.u32 %v1780, 31
    %v1783 = vsub.s32 32, %v1782
    %v1784 = vshrl.u32 683565275, %v1783
    %v1785 = vshll.u32 683565275, %v1782
    %v1786 = vshrl.u32 2475754826, %v1783
    %v1787 = vor.u32 %v1785, %v1786
    %v1788 = vshll.u32 2475754826, %v1782
    %v1789 = vshrl.u32 2131351028, %v1783
    %v1790 = vor.u32 %v1788, %v1789
    %v1791 = vshll.u32 2131351028, %v1782
    %v1792 = vshrl.u32 2102212464, %v1783
    %v1793 = vor.u32 %v1791, %v1792
    %v1794 = vshll.u32 2102212464, %v1782
    %v1795 = vshrl.u32 920167782, %v1783
    %v1796 = vor.u32 %v1794, %v1795
    %v1797 = vshll.u32 920167782, %v1782
    %v1798 = vshrl.u32 1326507024, %v1783
    %v1799 = vor.u32 %v1797, %v1798
    %vm1800 = vcmp.lt.s32.totalorder %v1781, 1
    %vm1801 = vcmp.lt.s32.totalorder %v1781, 2
    %vm1802 = vcmp.lt.s32.totalorder %v1781, 3
    %vm1803 = vcmp.lt.s32.totalorder %v1781, 4
    %v1804 = vsel %vm1800, %v1784, %v1787
    %v1805 = vsel %vm1803, %v1793, 2102212464
    %v1806 = vsel %vm1802, %v1790, %v1805
    %v1807 = vsel %vm1801, %v1804, %v1806
    %v1808 = vsel %vm1800, %v1787, %v1790
    %v1809 = vsel %vm1803, %v1796, 920167782
    %v1810 = vsel %vm1802, %v1793, %v1809
    %v1811 = vsel %vm1801, %v1808, %v1810
    %v1812 = vsel %vm1800, %v1790, %v1793
    %v1813 = vsel %vm1803, %v1799, 1326507024
    %v1814 = vsel %vm1802, %v1796, %v1813
    %v1815 = vsel %vm1801, %v1812, %v1814
    %v1816 = vshll.u32 %v1776, 8
    %v1817 = vmul.u32.u64.compose %v1816, %v1815
    %v1818 = vextract.low.u32 %v1817
    %v1819 = vextract.high.u32 %v1817
    %v1820 = vmul.u32.u64.compose %v1816, %v1811
    %v1821 = vextract.low.u32 %v1820
    %v1822 = vextract.high.u32 %v1820
    %v1823 = vmul.u32 %v1816, %v1807
    %v1824 = vadd.s32 %v1819, %v1821
    %vm1825 = vc.u32 %v1819, %v1821
    %v1826 = vadd.s32 %v1822, 1
    %v1827 = vsel %vm1825, %v1826, %v1822
    %v1828 = vadd.s32 %v1823, %v1827
    %v1829 = vadd.s32 %v1828, 536870912
    %v1830 = vshrl.u32 %v1829, 30
    %v1831 = vshll.u32 %v1830, 30
    %v1832 = vsub.s32 %v1828, %v1831
    %vm1833 = vcmp.lt.s32.totalorder %v1832, 0
    %v1834 = vsub.s32 0, %v1832
    %v1835 = vsel %vm1833, %v1834, %v1832
    %v1836 = vclz %v1835
    %v1837 = vsub.s32 %v1836, 2
    %vm1838 = vcmp.gt.s32.totalorder 0, %v1837
    %v1839 = vsel %vm1838, 0, %v1837
    %v1840 = vsub.s32 32, %v1839
    %v1841 = vshll.u32 %v1832, %v1839
    %v1842 = vshrl.u32 %v1824, %v1840
    %v1843 = vor.u32 %v1841, %v1842
    %v1844 = vsub.s32 4294967266, %v1839
    %v1845 = vadd.s32 %v1844, 127
    %v1846 = vshll.u32 %v1845, 23
    %v1847 = vor.u32 4788187, %v1846
    %v1848 = vand.u32 2147483647, %v1847
    %v1850 = vcvt.s32.f32 %v1843
    %v1851 = vmul.f32 %v1850, %v1848
    %v1852 = vxor.u32 %v1851, 2147483648
    %v1853 = vsel %vm1770, %v1852, %v1851
    %v1854 = vsub.s32 4, %v1830
    %v1855 = vsel %vm1770, %v1854, %v1830
    %v1856 = vsel %vm1769, %v1664, %v1853
    %v1857 = vsel %vm1769, 0, %v1855
    %v1858 = vcosq.f32.pop %v1856
    %v1859 = vsinq.f32.pop %v1856
    %vm1860 = vweird.f32 %v1664
    %v1861 = vadd.s32 %v1857, 3
    %v1862 = vand.u32 %v1861, 3
    %vm1863 = vcmp.lt.s32.totalorder %v1862, 2
    %vm1864 = vcmp.eq.s32.totalorder %v1862, 0
    %v1865 = vxor.u32 %v1859, 2147483648
    %v1866 = vsel %vm1864, %v1858, %v1865
    %vm1867 = vcmp.eq.s32.totalorder %v1862, 2
    %v1868 = vxor.u32 %v1858, 2147483648
    %v1869 = vsel %vm1867, %v1868, %v1859
    %v1870 = vsel %vm1863, %v1866, %v1869
    %v1871 = vsel %vm1860, nan, %v1870
    %vm1872 = vcmp.eq.s32.totalorder %v39, 8
    %v1873 = vsel %vm1872, %v1767, 0.0
    %v1874 = vmul.f32 %v1871, %v1652
    %v1875 = vsub.f32 %v1873, %v1874
    %1876 = vst [vmem:[#allocation5 + $0x8] sm:$0x1] %v1875
    %v1877 = vmul.f32 %v1767, %v1652
    %v1878 = vsel %vm1872, %v1871, 0.0
    %v1879 = vadd.f32 %v1877, %v1878
    %s1880 = sld [smem:[#allocation2 + $0x8]]
    %v1881 = vstv %s1880
    %v1882 = vsel %vm24, %v1881, 0.0
    %s1883 = sld [smem:[#allocation2 + $0x88]]
    %v1884 = vstv %s1883
    %v1885 = vsel %vm27, %v1884, %v1882
    %s1886 = sld [smem:[#allocation2 + $0x108]]
    %v1887 = vstv %s1886
    %v1888 = vsel %vm30, %v1887, %v1885
    %s1889 = sld [smem:[#allocation2 + $0x188]]
    %v1890 = vstv %s1889
    %v1891 = vsel %vm33, %v1890, %v1888
    %v1892 = vand.u32 2147483647, %v1891
    %vm1893 = vcmp.le.f32.partialorder %v1892, 0.7853982
    %vm1894 = vcmp.lt.s32.totalorder %v1891, 0
    %v1895 = vand.u32 %v1891, 2139095040
    %v1896 = vshrl.u32 %v1895, 23
    %v1897 = vsub.s32 %v1896, 127
    %v1898 = vand.u32 2147483647, %v1891
    %v1899 = vand.u32 %v1898, 8388607
    %v1900 = vor.u32 %v1899, 8388608
    %v1901 = vsub.s32 0, %v1900
    %v1902 = vadd.s32 %v1897, 1
    %vm1903 = vcmp.gt.s32.totalorder %v1902, 0
    %v1904 = vsel %vm1903, %v1902, 0
    %v1905 = vshrl.u32 %v1904, 5
    %v1906 = vand.u32 %v1904, 31
    %v1907 = vsub.s32 32, %v1906
    %v1908 = vshrl.u32 683565275, %v1907
    %v1909 = vshll.u32 683565275, %v1906
    %v1910 = vshrl.u32 2475754826, %v1907
    %v1911 = vor.u32 %v1909, %v1910
    %v1912 = vshll.u32 2475754826, %v1906
    %v1913 = vshrl.u32 2131351028, %v1907
    %v1914 = vor.u32 %v1912, %v1913
    %v1915 = vshll.u32 2131351028, %v1906
    %v1916 = vshrl.u32 2102212464, %v1907
    %v1917 = vor.u32 %v1915, %v1916
    %v1918 = vshll.u32 2102212464, %v1906
    %v1919 = vshrl.u32 920167782, %v1907
    %v1920 = vor.u32 %v1918, %v1919
    %v1921 = vshll.u32 920167782, %v1906
    %v1922 = vshrl.u32 1326507024, %v1907
    %v1923 = vor.u32 %v1921, %v1922
    %vm1924 = vcmp.lt.s32.totalorder %v1905, 1
    %vm1925 = vcmp.lt.s32.totalorder %v1905, 2
    %vm1926 = vcmp.lt.s32.totalorder %v1905, 3
    %vm1927 = vcmp.lt.s32.totalorder %v1905, 4
    %v1928 = vsel %vm1924, %v1908, %v1911
    %v1929 = vsel %vm1927, %v1917, 2102212464
    %v1930 = vsel %vm1926, %v1914, %v1929
    %v1931 = vsel %vm1925, %v1928, %v1930
    %v1932 = vsel %vm1924, %v1911, %v1914
    %v1933 = vsel %vm1927, %v1920, 920167782
    %v1934 = vsel %vm1926, %v1917, %v1933
    %v1935 = vsel %vm1925, %v1932, %v1934
    %v1936 = vsel %vm1924, %v1914, %v1917
    %v1937 = vsel %vm1927, %v1923, 1326507024
    %v1938 = vsel %vm1926, %v1920, %v1937
    %v1939 = vsel %vm1925, %v1936, %v1938
    %v1940 = vshll.u32 %v1900, 8
    %v1941 = vmul.u32.u64.compose %v1940, %v1939
    %v1942 = vextract.low.u32 %v1941
    %v1943 = vextract.high.u32 %v1941
    %v1944 = vmul.u32.u64.compose %v1940, %v1935
    %v1945 = vextract.low.u32 %v1944
    %v1946 = vextract.high.u32 %v1944
    %v1947 = vmul.u32 %v1940, %v1931
    %v1948 = vadd.s32 %v1943, %v1945
    %vm1949 = vc.u32 %v1943, %v1945
    %v1950 = vadd.s32 %v1946, 1
    %v1951 = vsel %vm1949, %v1950, %v1946
    %v1952 = vadd.s32 %v1947, %v1951
    %v1953 = vadd.s32 %v1952, 536870912
    %v1954 = vshrl.u32 %v1953, 30
    %v1955 = vshll.u32 %v1954, 30
    %v1956 = vsub.s32 %v1952, %v1955
    %vm1957 = vcmp.lt.s32.totalorder %v1956, 0
    %v1958 = vsub.s32 0, %v1956
    %v1959 = vsel %vm1957, %v1958, %v1956
    %v1960 = vclz %v1959
    %v1961 = vsub.s32 %v1960, 2
    %vm1962 = vcmp.gt.s32.totalorder 0, %v1961
    %v1963 = vsel %vm1962, 0, %v1961
    %v1964 = vsub.s32 32, %v1963
    %v1965 = vshll.u32 %v1956, %v1963
    %v1966 = vshrl.u32 %v1948, %v1964
    %v1967 = vor.u32 %v1965, %v1966
    %v1968 = vsub.s32 4294967266, %v1963
    %v1969 = vadd.s32 %v1968, 127
    %v1970 = vshll.u32 %v1969, 23
    %v1971 = vor.u32 4788187, %v1970
    %v1972 = vand.u32 2147483647, %v1971
    %v1974 = vcvt.s32.f32 %v1967
    %v1975 = vmul.f32 %v1974, %v1972
    %v1976 = vxor.u32 %v1975, 2147483648
    %v1977 = vsel %vm1894, %v1976, %v1975
    %v1978 = vsub.s32 4, %v1954
    %v1979 = vsel %vm1894, %v1978, %v1954
    %v1980 = vsel %vm1893, %v1891, %v1977
    %v1981 = vsel %vm1893, 0, %v1979
    %v1982 = vcosq.f32.pop %v1980
    %v1983 = vsinq.f32.pop %v1980
    %vm1984 = vweird.f32 %v1891
    %v1985 = vand.u32 %v1981, 3
    %vm1986 = vcmp.lt.s32.totalorder %v1985, 2
    %vm1987 = vcmp.eq.s32.totalorder %v1985, 0
    %v1988 = vxor.u32 %v1983, 2147483648
    %v1989 = vsel %vm1987, %v1982, %v1988
    %vm1990 = vcmp.eq.s32.totalorder %v1985, 2
    %v1991 = vxor.u32 %v1982, 2147483648
    %v1992 = vsel %vm1990, %v1991, %v1983
    %v1993 = vsel %vm1986, %v1989, %v1992
    %v1994 = vsel %vm1984, nan, %v1993
    %v1995 = vand.u32 2147483647, %v1891
    %vm1996 = vcmp.le.f32.partialorder %v1995, 0.7853982
    %vm1997 = vcmp.lt.s32.totalorder %v1891, 0
    %v1998 = vand.u32 %v1891, 2139095040
    %v1999 = vshrl.u32 %v1998, 23
    %v2000 = vsub.s32 %v1999, 127
    %v2001 = vand.u32 2147483647, %v1891
    %v2002 = vand.u32 %v2001, 8388607
    %v2003 = vor.u32 %v2002, 8388608
    %v2004 = vsub.s32 0, %v2003
    %v2005 = vadd.s32 %v2000, 1
    %vm2006 = vcmp.gt.s32.totalorder %v2005, 0
    %v2007 = vsel %vm2006, %v2005, 0
    %v2008 = vshrl.u32 %v2007, 5
    %v2009 = vand.u32 %v2007, 31
    %v2010 = vsub.s32 32, %v2009
    %v2011 = vshrl.u32 683565275, %v2010
    %v2012 = vshll.u32 683565275, %v2009
    %v2013 = vshrl.u32 2475754826, %v2010
    %v2014 = vor.u32 %v2012, %v2013
    %v2015 = vshll.u32 2475754826, %v2009
    %v2016 = vshrl.u32 2131351028, %v2010
    %v2017 = vor.u32 %v2015, %v2016
    %v2018 = vshll.u32 2131351028, %v2009
    %v2019 = vshrl.u32 2102212464, %v2010
    %v2020 = vor.u32 %v2018, %v2019
    %v2021 = vshll.u32 2102212464, %v2009
    %v2022 = vshrl.u32 920167782, %v2010
    %v2023 = vor.u32 %v2021, %v2022
    %v2024 = vshll.u32 920167782, %v2009
    %v2025 = vshrl.u32 1326507024, %v2010
    %v2026 = vor.u32 %v2024, %v2025
    %vm2027 = vcmp.lt.s32.totalorder %v2008, 1
    %vm2028 = vcmp.lt.s32.totalorder %v2008, 2
    %vm2029 = vcmp.lt.s32.totalorder %v2008, 3
    %vm2030 = vcmp.lt.s32.totalorder %v2008, 4
    %v2031 = vsel %vm2027, %v2011, %v2014
    %v2032 = vsel %vm2030, %v2020, 2102212464
    %v2033 = vsel %vm2029, %v2017, %v2032
    %v2034 = vsel %vm2028, %v2031, %v2033
    %v2035 = vsel %vm2027, %v2014, %v2017
    %v2036 = vsel %vm2030, %v2023, 920167782
    %v2037 = vsel %vm2029, %v2020, %v2036
    %v2038 = vsel %vm2028, %v2035, %v2037
    %v2039 = vsel %vm2027, %v2017, %v2020
    %v2040 = vsel %vm2030, %v2026, 1326507024
    %v2041 = vsel %vm2029, %v2023, %v2040
    %v2042 = vsel %vm2028, %v2039, %v2041
    %v2043 = vshll.u32 %v2003, 8
    %v2044 = vmul.u32.u64.compose %v2043, %v2042
    %v2045 = vextract.low.u32 %v2044
    %v2046 = vextract.high.u32 %v2044
    %v2047 = vmul.u32.u64.compose %v2043, %v2038
    %v2048 = vextract.low.u32 %v2047
    %v2049 = vextract.high.u32 %v2047
    %v2050 = vmul.u32 %v2043, %v2034
    %v2051 = vadd.s32 %v2046, %v2048
    %vm2052 = vc.u32 %v2046, %v2048
    %v2053 = vadd.s32 %v2049, 1
    %v2054 = vsel %vm2052, %v2053, %v2049
    %v2055 = vadd.s32 %v2050, %v2054
    %v2056 = vadd.s32 %v2055, 536870912
    %v2057 = vshrl.u32 %v2056, 30
    %v2058 = vshll.u32 %v2057, 30
    %v2059 = vsub.s32 %v2055, %v2058
    %vm2060 = vcmp.lt.s32.totalorder %v2059, 0
    %v2061 = vsub.s32 0, %v2059
    %v2062 = vsel %vm2060, %v2061, %v2059
    %v2063 = vclz %v2062
    %v2064 = vsub.s32 %v2063, 2
    %vm2065 = vcmp.gt.s32.totalorder 0, %v2064
    %v2066 = vsel %vm2065, 0, %v2064
    %v2067 = vsub.s32 32, %v2066
    %v2068 = vshll.u32 %v2059, %v2066
    %v2069 = vshrl.u32 %v2051, %v2067
    %v2070 = vor.u32 %v2068, %v2069
    %v2071 = vsub.s32 4294967266, %v2066
    %v2072 = vadd.s32 %v2071, 127
    %v2073 = vshll.u32 %v2072, 23
    %v2074 = vor.u32 4788187, %v2073
    %v2075 = vand.u32 2147483647, %v2074
    %v2077 = vcvt.s32.f32 %v2070
    %v2078 = vmul.f32 %v2077, %v2075
    %v2079 = vxor.u32 %v2078, 2147483648
    %v2080 = vsel %vm1997, %v2079, %v2078
    %v2081 = vsub.s32 4, %v2057
    %v2082 = vsel %vm1997, %v2081, %v2057
    %v2083 = vsel %vm1996, %v1891, %v2080
    %v2084 = vsel %vm1996, 0, %v2082
    %v2085 = vcosq.f32.pop %v2083
    %v2086 = vsinq.f32.pop %v2083
    %vm2087 = vweird.f32 %v1891
    %v2088 = vadd.s32 %v2084, 3
    %v2089 = vand.u32 %v2088, 3
    %vm2090 = vcmp.lt.s32.totalorder %v2089, 2
    %vm2091 = vcmp.eq.s32.totalorder %v2089, 0
    %v2092 = vxor.u32 %v2086, 2147483648
    %v2093 = vsel %vm2091, %v2085, %v2092
    %vm2094 = vcmp.eq.s32.totalorder %v2089, 2
    %v2095 = vxor.u32 %v2085, 2147483648
    %v2096 = vsel %vm2094, %v2095, %v2086
    %v2097 = vsel %vm2090, %v2093, %v2096
    %v2098 = vsel %vm2087, nan, %v2097
    %vm2099 = vcmp.eq.s32.totalorder %v39, 9
    %v2100 = vsel %vm2099, %v1994, 0.0
    %v2101 = vmul.f32 %v2098, %v1879
    %v2102 = vsub.f32 %v2100, %v2101
    %2103 = vst [vmem:[#allocation5 + $0x9] sm:$0x1] %v2102
    %v2104 = vmul.f32 %v1994, %v1879
    %v2105 = vsel %vm2099, %v2098, 0.0
    %v2106 = vadd.f32 %v2104, %v2105
    %s2107 = sld [smem:[#allocation2 + $0x9]]
    %v2108 = vstv %s2107
    %v2109 = vsel %vm24, %v2108, 0.0
    %s2110 = sld [smem:[#allocation2 + $0x89]]
    %v2111 = vstv %s2110
    %v2112 = vsel %vm27, %v2111, %v2109
    %s2113 = sld [smem:[#allocation2 + $0x109]]
    %v2114 = vstv %s2113
    %v2115 = vsel %vm30, %v2114, %v2112
    %s2116 = sld [smem:[#allocation2 + $0x189]]
    %v2117 = vstv %s2116
    %v2118 = vsel %vm33, %v2117, %v2115
    %v2119 = vand.u32 2147483647, %v2118
    %vm2120 = vcmp.le.f32.partialorder %v2119, 0.7853982
    %vm2121 = vcmp.lt.s32.totalorder %v2118, 0
    %v2122 = vand.u32 %v2118, 2139095040
    %v2123 = vshrl.u32 %v2122, 23
    %v2124 = vsub.s32 %v2123, 127
    %v2125 = vand.u32 2147483647, %v2118
    %v2126 = vand.u32 %v2125, 8388607
    %v2127 = vor.u32 %v2126, 8388608
    %v2128 = vsub.s32 0, %v2127
    %v2129 = vadd.s32 %v2124, 1
    %vm2130 = vcmp.gt.s32.totalorder %v2129, 0
    %v2131 = vsel %vm2130, %v2129, 0
    %v2132 = vshrl.u32 %v2131, 5
    %v2133 = vand.u32 %v2131, 31
    %v2134 = vsub.s32 32, %v2133
    %v2135 = vshrl.u32 683565275, %v2134
    %v2136 = vshll.u32 683565275, %v2133
    %v2137 = vshrl.u32 2475754826, %v2134
    %v2138 = vor.u32 %v2136, %v2137
    %v2139 = vshll.u32 2475754826, %v2133
    %v2140 = vshrl.u32 2131351028, %v2134
    %v2141 = vor.u32 %v2139, %v2140
    %v2142 = vshll.u32 2131351028, %v2133
    %v2143 = vshrl.u32 2102212464, %v2134
    %v2144 = vor.u32 %v2142, %v2143
    %v2145 = vshll.u32 2102212464, %v2133
    %v2146 = vshrl.u32 920167782, %v2134
    %v2147 = vor.u32 %v2145, %v2146
    %v2148 = vshll.u32 920167782, %v2133
    %v2149 = vshrl.u32 1326507024, %v2134
    %v2150 = vor.u32 %v2148, %v2149
    %vm2151 = vcmp.lt.s32.totalorder %v2132, 1
    %vm2152 = vcmp.lt.s32.totalorder %v2132, 2
    %vm2153 = vcmp.lt.s32.totalorder %v2132, 3
    %vm2154 = vcmp.lt.s32.totalorder %v2132, 4
    %v2155 = vsel %vm2151, %v2135, %v2138
    %v2156 = vsel %vm2154, %v2144, 2102212464
    %v2157 = vsel %vm2153, %v2141, %v2156
    %v2158 = vsel %vm2152, %v2155, %v2157
    %v2159 = vsel %vm2151, %v2138, %v2141
    %v2160 = vsel %vm2154, %v2147, 920167782
    %v2161 = vsel %vm2153, %v2144, %v2160
    %v2162 = vsel %vm2152, %v2159, %v2161
    %v2163 = vsel %vm2151, %v2141, %v2144
    %v2164 = vsel %vm2154, %v2150, 1326507024
    %v2165 = vsel %vm2153, %v2147, %v2164
    %v2166 = vsel %vm2152, %v2163, %v2165
    %v2167 = vshll.u32 %v2127, 8
    %v2168 = vmul.u32.u64.compose %v2167, %v2166
    %v2169 = vextract.low.u32 %v2168
    %v2170 = vextract.high.u32 %v2168
    %v2171 = vmul.u32.u64.compose %v2167, %v2162
    %v2172 = vextract.low.u32 %v2171
    %v2173 = vextract.high.u32 %v2171
    %v2174 = vmul.u32 %v2167, %v2158
    %v2175 = vadd.s32 %v2170, %v2172
    %vm2176 = vc.u32 %v2170, %v2172
    %v2177 = vadd.s32 %v2173, 1
    %v2178 = vsel %vm2176, %v2177, %v2173
    %v2179 = vadd.s32 %v2174, %v2178
    %v2180 = vadd.s32 %v2179, 536870912
    %v2181 = vshrl.u32 %v2180, 30
    %v2182 = vshll.u32 %v2181, 30
    %v2183 = vsub.s32 %v2179, %v2182
    %vm2184 = vcmp.lt.s32.totalorder %v2183, 0
    %v2185 = vsub.s32 0, %v2183
    %v2186 = vsel %vm2184, %v2185, %v2183
    %v2187 = vclz %v2186
    %v2188 = vsub.s32 %v2187, 2
    %vm2189 = vcmp.gt.s32.totalorder 0, %v2188
    %v2190 = vsel %vm2189, 0, %v2188
    %v2191 = vsub.s32 32, %v2190
    %v2192 = vshll.u32 %v2183, %v2190
    %v2193 = vshrl.u32 %v2175, %v2191
    %v2194 = vor.u32 %v2192, %v2193
    %v2195 = vsub.s32 4294967266, %v2190
    %v2196 = vadd.s32 %v2195, 127
    %v2197 = vshll.u32 %v2196, 23
    %v2198 = vor.u32 4788187, %v2197
    %v2199 = vand.u32 2147483647, %v2198
    %v2201 = vcvt.s32.f32 %v2194
    %v2202 = vmul.f32 %v2201, %v2199
    %v2203 = vxor.u32 %v2202, 2147483648
    %v2204 = vsel %vm2121, %v2203, %v2202
    %v2205 = vsub.s32 4, %v2181
    %v2206 = vsel %vm2121, %v2205, %v2181
    %v2207 = vsel %vm2120, %v2118, %v2204
    %v2208 = vsel %vm2120, 0, %v2206
    %v2209 = vcosq.f32.pop %v2207
    %v2210 = vsinq.f32.pop %v2207
    %vm2211 = vweird.f32 %v2118
    %v2212 = vand.u32 %v2208, 3
    %vm2213 = vcmp.lt.s32.totalorder %v2212, 2
    %vm2214 = vcmp.eq.s32.totalorder %v2212, 0
    %v2215 = vxor.u32 %v2210, 2147483648
    %v2216 = vsel %vm2214, %v2209, %v2215
    %vm2217 = vcmp.eq.s32.totalorder %v2212, 2
    %v2218 = vxor.u32 %v2209, 2147483648
    %v2219 = vsel %vm2217, %v2218, %v2210
    %v2220 = vsel %vm2213, %v2216, %v2219
    %v2221 = vsel %vm2211, nan, %v2220
    %v2222 = vand.u32 2147483647, %v2118
    %vm2223 = vcmp.le.f32.partialorder %v2222, 0.7853982
    %vm2224 = vcmp.lt.s32.totalorder %v2118, 0
    %v2225 = vand.u32 %v2118, 2139095040
    %v2226 = vshrl.u32 %v2225, 23
    %v2227 = vsub.s32 %v2226, 127
    %v2228 = vand.u32 2147483647, %v2118
    %v2229 = vand.u32 %v2228, 8388607
    %v2230 = vor.u32 %v2229, 8388608
    %v2231 = vsub.s32 0, %v2230
    %v2232 = vadd.s32 %v2227, 1
    %vm2233 = vcmp.gt.s32.totalorder %v2232, 0
    %v2234 = vsel %vm2233, %v2232, 0
    %v2235 = vshrl.u32 %v2234, 5
    %v2236 = vand.u32 %v2234, 31
    %v2237 = vsub.s32 32, %v2236
    %v2238 = vshrl.u32 683565275, %v2237
    %v2239 = vshll.u32 683565275, %v2236
    %v2240 = vshrl.u32 2475754826, %v2237
    %v2241 = vor.u32 %v2239, %v2240
    %v2242 = vshll.u32 2475754826, %v2236
    %v2243 = vshrl.u32 2131351028, %v2237
    %v2244 = vor.u32 %v2242, %v2243
    %v2245 = vshll.u32 2131351028, %v2236
    %v2246 = vshrl.u32 2102212464, %v2237
    %v2247 = vor.u32 %v2245, %v2246
    %v2248 = vshll.u32 2102212464, %v2236
    %v2249 = vshrl.u32 920167782, %v2237
    %v2250 = vor.u32 %v2248, %v2249
    %v2251 = vshll.u32 920167782, %v2236
    %v2252 = vshrl.u32 1326507024, %v2237
    %v2253 = vor.u32 %v2251, %v2252
    %vm2254 = vcmp.lt.s32.totalorder %v2235, 1
    %vm2255 = vcmp.lt.s32.totalorder %v2235, 2
    %vm2256 = vcmp.lt.s32.totalorder %v2235, 3
    %vm2257 = vcmp.lt.s32.totalorder %v2235, 4
    %v2258 = vsel %vm2254, %v2238, %v2241
    %v2259 = vsel %vm2257, %v2247, 2102212464
    %v2260 = vsel %vm2256, %v2244, %v2259
    %v2261 = vsel %vm2255, %v2258, %v2260
    %v2262 = vsel %vm2254, %v2241, %v2244
    %v2263 = vsel %vm2257, %v2250, 920167782
    %v2264 = vsel %vm2256, %v2247, %v2263
    %v2265 = vsel %vm2255, %v2262, %v2264
    %v2266 = vsel %vm2254, %v2244, %v2247
    %v2267 = vsel %vm2257, %v2253, 1326507024
    %v2268 = vsel %vm2256, %v2250, %v2267
    %v2269 = vsel %vm2255, %v2266, %v2268
    %v2270 = vshll.u32 %v2230, 8
    %v2271 = vmul.u32.u64.compose %v2270, %v2269
    %v2272 = vextract.low.u32 %v2271
    %v2273 = vextract.high.u32 %v2271
    %v2274 = vmul.u32.u64.compose %v2270, %v2265
    %v2275 = vextract.low.u32 %v2274
    %v2276 = vextract.high.u32 %v2274
    %v2277 = vmul.u32 %v2270, %v2261
    %v2278 = vadd.s32 %v2273, %v2275
    %vm2279 = vc.u32 %v2273, %v2275
    %v2280 = vadd.s32 %v2276, 1
    %v2281 = vsel %vm2279, %v2280, %v2276
    %v2282 = vadd.s32 %v2277, %v2281
    %v2283 = vadd.s32 %v2282, 536870912
    %v2284 = vshrl.u32 %v2283, 30
    %v2285 = vshll.u32 %v2284, 30
    %v2286 = vsub.s32 %v2282, %v2285
    %vm2287 = vcmp.lt.s32.totalorder %v2286, 0
    %v2288 = vsub.s32 0, %v2286
    %v2289 = vsel %vm2287, %v2288, %v2286
    %v2290 = vclz %v2289
    %v2291 = vsub.s32 %v2290, 2
    %vm2292 = vcmp.gt.s32.totalorder 0, %v2291
    %v2293 = vsel %vm2292, 0, %v2291
    %v2294 = vsub.s32 32, %v2293
    %v2295 = vshll.u32 %v2286, %v2293
    %v2296 = vshrl.u32 %v2278, %v2294
    %v2297 = vor.u32 %v2295, %v2296
    %v2298 = vsub.s32 4294967266, %v2293
    %v2299 = vadd.s32 %v2298, 127
    %v2300 = vshll.u32 %v2299, 23
    %v2301 = vor.u32 4788187, %v2300
    %v2302 = vand.u32 2147483647, %v2301
    %v2304 = vcvt.s32.f32 %v2297
    %v2305 = vmul.f32 %v2304, %v2302
    %v2306 = vxor.u32 %v2305, 2147483648
    %v2307 = vsel %vm2224, %v2306, %v2305
    %v2308 = vsub.s32 4, %v2284
    %v2309 = vsel %vm2224, %v2308, %v2284
    %v2310 = vsel %vm2223, %v2118, %v2307
    %v2311 = vsel %vm2223, 0, %v2309
    %v2312 = vcosq.f32.pop %v2310
    %v2313 = vsinq.f32.pop %v2310
    %vm2314 = vweird.f32 %v2118
    %v2315 = vadd.s32 %v2311, 3
    %v2316 = vand.u32 %v2315, 3
    %vm2317 = vcmp.lt.s32.totalorder %v2316, 2
    %vm2318 = vcmp.eq.s32.totalorder %v2316, 0
    %v2319 = vxor.u32 %v2313, 2147483648
    %v2320 = vsel %vm2318, %v2312, %v2319
    %vm2321 = vcmp.eq.s32.totalorder %v2316, 2
    %v2322 = vxor.u32 %v2312, 2147483648
    %v2323 = vsel %vm2321, %v2322, %v2313
    %v2324 = vsel %vm2317, %v2320, %v2323
    %v2325 = vsel %vm2314, nan, %v2324
    %vm2326 = vcmp.eq.s32.totalorder %v39, 10
    %v2327 = vsel %vm2326, %v2221, 0.0
    %v2328 = vmul.f32 %v2325, %v2106
    %v2329 = vsub.f32 %v2327, %v2328
    %2330 = vst [vmem:[#allocation5 + $0xa] sm:$0x1] %v2329
    %v2331 = vmul.f32 %v2221, %v2106
    %v2332 = vsel %vm2326, %v2325, 0.0
    %v2333 = vadd.f32 %v2331, %v2332
    %s2334 = sld [smem:[#allocation2 + $0xa]]
    %v2335 = vstv %s2334
    %v2336 = vsel %vm24, %v2335, 0.0
    %s2337 = sld [smem:[#allocation2 + $0x8a]]
    %v2338 = vstv %s2337
    %v2339 = vsel %vm27, %v2338, %v2336
    %s2340 = sld [smem:[#allocation2 + $0x10a]]
    %v2341 = vstv %s2340
    %v2342 = vsel %vm30, %v2341, %v2339
    %s2343 = sld [smem:[#allocation2 + $0x18a]]
    %v2344 = vstv %s2343
    %v2345 = vsel %vm33, %v2344, %v2342
    %v2346 = vand.u32 2147483647, %v2345
    %vm2347 = vcmp.le.f32.partialorder %v2346, 0.7853982
    %vm2348 = vcmp.lt.s32.totalorder %v2345, 0
    %v2349 = vand.u32 %v2345, 2139095040
    %v2350 = vshrl.u32 %v2349, 23
    %v2351 = vsub.s32 %v2350, 127
    %v2352 = vand.u32 2147483647, %v2345
    %v2353 = vand.u32 %v2352, 8388607
    %v2354 = vor.u32 %v2353, 8388608
    %v2355 = vsub.s32 0, %v2354
    %v2356 = vadd.s32 %v2351, 1
    %vm2357 = vcmp.gt.s32.totalorder %v2356, 0
    %v2358 = vsel %vm2357, %v2356, 0
    %v2359 = vshrl.u32 %v2358, 5
    %v2360 = vand.u32 %v2358, 31
    %v2361 = vsub.s32 32, %v2360
    %v2362 = vshrl.u32 683565275, %v2361
    %v2363 = vshll.u32 683565275, %v2360
    %v2364 = vshrl.u32 2475754826, %v2361
    %v2365 = vor.u32 %v2363, %v2364
    %v2366 = vshll.u32 2475754826, %v2360
    %v2367 = vshrl.u32 2131351028, %v2361
    %v2368 = vor.u32 %v2366, %v2367
    %v2369 = vshll.u32 2131351028, %v2360
    %v2370 = vshrl.u32 2102212464, %v2361
    %v2371 = vor.u32 %v2369, %v2370
    %v2372 = vshll.u32 2102212464, %v2360
    %v2373 = vshrl.u32 920167782, %v2361
    %v2374 = vor.u32 %v2372, %v2373
    %v2375 = vshll.u32 920167782, %v2360
    %v2376 = vshrl.u32 1326507024, %v2361
    %v2377 = vor.u32 %v2375, %v2376
    %vm2378 = vcmp.lt.s32.totalorder %v2359, 1
    %vm2379 = vcmp.lt.s32.totalorder %v2359, 2
    %vm2380 = vcmp.lt.s32.totalorder %v2359, 3
    %vm2381 = vcmp.lt.s32.totalorder %v2359, 4
    %v2382 = vsel %vm2378, %v2362, %v2365
    %v2383 = vsel %vm2381, %v2371, 2102212464
    %v2384 = vsel %vm2380, %v2368, %v2383
    %v2385 = vsel %vm2379, %v2382, %v2384
    %v2386 = vsel %vm2378, %v2365, %v2368
    %v2387 = vsel %vm2381, %v2374, 920167782
    %v2388 = vsel %vm2380, %v2371, %v2387
    %v2389 = vsel %vm2379, %v2386, %v2388
    %v2390 = vsel %vm2378, %v2368, %v2371
    %v2391 = vsel %vm2381, %v2377, 1326507024
    %v2392 = vsel %vm2380, %v2374, %v2391
    %v2393 = vsel %vm2379, %v2390, %v2392
    %v2394 = vshll.u32 %v2354, 8
    %v2395 = vmul.u32.u64.compose %v2394, %v2393
    %v2396 = vextract.low.u32 %v2395
    %v2397 = vextract.high.u32 %v2395
    %v2398 = vmul.u32.u64.compose %v2394, %v2389
    %v2399 = vextract.low.u32 %v2398
    %v2400 = vextract.high.u32 %v2398
    %v2401 = vmul.u32 %v2394, %v2385
    %v2402 = vadd.s32 %v2397, %v2399
    %vm2403 = vc.u32 %v2397, %v2399
    %v2404 = vadd.s32 %v2400, 1
    %v2405 = vsel %vm2403, %v2404, %v2400
    %v2406 = vadd.s32 %v2401, %v2405
    %v2407 = vadd.s32 %v2406, 536870912
    %v2408 = vshrl.u32 %v2407, 30
    %v2409 = vshll.u32 %v2408, 30
    %v2410 = vsub.s32 %v2406, %v2409
    %vm2411 = vcmp.lt.s32.totalorder %v2410, 0
    %v2412 = vsub.s32 0, %v2410
    %v2413 = vsel %vm2411, %v2412, %v2410
    %v2414 = vclz %v2413
    %v2415 = vsub.s32 %v2414, 2
    %vm2416 = vcmp.gt.s32.totalorder 0, %v2415
    %v2417 = vsel %vm2416, 0, %v2415
    %v2418 = vsub.s32 32, %v2417
    %v2419 = vshll.u32 %v2410, %v2417
    %v2420 = vshrl.u32 %v2402, %v2418
    %v2421 = vor.u32 %v2419, %v2420
    %v2422 = vsub.s32 4294967266, %v2417
    %v2423 = vadd.s32 %v2422, 127
    %v2424 = vshll.u32 %v2423, 23
    %v2425 = vor.u32 4788187, %v2424
    %v2426 = vand.u32 2147483647, %v2425
    %v2428 = vcvt.s32.f32 %v2421
    %v2429 = vmul.f32 %v2428, %v2426
    %v2430 = vxor.u32 %v2429, 2147483648
    %v2431 = vsel %vm2348, %v2430, %v2429
    %v2432 = vsub.s32 4, %v2408
    %v2433 = vsel %vm2348, %v2432, %v2408
    %v2434 = vsel %vm2347, %v2345, %v2431
    %v2435 = vsel %vm2347, 0, %v2433
    %v2436 = vcosq.f32.pop %v2434
    %v2437 = vsinq.f32.pop %v2434
    %vm2438 = vweird.f32 %v2345
    %v2439 = vand.u32 %v2435, 3
    %vm2440 = vcmp.lt.s32.totalorder %v2439, 2
    %vm2441 = vcmp.eq.s32.totalorder %v2439, 0
    %v2442 = vxor.u32 %v2437, 2147483648
    %v2443 = vsel %vm2441, %v2436, %v2442
    %vm2444 = vcmp.eq.s32.totalorder %v2439, 2
    %v2445 = vxor.u32 %v2436, 2147483648
    %v2446 = vsel %vm2444, %v2445, %v2437
    %v2447 = vsel %vm2440, %v2443, %v2446
    %v2448 = vsel %vm2438, nan, %v2447
    %v2449 = vand.u32 2147483647, %v2345
    %vm2450 = vcmp.le.f32.partialorder %v2449, 0.7853982
    %vm2451 = vcmp.lt.s32.totalorder %v2345, 0
    %v2452 = vand.u32 %v2345, 2139095040
    %v2453 = vshrl.u32 %v2452, 23
    %v2454 = vsub.s32 %v2453, 127
    %v2455 = vand.u32 2147483647, %v2345
    %v2456 = vand.u32 %v2455, 8388607
    %v2457 = vor.u32 %v2456, 8388608
    %v2458 = vsub.s32 0, %v2457
    %v2459 = vadd.s32 %v2454, 1
    %vm2460 = vcmp.gt.s32.totalorder %v2459, 0
    %v2461 = vsel %vm2460, %v2459, 0
    %v2462 = vshrl.u32 %v2461, 5
    %v2463 = vand.u32 %v2461, 31
    %v2464 = vsub.s32 32, %v2463
    %v2465 = vshrl.u32 683565275, %v2464
    %v2466 = vshll.u32 683565275, %v2463
    %v2467 = vshrl.u32 2475754826, %v2464
    %v2468 = vor.u32 %v2466, %v2467
    %v2469 = vshll.u32 2475754826, %v2463
    %v2470 = vshrl.u32 2131351028, %v2464
    %v2471 = vor.u32 %v2469, %v2470
    %v2472 = vshll.u32 2131351028, %v2463
    %v2473 = vshrl.u32 2102212464, %v2464
    %v2474 = vor.u32 %v2472, %v2473
    %v2475 = vshll.u32 2102212464, %v2463
    %v2476 = vshrl.u32 920167782, %v2464
    %v2477 = vor.u32 %v2475, %v2476
    %v2478 = vshll.u32 920167782, %v2463
    %v2479 = vshrl.u32 1326507024, %v2464
    %v2480 = vor.u32 %v2478, %v2479
    %vm2481 = vcmp.lt.s32.totalorder %v2462, 1
    %vm2482 = vcmp.lt.s32.totalorder %v2462, 2
    %vm2483 = vcmp.lt.s32.totalorder %v2462, 3
    %vm2484 = vcmp.lt.s32.totalorder %v2462, 4
    %v2485 = vsel %vm2481, %v2465, %v2468
    %v2486 = vsel %vm2484, %v2474, 2102212464
    %v2487 = vsel %vm2483, %v2471, %v2486
    %v2488 = vsel %vm2482, %v2485, %v2487
    %v2489 = vsel %vm2481, %v2468, %v2471
    %v2490 = vsel %vm2484, %v2477, 920167782
    %v2491 = vsel %vm2483, %v2474, %v2490
    %v2492 = vsel %vm2482, %v2489, %v2491
    %v2493 = vsel %vm2481, %v2471, %v2474
    %v2494 = vsel %vm2484, %v2480, 1326507024
    %v2495 = vsel %vm2483, %v2477, %v2494
    %v2496 = vsel %vm2482, %v2493, %v2495
    %v2497 = vshll.u32 %v2457, 8
    %v2498 = vmul.u32.u64.compose %v2497, %v2496
    %v2499 = vextract.low.u32 %v2498
    %v2500 = vextract.high.u32 %v2498
    %v2501 = vmul.u32.u64.compose %v2497, %v2492
    %v2502 = vextract.low.u32 %v2501
    %v2503 = vextract.high.u32 %v2501
    %v2504 = vmul.u32 %v2497, %v2488
    %v2505 = vadd.s32 %v2500, %v2502
    %vm2506 = vc.u32 %v2500, %v2502
    %v2507 = vadd.s32 %v2503, 1
    %v2508 = vsel %vm2506, %v2507, %v2503
    %v2509 = vadd.s32 %v2504, %v2508
    %v2510 = vadd.s32 %v2509, 536870912
    %v2511 = vshrl.u32 %v2510, 30
    %v2512 = vshll.u32 %v2511, 30
    %v2513 = vsub.s32 %v2509, %v2512
    %vm2514 = vcmp.lt.s32.totalorder %v2513, 0
    %v2515 = vsub.s32 0, %v2513
    %v2516 = vsel %vm2514, %v2515, %v2513
    %v2517 = vclz %v2516
    %v2518 = vsub.s32 %v2517, 2
    %vm2519 = vcmp.gt.s32.totalorder 0, %v2518
    %v2520 = vsel %vm2519, 0, %v2518
    %v2521 = vsub.s32 32, %v2520
    %v2522 = vshll.u32 %v2513, %v2520
    %v2523 = vshrl.u32 %v2505, %v2521
    %v2524 = vor.u32 %v2522, %v2523
    %v2525 = vsub.s32 4294967266, %v2520
    %v2526 = vadd.s32 %v2525, 127
    %v2527 = vshll.u32 %v2526, 23
    %v2528 = vor.u32 4788187, %v2527
    %v2529 = vand.u32 2147483647, %v2528
    %v2531 = vcvt.s32.f32 %v2524
    %v2532 = vmul.f32 %v2531, %v2529
    %v2533 = vxor.u32 %v2532, 2147483648
    %v2534 = vsel %vm2451, %v2533, %v2532
    %v2535 = vsub.s32 4, %v2511
    %v2536 = vsel %vm2451, %v2535, %v2511
    %v2537 = vsel %vm2450, %v2345, %v2534
    %v2538 = vsel %vm2450, 0, %v2536
    %v2539 = vcosq.f32.pop %v2537
    %v2540 = vsinq.f32.pop %v2537
    %vm2541 = vweird.f32 %v2345
    %v2542 = vadd.s32 %v2538, 3
    %v2543 = vand.u32 %v2542, 3
    %vm2544 = vcmp.lt.s32.totalorder %v2543, 2
    %vm2545 = vcmp.eq.s32.totalorder %v2543, 0
    %v2546 = vxor.u32 %v2540, 2147483648
    %v2547 = vsel %vm2545, %v2539, %v2546
    %vm2548 = vcmp.eq.s32.totalorder %v2543, 2
    %v2549 = vxor.u32 %v2539, 2147483648
    %v2550 = vsel %vm2548, %v2549, %v2540
    %v2551 = vsel %vm2544, %v2547, %v2550
    %v2552 = vsel %vm2541, nan, %v2551
    %vm2553 = vcmp.eq.s32.totalorder %v39, 11
    %v2554 = vsel %vm2553, %v2448, 0.0
    %v2555 = vmul.f32 %v2552, %v2333
    %v2556 = vsub.f32 %v2554, %v2555
    %2557 = vst [vmem:[#allocation5 + $0xb] sm:$0x1] %v2556
    %v2558 = vmul.f32 %v2448, %v2333
    %v2559 = vsel %vm2553, %v2552, 0.0
    %v2560 = vadd.f32 %v2558, %v2559
    %s2561 = sld [smem:[#allocation2 + $0xb]]
    %v2562 = vstv %s2561
    %v2563 = vsel %vm24, %v2562, 0.0
    %s2564 = sld [smem:[#allocation2 + $0x8b]]
    %v2565 = vstv %s2564
    %v2566 = vsel %vm27, %v2565, %v2563
    %s2567 = sld [smem:[#allocation2 + $0x10b]]
    %v2568 = vstv %s2567
    %v2569 = vsel %vm30, %v2568, %v2566
    %s2570 = sld [smem:[#allocation2 + $0x18b]]
    %v2571 = vstv %s2570
    %v2572 = vsel %vm33, %v2571, %v2569
    %v2573 = vand.u32 2147483647, %v2572
    %vm2574 = vcmp.le.f32.partialorder %v2573, 0.7853982
    %vm2575 = vcmp.lt.s32.totalorder %v2572, 0
    %v2576 = vand.u32 %v2572, 2139095040
    %v2577 = vshrl.u32 %v2576, 23
    %v2578 = vsub.s32 %v2577, 127
    %v2579 = vand.u32 2147483647, %v2572
    %v2580 = vand.u32 %v2579, 8388607
    %v2581 = vor.u32 %v2580, 8388608
    %v2582 = vsub.s32 0, %v2581
    %v2583 = vadd.s32 %v2578, 1
    %vm2584 = vcmp.gt.s32.totalorder %v2583, 0
    %v2585 = vsel %vm2584, %v2583, 0
    %v2586 = vshrl.u32 %v2585, 5
    %v2587 = vand.u32 %v2585, 31
    %v2588 = vsub.s32 32, %v2587
    %v2589 = vshrl.u32 683565275, %v2588
    %v2590 = vshll.u32 683565275, %v2587
    %v2591 = vshrl.u32 2475754826, %v2588
    %v2592 = vor.u32 %v2590, %v2591
    %v2593 = vshll.u32 2475754826, %v2587
    %v2594 = vshrl.u32 2131351028, %v2588
    %v2595 = vor.u32 %v2593, %v2594
    %v2596 = vshll.u32 2131351028, %v2587
    %v2597 = vshrl.u32 2102212464, %v2588
    %v2598 = vor.u32 %v2596, %v2597
    %v2599 = vshll.u32 2102212464, %v2587
    %v2600 = vshrl.u32 920167782, %v2588
    %v2601 = vor.u32 %v2599, %v2600
    %v2602 = vshll.u32 920167782, %v2587
    %v2603 = vshrl.u32 1326507024, %v2588
    %v2604 = vor.u32 %v2602, %v2603
    %vm2605 = vcmp.lt.s32.totalorder %v2586, 1
    %vm2606 = vcmp.lt.s32.totalorder %v2586, 2
    %vm2607 = vcmp.lt.s32.totalorder %v2586, 3
    %vm2608 = vcmp.lt.s32.totalorder %v2586, 4
    %v2609 = vsel %vm2605, %v2589, %v2592
    %v2610 = vsel %vm2608, %v2598, 2102212464
    %v2611 = vsel %vm2607, %v2595, %v2610
    %v2612 = vsel %vm2606, %v2609, %v2611
    %v2613 = vsel %vm2605, %v2592, %v2595
    %v2614 = vsel %vm2608, %v2601, 920167782
    %v2615 = vsel %vm2607, %v2598, %v2614
    %v2616 = vsel %vm2606, %v2613, %v2615
    %v2617 = vsel %vm2605, %v2595, %v2598
    %v2618 = vsel %vm2608, %v2604, 1326507024
    %v2619 = vsel %vm2607, %v2601, %v2618
    %v2620 = vsel %vm2606, %v2617, %v2619
    %v2621 = vshll.u32 %v2581, 8
    %v2622 = vmul.u32.u64.compose %v2621, %v2620
    %v2623 = vextract.low.u32 %v2622
    %v2624 = vextract.high.u32 %v2622
    %v2625 = vmul.u32.u64.compose %v2621, %v2616
    %v2626 = vextract.low.u32 %v2625
    %v2627 = vextract.high.u32 %v2625
    %v2628 = vmul.u32 %v2621, %v2612
    %v2629 = vadd.s32 %v2624, %v2626
    %vm2630 = vc.u32 %v2624, %v2626
    %v2631 = vadd.s32 %v2627, 1
    %v2632 = vsel %vm2630, %v2631, %v2627
    %v2633 = vadd.s32 %v2628, %v2632
    %v2634 = vadd.s32 %v2633, 536870912
    %v2635 = vshrl.u32 %v2634, 30
    %v2636 = vshll.u32 %v2635, 30
    %v2637 = vsub.s32 %v2633, %v2636
    %vm2638 = vcmp.lt.s32.totalorder %v2637, 0
    %v2639 = vsub.s32 0, %v2637
    %v2640 = vsel %vm2638, %v2639, %v2637
    %v2641 = vclz %v2640
    %v2642 = vsub.s32 %v2641, 2
    %vm2643 = vcmp.gt.s32.totalorder 0, %v2642
    %v2644 = vsel %vm2643, 0, %v2642
    %v2645 = vsub.s32 32, %v2644
    %v2646 = vshll.u32 %v2637, %v2644
    %v2647 = vshrl.u32 %v2629, %v2645
    %v2648 = vor.u32 %v2646, %v2647
    %v2649 = vsub.s32 4294967266, %v2644
    %v2650 = vadd.s32 %v2649, 127
    %v2651 = vshll.u32 %v2650, 23
    %v2652 = vor.u32 4788187, %v2651
    %v2653 = vand.u32 2147483647, %v2652
    %v2655 = vcvt.s32.f32 %v2648
    %v2656 = vmul.f32 %v2655, %v2653
    %v2657 = vxor.u32 %v2656, 2147483648
    %v2658 = vsel %vm2575, %v2657, %v2656
    %v2659 = vsub.s32 4, %v2635
    %v2660 = vsel %vm2575, %v2659, %v2635
    %v2661 = vsel %vm2574, %v2572, %v2658
    %v2662 = vsel %vm2574, 0, %v2660
    %v2663 = vcosq.f32.pop %v2661
    %v2664 = vsinq.f32.pop %v2661
    %vm2665 = vweird.f32 %v2572
    %v2666 = vand.u32 %v2662, 3
    %vm2667 = vcmp.lt.s32.totalorder %v2666, 2
    %vm2668 = vcmp.eq.s32.totalorder %v2666, 0
    %v2669 = vxor.u32 %v2664, 2147483648
    %v2670 = vsel %vm2668, %v2663, %v2669
    %vm2671 = vcmp.eq.s32.totalorder %v2666, 2
    %v2672 = vxor.u32 %v2663, 2147483648
    %v2673 = vsel %vm2671, %v2672, %v2664
    %v2674 = vsel %vm2667, %v2670, %v2673
    %v2675 = vsel %vm2665, nan, %v2674
    %v2676 = vand.u32 2147483647, %v2572
    %vm2677 = vcmp.le.f32.partialorder %v2676, 0.7853982
    %vm2678 = vcmp.lt.s32.totalorder %v2572, 0
    %v2679 = vand.u32 %v2572, 2139095040
    %v2680 = vshrl.u32 %v2679, 23
    %v2681 = vsub.s32 %v2680, 127
    %v2682 = vand.u32 2147483647, %v2572
    %v2683 = vand.u32 %v2682, 8388607
    %v2684 = vor.u32 %v2683, 8388608
    %v2685 = vsub.s32 0, %v2684
    %v2686 = vadd.s32 %v2681, 1
    %vm2687 = vcmp.gt.s32.totalorder %v2686, 0
    %v2688 = vsel %vm2687, %v2686, 0
    %v2689 = vshrl.u32 %v2688, 5
    %v2690 = vand.u32 %v2688, 31
    %v2691 = vsub.s32 32, %v2690
    %v2692 = vshrl.u32 683565275, %v2691
    %v2693 = vshll.u32 683565275, %v2690
    %v2694 = vshrl.u32 2475754826, %v2691
    %v2695 = vor.u32 %v2693, %v2694
    %v2696 = vshll.u32 2475754826, %v2690
    %v2697 = vshrl.u32 2131351028, %v2691
    %v2698 = vor.u32 %v2696, %v2697
    %v2699 = vshll.u32 2131351028, %v2690
    %v2700 = vshrl.u32 2102212464, %v2691
    %v2701 = vor.u32 %v2699, %v2700
    %v2702 = vshll.u32 2102212464, %v2690
    %v2703 = vshrl.u32 920167782, %v2691
    %v2704 = vor.u32 %v2702, %v2703
    %v2705 = vshll.u32 920167782, %v2690
    %v2706 = vshrl.u32 1326507024, %v2691
    %v2707 = vor.u32 %v2705, %v2706
    %vm2708 = vcmp.lt.s32.totalorder %v2689, 1
    %vm2709 = vcmp.lt.s32.totalorder %v2689, 2
    %vm2710 = vcmp.lt.s32.totalorder %v2689, 3
    %vm2711 = vcmp.lt.s32.totalorder %v2689, 4
    %v2712 = vsel %vm2708, %v2692, %v2695
    %v2713 = vsel %vm2711, %v2701, 2102212464
    %v2714 = vsel %vm2710, %v2698, %v2713
    %v2715 = vsel %vm2709, %v2712, %v2714
    %v2716 = vsel %vm2708, %v2695, %v2698
    %v2717 = vsel %vm2711, %v2704, 920167782
    %v2718 = vsel %vm2710, %v2701, %v2717
    %v2719 = vsel %vm2709, %v2716, %v2718
    %v2720 = vsel %vm2708, %v2698, %v2701
    %v2721 = vsel %vm2711, %v2707, 1326507024
    %v2722 = vsel %vm2710, %v2704, %v2721
    %v2723 = vsel %vm2709, %v2720, %v2722
    %v2724 = vshll.u32 %v2684, 8
    %v2725 = vmul.u32.u64.compose %v2724, %v2723
    %v2726 = vextract.low.u32 %v2725
    %v2727 = vextract.high.u32 %v2725
    %v2728 = vmul.u32.u64.compose %v2724, %v2719
    %v2729 = vextract.low.u32 %v2728
    %v2730 = vextract.high.u32 %v2728
    %v2731 = vmul.u32 %v2724, %v2715
    %v2732 = vadd.s32 %v2727, %v2729
    %vm2733 = vc.u32 %v2727, %v2729
    %v2734 = vadd.s32 %v2730, 1
    %v2735 = vsel %vm2733, %v2734, %v2730
    %v2736 = vadd.s32 %v2731, %v2735
    %v2737 = vadd.s32 %v2736, 536870912
    %v2738 = vshrl.u32 %v2737, 30
    %v2739 = vshll.u32 %v2738, 30
    %v2740 = vsub.s32 %v2736, %v2739
    %vm2741 = vcmp.lt.s32.totalorder %v2740, 0
    %v2742 = vsub.s32 0, %v2740
    %v2743 = vsel %vm2741, %v2742, %v2740
    %v2744 = vclz %v2743
    %v2745 = vsub.s32 %v2744, 2
    %vm2746 = vcmp.gt.s32.totalorder 0, %v2745
    %v2747 = vsel %vm2746, 0, %v2745
    %v2748 = vsub.s32 32, %v2747
    %v2749 = vshll.u32 %v2740, %v2747
    %v2750 = vshrl.u32 %v2732, %v2748
    %v2751 = vor.u32 %v2749, %v2750
    %v2752 = vsub.s32 4294967266, %v2747
    %v2753 = vadd.s32 %v2752, 127
    %v2754 = vshll.u32 %v2753, 23
    %v2755 = vor.u32 4788187, %v2754
    %v2756 = vand.u32 2147483647, %v2755
    %v2758 = vcvt.s32.f32 %v2751
    %v2759 = vmul.f32 %v2758, %v2756
    %v2760 = vxor.u32 %v2759, 2147483648
    %v2761 = vsel %vm2678, %v2760, %v2759
    %v2762 = vsub.s32 4, %v2738
    %v2763 = vsel %vm2678, %v2762, %v2738
    %v2764 = vsel %vm2677, %v2572, %v2761
    %v2765 = vsel %vm2677, 0, %v2763
    %v2766 = vcosq.f32.pop %v2764
    %v2767 = vsinq.f32.pop %v2764
    %vm2768 = vweird.f32 %v2572
    %v2769 = vadd.s32 %v2765, 3
    %v2770 = vand.u32 %v2769, 3
    %vm2771 = vcmp.lt.s32.totalorder %v2770, 2
    %vm2772 = vcmp.eq.s32.totalorder %v2770, 0
    %v2773 = vxor.u32 %v2767, 2147483648
    %v2774 = vsel %vm2772, %v2766, %v2773
    %vm2775 = vcmp.eq.s32.totalorder %v2770, 2
    %v2776 = vxor.u32 %v2766, 2147483648
    %v2777 = vsel %vm2775, %v2776, %v2767
    %v2778 = vsel %vm2771, %v2774, %v2777
    %v2779 = vsel %vm2768, nan, %v2778
    %vm2780 = vcmp.eq.s32.totalorder %v39, 12
    %v2781 = vsel %vm2780, %v2675, 0.0
    %v2782 = vmul.f32 %v2779, %v2560
    %v2783 = vsub.f32 %v2781, %v2782
    %2784 = vst [vmem:[#allocation5 + $0xc] sm:$0x1] %v2783
    %v2785 = vmul.f32 %v2675, %v2560
    %v2786 = vsel %vm2780, %v2779, 0.0
    %v2787 = vadd.f32 %v2785, %v2786
    %s2788 = sld [smem:[#allocation2 + $0xc]]
    %v2789 = vstv %s2788
    %v2790 = vsel %vm24, %v2789, 0.0
    %s2791 = sld [smem:[#allocation2 + $0x8c]]
    %v2792 = vstv %s2791
    %v2793 = vsel %vm27, %v2792, %v2790
    %s2794 = sld [smem:[#allocation2 + $0x10c]]
    %v2795 = vstv %s2794
    %v2796 = vsel %vm30, %v2795, %v2793
    %s2797 = sld [smem:[#allocation2 + $0x18c]]
    %v2798 = vstv %s2797
    %v2799 = vsel %vm33, %v2798, %v2796
    %v2800 = vand.u32 2147483647, %v2799
    %vm2801 = vcmp.le.f32.partialorder %v2800, 0.7853982
    %vm2802 = vcmp.lt.s32.totalorder %v2799, 0
    %v2803 = vand.u32 %v2799, 2139095040
    %v2804 = vshrl.u32 %v2803, 23
    %v2805 = vsub.s32 %v2804, 127
    %v2806 = vand.u32 2147483647, %v2799
    %v2807 = vand.u32 %v2806, 8388607
    %v2808 = vor.u32 %v2807, 8388608
    %v2809 = vsub.s32 0, %v2808
    %v2810 = vadd.s32 %v2805, 1
    %vm2811 = vcmp.gt.s32.totalorder %v2810, 0
    %v2812 = vsel %vm2811, %v2810, 0
    %v2813 = vshrl.u32 %v2812, 5
    %v2814 = vand.u32 %v2812, 31
    %v2815 = vsub.s32 32, %v2814
    %v2816 = vshrl.u32 683565275, %v2815
    %v2817 = vshll.u32 683565275, %v2814
    %v2818 = vshrl.u32 2475754826, %v2815
    %v2819 = vor.u32 %v2817, %v2818
    %v2820 = vshll.u32 2475754826, %v2814
    %v2821 = vshrl.u32 2131351028, %v2815
    %v2822 = vor.u32 %v2820, %v2821
    %v2823 = vshll.u32 2131351028, %v2814
    %v2824 = vshrl.u32 2102212464, %v2815
    %v2825 = vor.u32 %v2823, %v2824
    %v2826 = vshll.u32 2102212464, %v2814
    %v2827 = vshrl.u32 920167782, %v2815
    %v2828 = vor.u32 %v2826, %v2827
    %v2829 = vshll.u32 920167782, %v2814
    %v2830 = vshrl.u32 1326507024, %v2815
    %v2831 = vor.u32 %v2829, %v2830
    %vm2832 = vcmp.lt.s32.totalorder %v2813, 1
    %vm2833 = vcmp.lt.s32.totalorder %v2813, 2
    %vm2834 = vcmp.lt.s32.totalorder %v2813, 3
    %vm2835 = vcmp.lt.s32.totalorder %v2813, 4
    %v2836 = vsel %vm2832, %v2816, %v2819
    %v2837 = vsel %vm2835, %v2825, 2102212464
    %v2838 = vsel %vm2834, %v2822, %v2837
    %v2839 = vsel %vm2833, %v2836, %v2838
    %v2840 = vsel %vm2832, %v2819, %v2822
    %v2841 = vsel %vm2835, %v2828, 920167782
    %v2842 = vsel %vm2834, %v2825, %v2841
    %v2843 = vsel %vm2833, %v2840, %v2842
    %v2844 = vsel %vm2832, %v2822, %v2825
    %v2845 = vsel %vm2835, %v2831, 1326507024
    %v2846 = vsel %vm2834, %v2828, %v2845
    %v2847 = vsel %vm2833, %v2844, %v2846
    %v2848 = vshll.u32 %v2808, 8
    %v2849 = vmul.u32.u64.compose %v2848, %v2847
    %v2850 = vextract.low.u32 %v2849
    %v2851 = vextract.high.u32 %v2849
    %v2852 = vmul.u32.u64.compose %v2848, %v2843
    %v2853 = vextract.low.u32 %v2852
    %v2854 = vextract.high.u32 %v2852
    %v2855 = vmul.u32 %v2848, %v2839
    %v2856 = vadd.s32 %v2851, %v2853
    %vm2857 = vc.u32 %v2851, %v2853
    %v2858 = vadd.s32 %v2854, 1
    %v2859 = vsel %vm2857, %v2858, %v2854
    %v2860 = vadd.s32 %v2855, %v2859
    %v2861 = vadd.s32 %v2860, 536870912
    %v2862 = vshrl.u32 %v2861, 30
    %v2863 = vshll.u32 %v2862, 30
    %v2864 = vsub.s32 %v2860, %v2863
    %vm2865 = vcmp.lt.s32.totalorder %v2864, 0
    %v2866 = vsub.s32 0, %v2864
    %v2867 = vsel %vm2865, %v2866, %v2864
    %v2868 = vclz %v2867
    %v2869 = vsub.s32 %v2868, 2
    %vm2870 = vcmp.gt.s32.totalorder 0, %v2869
    %v2871 = vsel %vm2870, 0, %v2869
    %v2872 = vsub.s32 32, %v2871
    %v2873 = vshll.u32 %v2864, %v2871
    %v2874 = vshrl.u32 %v2856, %v2872
    %v2875 = vor.u32 %v2873, %v2874
    %v2876 = vsub.s32 4294967266, %v2871
    %v2877 = vadd.s32 %v2876, 127
    %v2878 = vshll.u32 %v2877, 23
    %v2879 = vor.u32 4788187, %v2878
    %v2880 = vand.u32 2147483647, %v2879
    %v2882 = vcvt.s32.f32 %v2875
    %v2883 = vmul.f32 %v2882, %v2880
    %v2884 = vxor.u32 %v2883, 2147483648
    %v2885 = vsel %vm2802, %v2884, %v2883
    %v2886 = vsub.s32 4, %v2862
    %v2887 = vsel %vm2802, %v2886, %v2862
    %v2888 = vsel %vm2801, %v2799, %v2885
    %v2889 = vsel %vm2801, 0, %v2887
    %v2890 = vcosq.f32.pop %v2888
    %v2891 = vsinq.f32.pop %v2888
    %vm2892 = vweird.f32 %v2799
    %v2893 = vand.u32 %v2889, 3
    %vm2894 = vcmp.lt.s32.totalorder %v2893, 2
    %vm2895 = vcmp.eq.s32.totalorder %v2893, 0
    %v2896 = vxor.u32 %v2891, 2147483648
    %v2897 = vsel %vm2895, %v2890, %v2896
    %vm2898 = vcmp.eq.s32.totalorder %v2893, 2
    %v2899 = vxor.u32 %v2890, 2147483648
    %v2900 = vsel %vm2898, %v2899, %v2891
    %v2901 = vsel %vm2894, %v2897, %v2900
    %v2902 = vsel %vm2892, nan, %v2901
    %v2903 = vand.u32 2147483647, %v2799
    %vm2904 = vcmp.le.f32.partialorder %v2903, 0.7853982
    %vm2905 = vcmp.lt.s32.totalorder %v2799, 0
    %v2906 = vand.u32 %v2799, 2139095040
    %v2907 = vshrl.u32 %v2906, 23
    %v2908 = vsub.s32 %v2907, 127
    %v2909 = vand.u32 2147483647, %v2799
    %v2910 = vand.u32 %v2909, 8388607
    %v2911 = vor.u32 %v2910, 8388608
    %v2912 = vsub.s32 0, %v2911
    %v2913 = vadd.s32 %v2908, 1
    %vm2914 = vcmp.gt.s32.totalorder %v2913, 0
    %v2915 = vsel %vm2914, %v2913, 0
    %v2916 = vshrl.u32 %v2915, 5
    %v2917 = vand.u32 %v2915, 31
    %v2918 = vsub.s32 32, %v2917
    %v2919 = vshrl.u32 683565275, %v2918
    %v2920 = vshll.u32 683565275, %v2917
    %v2921 = vshrl.u32 2475754826, %v2918
    %v2922 = vor.u32 %v2920, %v2921
    %v2923 = vshll.u32 2475754826, %v2917
    %v2924 = vshrl.u32 2131351028, %v2918
    %v2925 = vor.u32 %v2923, %v2924
    %v2926 = vshll.u32 2131351028, %v2917
    %v2927 = vshrl.u32 2102212464, %v2918
    %v2928 = vor.u32 %v2926, %v2927
    %v2929 = vshll.u32 2102212464, %v2917
    %v2930 = vshrl.u32 920167782, %v2918
    %v2931 = vor.u32 %v2929, %v2930
    %v2932 = vshll.u32 920167782, %v2917
    %v2933 = vshrl.u32 1326507024, %v2918
    %v2934 = vor.u32 %v2932, %v2933
    %vm2935 = vcmp.lt.s32.totalorder %v2916, 1
    %vm2936 = vcmp.lt.s32.totalorder %v2916, 2
    %vm2937 = vcmp.lt.s32.totalorder %v2916, 3
    %vm2938 = vcmp.lt.s32.totalorder %v2916, 4
    %v2939 = vsel %vm2935, %v2919, %v2922
    %v2940 = vsel %vm2938, %v2928, 2102212464
    %v2941 = vsel %vm2937, %v2925, %v2940
    %v2942 = vsel %vm2936, %v2939, %v2941
    %v2943 = vsel %vm2935, %v2922, %v2925
    %v2944 = vsel %vm2938, %v2931, 920167782
    %v2945 = vsel %vm2937, %v2928, %v2944
    %v2946 = vsel %vm2936, %v2943, %v2945
    %v2947 = vsel %vm2935, %v2925, %v2928
    %v2948 = vsel %vm2938, %v2934, 1326507024
    %v2949 = vsel %vm2937, %v2931, %v2948
    %v2950 = vsel %vm2936, %v2947, %v2949
    %v2951 = vshll.u32 %v2911, 8
    %v2952 = vmul.u32.u64.compose %v2951, %v2950
    %v2953 = vextract.low.u32 %v2952
    %v2954 = vextract.high.u32 %v2952
    %v2955 = vmul.u32.u64.compose %v2951, %v2946
    %v2956 = vextract.low.u32 %v2955
    %v2957 = vextract.high.u32 %v2955
    %v2958 = vmul.u32 %v2951, %v2942
    %v2959 = vadd.s32 %v2954, %v2956
    %vm2960 = vc.u32 %v2954, %v2956
    %v2961 = vadd.s32 %v2957, 1
    %v2962 = vsel %vm2960, %v2961, %v2957
    %v2963 = vadd.s32 %v2958, %v2962
    %v2964 = vadd.s32 %v2963, 536870912
    %v2965 = vshrl.u32 %v2964, 30
    %v2966 = vshll.u32 %v2965, 30
    %v2967 = vsub.s32 %v2963, %v2966
    %vm2968 = vcmp.lt.s32.totalorder %v2967, 0
    %v2969 = vsub.s32 0, %v2967
    %v2970 = vsel %vm2968, %v2969, %v2967
    %v2971 = vclz %v2970
    %v2972 = vsub.s32 %v2971, 2
    %vm2973 = vcmp.gt.s32.totalorder 0, %v2972
    %v2974 = vsel %vm2973, 0, %v2972
    %v2975 = vsub.s32 32, %v2974
    %v2976 = vshll.u32 %v2967, %v2974
    %v2977 = vshrl.u32 %v2959, %v2975
    %v2978 = vor.u32 %v2976, %v2977
    %v2979 = vsub.s32 4294967266, %v2974
    %v2980 = vadd.s32 %v2979, 127
    %v2981 = vshll.u32 %v2980, 23
    %v2982 = vor.u32 4788187, %v2981
    %v2983 = vand.u32 2147483647, %v2982
    %v2985 = vcvt.s32.f32 %v2978
    %v2986 = vmul.f32 %v2985, %v2983
    %v2987 = vxor.u32 %v2986, 2147483648
    %v2988 = vsel %vm2905, %v2987, %v2986
    %v2989 = vsub.s32 4, %v2965
    %v2990 = vsel %vm2905, %v2989, %v2965
    %v2991 = vsel %vm2904, %v2799, %v2988
    %v2992 = vsel %vm2904, 0, %v2990
    %v2993 = vcosq.f32.pop %v2991
    %v2994 = vsinq.f32.pop %v2991
    %vm2995 = vweird.f32 %v2799
    %v2996 = vadd.s32 %v2992, 3
    %v2997 = vand.u32 %v2996, 3
    %vm2998 = vcmp.lt.s32.totalorder %v2997, 2
    %vm2999 = vcmp.eq.s32.totalorder %v2997, 0
    %v3000 = vxor.u32 %v2994, 2147483648
    %v3001 = vsel %vm2999, %v2993, %v3000
    %vm3002 = vcmp.eq.s32.totalorder %v2997, 2
    %v3003 = vxor.u32 %v2993, 2147483648
    %v3004 = vsel %vm3002, %v3003, %v2994
    %v3005 = vsel %vm2998, %v3001, %v3004
    %v3006 = vsel %vm2995, nan, %v3005
    %vm3007 = vcmp.eq.s32.totalorder %v39, 13
    %v3008 = vsel %vm3007, %v2902, 0.0
    %v3009 = vmul.f32 %v3006, %v2787
    %v3010 = vsub.f32 %v3008, %v3009
    %3011 = vst [vmem:[#allocation5 + $0xd] sm:$0x1] %v3010
    %v3012 = vmul.f32 %v2902, %v2787
    %v3013 = vsel %vm3007, %v3006, 0.0
    %v3014 = vadd.f32 %v3012, %v3013
    %s3015 = sld [smem:[#allocation2 + $0xd]]
    %v3016 = vstv %s3015
    %v3017 = vsel %vm24, %v3016, 0.0
    %s3018 = sld [smem:[#allocation2 + $0x8d]]
    %v3019 = vstv %s3018
    %v3020 = vsel %vm27, %v3019, %v3017
    %s3021 = sld [smem:[#allocation2 + $0x10d]]
    %v3022 = vstv %s3021
    %v3023 = vsel %vm30, %v3022, %v3020
    %s3024 = sld [smem:[#allocation2 + $0x18d]]
    %v3025 = vstv %s3024
    %v3026 = vsel %vm33, %v3025, %v3023
    %v3027 = vand.u32 2147483647, %v3026
    %vm3028 = vcmp.le.f32.partialorder %v3027, 0.7853982
    %vm3029 = vcmp.lt.s32.totalorder %v3026, 0
    %v3030 = vand.u32 %v3026, 2139095040
    %v3031 = vshrl.u32 %v3030, 23
    %v3032 = vsub.s32 %v3031, 127
    %v3033 = vand.u32 2147483647, %v3026
    %v3034 = vand.u32 %v3033, 8388607
    %v3035 = vor.u32 %v3034, 8388608
    %v3036 = vsub.s32 0, %v3035
    %v3037 = vadd.s32 %v3032, 1
    %vm3038 = vcmp.gt.s32.totalorder %v3037, 0
    %v3039 = vsel %vm3038, %v3037, 0
    %v3040 = vshrl.u32 %v3039, 5
    %v3041 = vand.u32 %v3039, 31
    %v3042 = vsub.s32 32, %v3041
    %v3043 = vshrl.u32 683565275, %v3042
    %v3044 = vshll.u32 683565275, %v3041
    %v3045 = vshrl.u32 2475754826, %v3042
    %v3046 = vor.u32 %v3044, %v3045
    %v3047 = vshll.u32 2475754826, %v3041
    %v3048 = vshrl.u32 2131351028, %v3042
    %v3049 = vor.u32 %v3047, %v3048
    %v3050 = vshll.u32 2131351028, %v3041
    %v3051 = vshrl.u32 2102212464, %v3042
    %v3052 = vor.u32 %v3050, %v3051
    %v3053 = vshll.u32 2102212464, %v3041
    %v3054 = vshrl.u32 920167782, %v3042
    %v3055 = vor.u32 %v3053, %v3054
    %v3056 = vshll.u32 920167782, %v3041
    %v3057 = vshrl.u32 1326507024, %v3042
    %v3058 = vor.u32 %v3056, %v3057
    %vm3059 = vcmp.lt.s32.totalorder %v3040, 1
    %vm3060 = vcmp.lt.s32.totalorder %v3040, 2
    %vm3061 = vcmp.lt.s32.totalorder %v3040, 3
    %vm3062 = vcmp.lt.s32.totalorder %v3040, 4
    %v3063 = vsel %vm3059, %v3043, %v3046
    %v3064 = vsel %vm3062, %v3052, 2102212464
    %v3065 = vsel %vm3061, %v3049, %v3064
    %v3066 = vsel %vm3060, %v3063, %v3065
    %v3067 = vsel %vm3059, %v3046, %v3049
    %v3068 = vsel %vm3062, %v3055, 920167782
    %v3069 = vsel %vm3061, %v3052, %v3068
    %v3070 = vsel %vm3060, %v3067, %v3069
    %v3071 = vsel %vm3059, %v3049, %v3052
    %v3072 = vsel %vm3062, %v3058, 1326507024
    %v3073 = vsel %vm3061, %v3055, %v3072
    %v3074 = vsel %vm3060, %v3071, %v3073
    %v3075 = vshll.u32 %v3035, 8
    %v3076 = vmul.u32.u64.compose %v3075, %v3074
    %v3077 = vextract.low.u32 %v3076
    %v3078 = vextract.high.u32 %v3076
    %v3079 = vmul.u32.u64.compose %v3075, %v3070
    %v3080 = vextract.low.u32 %v3079
    %v3081 = vextract.high.u32 %v3079
    %v3082 = vmul.u32 %v3075, %v3066
    %v3083 = vadd.s32 %v3078, %v3080
    %vm3084 = vc.u32 %v3078, %v3080
    %v3085 = vadd.s32 %v3081, 1
    %v3086 = vsel %vm3084, %v3085, %v3081
    %v3087 = vadd.s32 %v3082, %v3086
    %v3088 = vadd.s32 %v3087, 536870912
    %v3089 = vshrl.u32 %v3088, 30
    %v3090 = vshll.u32 %v3089, 30
    %v3091 = vsub.s32 %v3087, %v3090
    %vm3092 = vcmp.lt.s32.totalorder %v3091, 0
    %v3093 = vsub.s32 0, %v3091
    %v3094 = vsel %vm3092, %v3093, %v3091
    %v3095 = vclz %v3094
    %v3096 = vsub.s32 %v3095, 2
    %vm3097 = vcmp.gt.s32.totalorder 0, %v3096
    %v3098 = vsel %vm3097, 0, %v3096
    %v3099 = vsub.s32 32, %v3098
    %v3100 = vshll.u32 %v3091, %v3098
    %v3101 = vshrl.u32 %v3083, %v3099
    %v3102 = vor.u32 %v3100, %v3101
    %v3103 = vsub.s32 4294967266, %v3098
    %v3104 = vadd.s32 %v3103, 127
    %v3105 = vshll.u32 %v3104, 23
    %v3106 = vor.u32 4788187, %v3105
    %v3107 = vand.u32 2147483647, %v3106
    %v3109 = vcvt.s32.f32 %v3102
    %v3110 = vmul.f32 %v3109, %v3107
    %v3111 = vxor.u32 %v3110, 2147483648
    %v3112 = vsel %vm3029, %v3111, %v3110
    %v3113 = vsub.s32 4, %v3089
    %v3114 = vsel %vm3029, %v3113, %v3089
    %v3115 = vsel %vm3028, %v3026, %v3112
    %v3116 = vsel %vm3028, 0, %v3114
    %v3117 = vcosq.f32.pop %v3115
    %v3118 = vsinq.f32.pop %v3115
    %vm3119 = vweird.f32 %v3026
    %v3120 = vand.u32 %v3116, 3
    %vm3121 = vcmp.lt.s32.totalorder %v3120, 2
    %vm3122 = vcmp.eq.s32.totalorder %v3120, 0
    %v3123 = vxor.u32 %v3118, 2147483648
    %v3124 = vsel %vm3122, %v3117, %v3123
    %vm3125 = vcmp.eq.s32.totalorder %v3120, 2
    %v3126 = vxor.u32 %v3117, 2147483648
    %v3127 = vsel %vm3125, %v3126, %v3118
    %v3128 = vsel %vm3121, %v3124, %v3127
    %v3129 = vsel %vm3119, nan, %v3128
    %v3130 = vand.u32 2147483647, %v3026
    %vm3131 = vcmp.le.f32.partialorder %v3130, 0.7853982
    %vm3132 = vcmp.lt.s32.totalorder %v3026, 0
    %v3133 = vand.u32 %v3026, 2139095040
    %v3134 = vshrl.u32 %v3133, 23
    %v3135 = vsub.s32 %v3134, 127
    %v3136 = vand.u32 2147483647, %v3026
    %v3137 = vand.u32 %v3136, 8388607
    %v3138 = vor.u32 %v3137, 8388608
    %v3139 = vsub.s32 0, %v3138
    %v3140 = vadd.s32 %v3135, 1
    %vm3141 = vcmp.gt.s32.totalorder %v3140, 0
    %v3142 = vsel %vm3141, %v3140, 0
    %v3143 = vshrl.u32 %v3142, 5
    %v3144 = vand.u32 %v3142, 31
    %v3145 = vsub.s32 32, %v3144
    %v3146 = vshrl.u32 683565275, %v3145
    %v3147 = vshll.u32 683565275, %v3144
    %v3148 = vshrl.u32 2475754826, %v3145
    %v3149 = vor.u32 %v3147, %v3148
    %v3150 = vshll.u32 2475754826, %v3144
    %v3151 = vshrl.u32 2131351028, %v3145
    %v3152 = vor.u32 %v3150, %v3151
    %v3153 = vshll.u32 2131351028, %v3144
    %v3154 = vshrl.u32 2102212464, %v3145
    %v3155 = vor.u32 %v3153, %v3154
    %v3156 = vshll.u32 2102212464, %v3144
    %v3157 = vshrl.u32 920167782, %v3145
    %v3158 = vor.u32 %v3156, %v3157
    %v3159 = vshll.u32 920167782, %v3144
    %v3160 = vshrl.u32 1326507024, %v3145
    %v3161 = vor.u32 %v3159, %v3160
    %vm3162 = vcmp.lt.s32.totalorder %v3143, 1
    %vm3163 = vcmp.lt.s32.totalorder %v3143, 2
    %vm3164 = vcmp.lt.s32.totalorder %v3143, 3
    %vm3165 = vcmp.lt.s32.totalorder %v3143, 4
    %v3166 = vsel %vm3162, %v3146, %v3149
    %v3167 = vsel %vm3165, %v3155, 2102212464
    %v3168 = vsel %vm3164, %v3152, %v3167
    %v3169 = vsel %vm3163, %v3166, %v3168
    %v3170 = vsel %vm3162, %v3149, %v3152
    %v3171 = vsel %vm3165, %v3158, 920167782
    %v3172 = vsel %vm3164, %v3155, %v3171
    %v3173 = vsel %vm3163, %v3170, %v3172
    %v3174 = vsel %vm3162, %v3152, %v3155
    %v3175 = vsel %vm3165, %v3161, 1326507024
    %v3176 = vsel %vm3164, %v3158, %v3175
    %v3177 = vsel %vm3163, %v3174, %v3176
    %v3178 = vshll.u32 %v3138, 8
    %v3179 = vmul.u32.u64.compose %v3178, %v3177
    %v3180 = vextract.low.u32 %v3179
    %v3181 = vextract.high.u32 %v3179
    %v3182 = vmul.u32.u64.compose %v3178, %v3173
    %v3183 = vextract.low.u32 %v3182
    %v3184 = vextract.high.u32 %v3182
    %v3185 = vmul.u32 %v3178, %v3169
    %v3186 = vadd.s32 %v3181, %v3183
    %vm3187 = vc.u32 %v3181, %v3183
    %v3188 = vadd.s32 %v3184, 1
    %v3189 = vsel %vm3187, %v3188, %v3184
    %v3190 = vadd.s32 %v3185, %v3189
    %v3191 = vadd.s32 %v3190, 536870912
    %v3192 = vshrl.u32 %v3191, 30
    %v3193 = vshll.u32 %v3192, 30
    %v3194 = vsub.s32 %v3190, %v3193
    %vm3195 = vcmp.lt.s32.totalorder %v3194, 0
    %v3196 = vsub.s32 0, %v3194
    %v3197 = vsel %vm3195, %v3196, %v3194
    %v3198 = vclz %v3197
    %v3199 = vsub.s32 %v3198, 2
    %vm3200 = vcmp.gt.s32.totalorder 0, %v3199
    %v3201 = vsel %vm3200, 0, %v3199
    %v3202 = vsub.s32 32, %v3201
    %v3203 = vshll.u32 %v3194, %v3201
    %v3204 = vshrl.u32 %v3186, %v3202
    %v3205 = vor.u32 %v3203, %v3204
    %v3206 = vsub.s32 4294967266, %v3201
    %v3207 = vadd.s32 %v3206, 127
    %v3208 = vshll.u32 %v3207, 23
    %v3209 = vor.u32 4788187, %v3208
    %v3210 = vand.u32 2147483647, %v3209
    %v3212 = vcvt.s32.f32 %v3205
    %v3213 = vmul.f32 %v3212, %v3210
    %v3214 = vxor.u32 %v3213, 2147483648
    %v3215 = vsel %vm3132, %v3214, %v3213
    %v3216 = vsub.s32 4, %v3192
    %v3217 = vsel %vm3132, %v3216, %v3192
    %v3218 = vsel %vm3131, %v3026, %v3215
    %v3219 = vsel %vm3131, 0, %v3217
    %v3220 = vcosq.f32.pop %v3218
    %v3221 = vsinq.f32.pop %v3218
    %vm3222 = vweird.f32 %v3026
    %v3223 = vadd.s32 %v3219, 3
    %v3224 = vand.u32 %v3223, 3
    %vm3225 = vcmp.lt.s32.totalorder %v3224, 2
    %vm3226 = vcmp.eq.s32.totalorder %v3224, 0
    %v3227 = vxor.u32 %v3221, 2147483648
    %v3228 = vsel %vm3226, %v3220, %v3227
    %vm3229 = vcmp.eq.s32.totalorder %v3224, 2
    %v3230 = vxor.u32 %v3220, 2147483648
    %v3231 = vsel %vm3229, %v3230, %v3221
    %v3232 = vsel %vm3225, %v3228, %v3231
    %v3233 = vsel %vm3222, nan, %v3232
    %vm3234 = vcmp.eq.s32.totalorder %v39, 14
    %v3235 = vsel %vm3234, %v3129, 0.0
    %v3236 = vmul.f32 %v3233, %v3014
    %v3237 = vsub.f32 %v3235, %v3236
    %3238 = vst [vmem:[#allocation5 + $0xe] sm:$0x1] %v3237
    %v3239 = vmul.f32 %v3129, %v3014
    %v3240 = vsel %vm3234, %v3233, 0.0
    %v3241 = vadd.f32 %v3239, %v3240
    %s3242 = sld [smem:[#allocation2 + $0xe]]
    %v3243 = vstv %s3242
    %v3244 = vsel %vm24, %v3243, 0.0
    %s3245 = sld [smem:[#allocation2 + $0x8e]]
    %v3246 = vstv %s3245
    %v3247 = vsel %vm27, %v3246, %v3244
    %s3248 = sld [smem:[#allocation2 + $0x10e]]
    %v3249 = vstv %s3248
    %v3250 = vsel %vm30, %v3249, %v3247
    %s3251 = sld [smem:[#allocation2 + $0x18e]]
    %v3252 = vstv %s3251
    %v3253 = vsel %vm33, %v3252, %v3250
    %v3254 = vand.u32 2147483647, %v3253
    %vm3255 = vcmp.le.f32.partialorder %v3254, 0.7853982
    %vm3256 = vcmp.lt.s32.totalorder %v3253, 0
    %v3257 = vand.u32 %v3253, 2139095040
    %v3258 = vshrl.u32 %v3257, 23
    %v3259 = vsub.s32 %v3258, 127
    %v3260 = vand.u32 2147483647, %v3253
    %v3261 = vand.u32 %v3260, 8388607
    %v3262 = vor.u32 %v3261, 8388608
    %v3263 = vsub.s32 0, %v3262
    %v3264 = vadd.s32 %v3259, 1
    %vm3265 = vcmp.gt.s32.totalorder %v3264, 0
    %v3266 = vsel %vm3265, %v3264, 0
    %v3267 = vshrl.u32 %v3266, 5
    %v3268 = vand.u32 %v3266, 31
    %v3269 = vsub.s32 32, %v3268
    %v3270 = vshrl.u32 683565275, %v3269
    %v3271 = vshll.u32 683565275, %v3268
    %v3272 = vshrl.u32 2475754826, %v3269
    %v3273 = vor.u32 %v3271, %v3272
    %v3274 = vshll.u32 2475754826, %v3268
    %v3275 = vshrl.u32 2131351028, %v3269
    %v3276 = vor.u32 %v3274, %v3275
    %v3277 = vshll.u32 2131351028, %v3268
    %v3278 = vshrl.u32 2102212464, %v3269
    %v3279 = vor.u32 %v3277, %v3278
    %v3280 = vshll.u32 2102212464, %v3268
    %v3281 = vshrl.u32 920167782, %v3269
    %v3282 = vor.u32 %v3280, %v3281
    %v3283 = vshll.u32 920167782, %v3268
    %v3284 = vshrl.u32 1326507024, %v3269
    %v3285 = vor.u32 %v3283, %v3284
    %vm3286 = vcmp.lt.s32.totalorder %v3267, 1
    %vm3287 = vcmp.lt.s32.totalorder %v3267, 2
    %vm3288 = vcmp.lt.s32.totalorder %v3267, 3
    %vm3289 = vcmp.lt.s32.totalorder %v3267, 4
    %v3290 = vsel %vm3286, %v3270, %v3273
    %v3291 = vsel %vm3289, %v3279, 2102212464
    %v3292 = vsel %vm3288, %v3276, %v3291
    %v3293 = vsel %vm3287, %v3290, %v3292
    %v3294 = vsel %vm3286, %v3273, %v3276
    %v3295 = vsel %vm3289, %v3282, 920167782
    %v3296 = vsel %vm3288, %v3279, %v3295
    %v3297 = vsel %vm3287, %v3294, %v3296
    %v3298 = vsel %vm3286, %v3276, %v3279
    %v3299 = vsel %vm3289, %v3285, 1326507024
    %v3300 = vsel %vm3288, %v3282, %v3299
    %v3301 = vsel %vm3287, %v3298, %v3300
    %v3302 = vshll.u32 %v3262, 8
    %v3303 = vmul.u32.u64.compose %v3302, %v3301
    %v3304 = vextract.low.u32 %v3303
    %v3305 = vextract.high.u32 %v3303
    %v3306 = vmul.u32.u64.compose %v3302, %v3297
    %v3307 = vextract.low.u32 %v3306
    %v3308 = vextract.high.u32 %v3306
    %v3309 = vmul.u32 %v3302, %v3293
    %v3310 = vadd.s32 %v3305, %v3307
    %vm3311 = vc.u32 %v3305, %v3307
    %v3312 = vadd.s32 %v3308, 1
    %v3313 = vsel %vm3311, %v3312, %v3308
    %v3314 = vadd.s32 %v3309, %v3313
    %v3315 = vadd.s32 %v3314, 536870912
    %v3316 = vshrl.u32 %v3315, 30
    %v3317 = vshll.u32 %v3316, 30
    %v3318 = vsub.s32 %v3314, %v3317
    %vm3319 = vcmp.lt.s32.totalorder %v3318, 0
    %v3320 = vsub.s32 0, %v3318
    %v3321 = vsel %vm3319, %v3320, %v3318
    %v3322 = vclz %v3321
    %v3323 = vsub.s32 %v3322, 2
    %vm3324 = vcmp.gt.s32.totalorder 0, %v3323
    %v3325 = vsel %vm3324, 0, %v3323
    %v3326 = vsub.s32 32, %v3325
    %v3327 = vshll.u32 %v3318, %v3325
    %v3328 = vshrl.u32 %v3310, %v3326
    %v3329 = vor.u32 %v3327, %v3328
    %v3330 = vsub.s32 4294967266, %v3325
    %v3331 = vadd.s32 %v3330, 127
    %v3332 = vshll.u32 %v3331, 23
    %v3333 = vor.u32 4788187, %v3332
    %v3334 = vand.u32 2147483647, %v3333
    %v3336 = vcvt.s32.f32 %v3329
    %v3337 = vmul.f32 %v3336, %v3334
    %v3338 = vxor.u32 %v3337, 2147483648
    %v3339 = vsel %vm3256, %v3338, %v3337
    %v3340 = vsub.s32 4, %v3316
    %v3341 = vsel %vm3256, %v3340, %v3316
    %v3342 = vsel %vm3255, %v3253, %v3339
    %v3343 = vsel %vm3255, 0, %v3341
    %v3344 = vcosq.f32.pop %v3342
    %v3345 = vsinq.f32.pop %v3342
    %vm3346 = vweird.f32 %v3253
    %v3347 = vand.u32 %v3343, 3
    %vm3348 = vcmp.lt.s32.totalorder %v3347, 2
    %vm3349 = vcmp.eq.s32.totalorder %v3347, 0
    %v3350 = vxor.u32 %v3345, 2147483648
    %v3351 = vsel %vm3349, %v3344, %v3350
    %vm3352 = vcmp.eq.s32.totalorder %v3347, 2
    %v3353 = vxor.u32 %v3344, 2147483648
    %v3354 = vsel %vm3352, %v3353, %v3345
    %v3355 = vsel %vm3348, %v3351, %v3354
    %v3356 = vsel %vm3346, nan, %v3355
    %v3357 = vand.u32 2147483647, %v3253
    %vm3358 = vcmp.le.f32.partialorder %v3357, 0.7853982
    %vm3359 = vcmp.lt.s32.totalorder %v3253, 0
    %v3360 = vand.u32 %v3253, 2139095040
    %v3361 = vshrl.u32 %v3360, 23
    %v3362 = vsub.s32 %v3361, 127
    %v3363 = vand.u32 2147483647, %v3253
    %v3364 = vand.u32 %v3363, 8388607
    %v3365 = vor.u32 %v3364, 8388608
    %v3366 = vsub.s32 0, %v3365
    %v3367 = vadd.s32 %v3362, 1
    %vm3368 = vcmp.gt.s32.totalorder %v3367, 0
    %v3369 = vsel %vm3368, %v3367, 0
    %v3370 = vshrl.u32 %v3369, 5
    %v3371 = vand.u32 %v3369, 31
    %v3372 = vsub.s32 32, %v3371
    %v3373 = vshrl.u32 683565275, %v3372
    %v3374 = vshll.u32 683565275, %v3371
    %v3375 = vshrl.u32 2475754826, %v3372
    %v3376 = vor.u32 %v3374, %v3375
    %v3377 = vshll.u32 2475754826, %v3371
    %v3378 = vshrl.u32 2131351028, %v3372
    %v3379 = vor.u32 %v3377, %v3378
    %v3380 = vshll.u32 2131351028, %v3371
    %v3381 = vshrl.u32 2102212464, %v3372
    %v3382 = vor.u32 %v3380, %v3381
    %v3383 = vshll.u32 2102212464, %v3371
    %v3384 = vshrl.u32 920167782, %v3372
    %v3385 = vor.u32 %v3383, %v3384
    %v3386 = vshll.u32 920167782, %v3371
    %v3387 = vshrl.u32 1326507024, %v3372
    %v3388 = vor.u32 %v3386, %v3387
    %vm3389 = vcmp.lt.s32.totalorder %v3370, 1
    %vm3390 = vcmp.lt.s32.totalorder %v3370, 2
    %vm3391 = vcmp.lt.s32.totalorder %v3370, 3
    %vm3392 = vcmp.lt.s32.totalorder %v3370, 4
    %v3393 = vsel %vm3389, %v3373, %v3376
    %v3394 = vsel %vm3392, %v3382, 2102212464
    %v3395 = vsel %vm3391, %v3379, %v3394
    %v3396 = vsel %vm3390, %v3393, %v3395
    %v3397 = vsel %vm3389, %v3376, %v3379
    %v3398 = vsel %vm3392, %v3385, 920167782
    %v3399 = vsel %vm3391, %v3382, %v3398
    %v3400 = vsel %vm3390, %v3397, %v3399
    %v3401 = vsel %vm3389, %v3379, %v3382
    %v3402 = vsel %vm3392, %v3388, 1326507024
    %v3403 = vsel %vm3391, %v3385, %v3402
    %v3404 = vsel %vm3390, %v3401, %v3403
    %v3405 = vshll.u32 %v3365, 8
    %v3406 = vmul.u32.u64.compose %v3405, %v3404
    %v3407 = vextract.low.u32 %v3406
    %v3408 = vextract.high.u32 %v3406
    %v3409 = vmul.u32.u64.compose %v3405, %v3400
    %v3410 = vextract.low.u32 %v3409
    %v3411 = vextract.high.u32 %v3409
    %v3412 = vmul.u32 %v3405, %v3396
    %v3413 = vadd.s32 %v3408, %v3410
    %vm3414 = vc.u32 %v3408, %v3410
    %v3415 = vadd.s32 %v3411, 1
    %v3416 = vsel %vm3414, %v3415, %v3411
    %v3417 = vadd.s32 %v3412, %v3416
    %v3418 = vadd.s32 %v3417, 536870912
    %v3419 = vshrl.u32 %v3418, 30
    %v3420 = vshll.u32 %v3419, 30
    %v3421 = vsub.s32 %v3417, %v3420
    %vm3422 = vcmp.lt.s32.totalorder %v3421, 0
    %v3423 = vsub.s32 0, %v3421
    %v3424 = vsel %vm3422, %v3423, %v3421
    %v3425 = vclz %v3424
    %v3426 = vsub.s32 %v3425, 2
    %vm3427 = vcmp.gt.s32.totalorder 0, %v3426
    %v3428 = vsel %vm3427, 0, %v3426
    %v3429 = vsub.s32 32, %v3428
    %v3430 = vshll.u32 %v3421, %v3428
    %v3431 = vshrl.u32 %v3413, %v3429
    %v3432 = vor.u32 %v3430, %v3431
    %v3433 = vsub.s32 4294967266, %v3428
    %v3434 = vadd.s32 %v3433, 127
    %v3435 = vshll.u32 %v3434, 23
    %v3436 = vor.u32 4788187, %v3435
    %v3437 = vand.u32 2147483647, %v3436
    %v3439 = vcvt.s32.f32 %v3432
    %v3440 = vmul.f32 %v3439, %v3437
    %v3441 = vxor.u32 %v3440, 2147483648
    %v3442 = vsel %vm3359, %v3441, %v3440
    %v3443 = vsub.s32 4, %v3419
    %v3444 = vsel %vm3359, %v3443, %v3419
    %v3445 = vsel %vm3358, %v3253, %v3442
    %v3446 = vsel %vm3358, 0, %v3444
    %v3447 = vcosq.f32.pop %v3445
    %v3448 = vsinq.f32.pop %v3445
    %vm3449 = vweird.f32 %v3253
    %v3450 = vadd.s32 %v3446, 3
    %v3451 = vand.u32 %v3450, 3
    %vm3452 = vcmp.lt.s32.totalorder %v3451, 2
    %vm3453 = vcmp.eq.s32.totalorder %v3451, 0
    %v3454 = vxor.u32 %v3448, 2147483648
    %v3455 = vsel %vm3453, %v3447, %v3454
    %vm3456 = vcmp.eq.s32.totalorder %v3451, 2
    %v3457 = vxor.u32 %v3447, 2147483648
    %v3458 = vsel %vm3456, %v3457, %v3448
    %v3459 = vsel %vm3452, %v3455, %v3458
    %v3460 = vsel %vm3449, nan, %v3459
    %vm3461 = vcmp.eq.s32.totalorder %v39, 15
    %v3462 = vsel %vm3461, %v3356, 0.0
    %v3463 = vmul.f32 %v3460, %v3241
    %v3464 = vsub.f32 %v3462, %v3463
    %3465 = vst [vmem:[#allocation5 + $0xf] sm:$0x1] %v3464
    %v3466 = vmul.f32 %v3356, %v3241
    %v3467 = vsel %vm3461, %v3460, 0.0
    %v3468 = vadd.f32 %v3466, %v3467
    %s3469 = sld [smem:[#allocation2 + $0xf]]
    %v3470 = vstv %s3469
    %v3471 = vsel %vm24, %v3470, 0.0
    %s3472 = sld [smem:[#allocation2 + $0x8f]]
    %v3473 = vstv %s3472
    %v3474 = vsel %vm27, %v3473, %v3471
    %s3475 = sld [smem:[#allocation2 + $0x10f]]
    %v3476 = vstv %s3475
    %v3477 = vsel %vm30, %v3476, %v3474
    %s3478 = sld [smem:[#allocation2 + $0x18f]]
    %v3479 = vstv %s3478
    %v3480 = vsel %vm33, %v3479, %v3477
    %v3481 = vand.u32 2147483647, %v3480
    %vm3482 = vcmp.le.f32.partialorder %v3481, 0.7853982
    %vm3483 = vcmp.lt.s32.totalorder %v3480, 0
    %v3484 = vand.u32 %v3480, 2139095040
    %v3485 = vshrl.u32 %v3484, 23
    %v3486 = vsub.s32 %v3485, 127
    %v3487 = vand.u32 2147483647, %v3480
    %v3488 = vand.u32 %v3487, 8388607
    %v3489 = vor.u32 %v3488, 8388608
    %v3490 = vsub.s32 0, %v3489
    %v3491 = vadd.s32 %v3486, 1
    %vm3492 = vcmp.gt.s32.totalorder %v3491, 0
    %v3493 = vsel %vm3492, %v3491, 0
    %v3494 = vshrl.u32 %v3493, 5
    %v3495 = vand.u32 %v3493, 31
    %v3496 = vsub.s32 32, %v3495
    %v3497 = vshrl.u32 683565275, %v3496
    %v3498 = vshll.u32 683565275, %v3495
    %v3499 = vshrl.u32 2475754826, %v3496
    %v3500 = vor.u32 %v3498, %v3499
    %v3501 = vshll.u32 2475754826, %v3495
    %v3502 = vshrl.u32 2131351028, %v3496
    %v3503 = vor.u32 %v3501, %v3502
    %v3504 = vshll.u32 2131351028, %v3495
    %v3505 = vshrl.u32 2102212464, %v3496
    %v3506 = vor.u32 %v3504, %v3505
    %v3507 = vshll.u32 2102212464, %v3495
    %v3508 = vshrl.u32 920167782, %v3496
    %v3509 = vor.u32 %v3507, %v3508
    %v3510 = vshll.u32 920167782, %v3495
    %v3511 = vshrl.u32 1326507024, %v3496
    %v3512 = vor.u32 %v3510, %v3511
    %vm3513 = vcmp.lt.s32.totalorder %v3494, 1
    %vm3514 = vcmp.lt.s32.totalorder %v3494, 2
    %vm3515 = vcmp.lt.s32.totalorder %v3494, 3
    %vm3516 = vcmp.lt.s32.totalorder %v3494, 4
    %v3517 = vsel %vm3513, %v3497, %v3500
    %v3518 = vsel %vm3516, %v3506, 2102212464
    %v3519 = vsel %vm3515, %v3503, %v3518
    %v3520 = vsel %vm3514, %v3517, %v3519
    %v3521 = vsel %vm3513, %v3500, %v3503
    %v3522 = vsel %vm3516, %v3509, 920167782
    %v3523 = vsel %vm3515, %v3506, %v3522
    %v3524 = vsel %vm3514, %v3521, %v3523
    %v3525 = vsel %vm3513, %v3503, %v3506
    %v3526 = vsel %vm3516, %v3512, 1326507024
    %v3527 = vsel %vm3515, %v3509, %v3526
    %v3528 = vsel %vm3514, %v3525, %v3527
    %v3529 = vshll.u32 %v3489, 8
    %v3530 = vmul.u32.u64.compose %v3529, %v3528
    %v3531 = vextract.low.u32 %v3530
    %v3532 = vextract.high.u32 %v3530
    %v3533 = vmul.u32.u64.compose %v3529, %v3524
    %v3534 = vextract.low.u32 %v3533
    %v3535 = vextract.high.u32 %v3533
    %v3536 = vmul.u32 %v3529, %v3520
    %v3537 = vadd.s32 %v3532, %v3534
    %vm3538 = vc.u32 %v3532, %v3534
    %v3539 = vadd.s32 %v3535, 1
    %v3540 = vsel %vm3538, %v3539, %v3535
    %v3541 = vadd.s32 %v3536, %v3540
    %v3542 = vadd.s32 %v3541, 536870912
    %v3543 = vshrl.u32 %v3542, 30
    %v3544 = vshll.u32 %v3543, 30
    %v3545 = vsub.s32 %v3541, %v3544
    %vm3546 = vcmp.lt.s32.totalorder %v3545, 0
    %v3547 = vsub.s32 0, %v3545
    %v3548 = vsel %vm3546, %v3547, %v3545
    %v3549 = vclz %v3548
    %v3550 = vsub.s32 %v3549, 2
    %vm3551 = vcmp.gt.s32.totalorder 0, %v3550
    %v3552 = vsel %vm3551, 0, %v3550
    %v3553 = vsub.s32 32, %v3552
    %v3554 = vshll.u32 %v3545, %v3552
    %v3555 = vshrl.u32 %v3537, %v3553
    %v3556 = vor.u32 %v3554, %v3555
    %v3557 = vsub.s32 4294967266, %v3552
    %v3558 = vadd.s32 %v3557, 127
    %v3559 = vshll.u32 %v3558, 23
    %v3560 = vor.u32 4788187, %v3559
    %v3561 = vand.u32 2147483647, %v3560
    %v3563 = vcvt.s32.f32 %v3556
    %v3564 = vmul.f32 %v3563, %v3561
    %v3565 = vxor.u32 %v3564, 2147483648
    %v3566 = vsel %vm3483, %v3565, %v3564
    %v3567 = vsub.s32 4, %v3543
    %v3568 = vsel %vm3483, %v3567, %v3543
    %v3569 = vsel %vm3482, %v3480, %v3566
    %v3570 = vsel %vm3482, 0, %v3568
    %v3571 = vcosq.f32.pop %v3569
    %v3572 = vsinq.f32.pop %v3569
    %vm3573 = vweird.f32 %v3480
    %v3574 = vand.u32 %v3570, 3
    %vm3575 = vcmp.lt.s32.totalorder %v3574, 2
    %vm3576 = vcmp.eq.s32.totalorder %v3574, 0
    %v3577 = vxor.u32 %v3572, 2147483648
    %v3578 = vsel %vm3576, %v3571, %v3577
    %vm3579 = vcmp.eq.s32.totalorder %v3574, 2
    %v3580 = vxor.u32 %v3571, 2147483648
    %v3581 = vsel %vm3579, %v3580, %v3572
    %v3582 = vsel %vm3575, %v3578, %v3581
    %v3583 = vsel %vm3573, nan, %v3582
    %v3584 = vand.u32 2147483647, %v3480
    %vm3585 = vcmp.le.f32.partialorder %v3584, 0.7853982
    %vm3586 = vcmp.lt.s32.totalorder %v3480, 0
    %v3587 = vand.u32 %v3480, 2139095040
    %v3588 = vshrl.u32 %v3587, 23
    %v3589 = vsub.s32 %v3588, 127
    %v3590 = vand.u32 2147483647, %v3480
    %v3591 = vand.u32 %v3590, 8388607
    %v3592 = vor.u32 %v3591, 8388608
    %v3593 = vsub.s32 0, %v3592
    %v3594 = vadd.s32 %v3589, 1
    %vm3595 = vcmp.gt.s32.totalorder %v3594, 0
    %v3596 = vsel %vm3595, %v3594, 0
    %v3597 = vshrl.u32 %v3596, 5
    %v3598 = vand.u32 %v3596, 31
    %v3599 = vsub.s32 32, %v3598
    %v3600 = vshrl.u32 683565275, %v3599
    %v3601 = vshll.u32 683565275, %v3598
    %v3602 = vshrl.u32 2475754826, %v3599
    %v3603 = vor.u32 %v3601, %v3602
    %v3604 = vshll.u32 2475754826, %v3598
    %v3605 = vshrl.u32 2131351028, %v3599
    %v3606 = vor.u32 %v3604, %v3605
    %v3607 = vshll.u32 2131351028, %v3598
    %v3608 = vshrl.u32 2102212464, %v3599
    %v3609 = vor.u32 %v3607, %v3608
    %v3610 = vshll.u32 2102212464, %v3598
    %v3611 = vshrl.u32 920167782, %v3599
    %v3612 = vor.u32 %v3610, %v3611
    %v3613 = vshll.u32 920167782, %v3598
    %v3614 = vshrl.u32 1326507024, %v3599
    %v3615 = vor.u32 %v3613, %v3614
    %vm3616 = vcmp.lt.s32.totalorder %v3597, 1
    %vm3617 = vcmp.lt.s32.totalorder %v3597, 2
    %vm3618 = vcmp.lt.s32.totalorder %v3597, 3
    %vm3619 = vcmp.lt.s32.totalorder %v3597, 4
    %v3620 = vsel %vm3616, %v3600, %v3603
    %v3621 = vsel %vm3619, %v3609, 2102212464
    %v3622 = vsel %vm3618, %v3606, %v3621
    %v3623 = vsel %vm3617, %v3620, %v3622
    %v3624 = vsel %vm3616, %v3603, %v3606
    %v3625 = vsel %vm3619, %v3612, 920167782
    %v3626 = vsel %vm3618, %v3609, %v3625
    %v3627 = vsel %vm3617, %v3624, %v3626
    %v3628 = vsel %vm3616, %v3606, %v3609
    %v3629 = vsel %vm3619, %v3615, 1326507024
    %v3630 = vsel %vm3618, %v3612, %v3629
    %v3631 = vsel %vm3617, %v3628, %v3630
    %v3632 = vshll.u32 %v3592, 8
    %v3633 = vmul.u32.u64.compose %v3632, %v3631
    %v3634 = vextract.low.u32 %v3633
    %v3635 = vextract.high.u32 %v3633
    %v3636 = vmul.u32.u64.compose %v3632, %v3627
    %v3637 = vextract.low.u32 %v3636
    %v3638 = vextract.high.u32 %v3636
    %v3639 = vmul.u32 %v3632, %v3623
    %v3640 = vadd.s32 %v3635, %v3637
    %vm3641 = vc.u32 %v3635, %v3637
    %v3642 = vadd.s32 %v3638, 1
    %v3643 = vsel %vm3641, %v3642, %v3638
    %v3644 = vadd.s32 %v3639, %v3643
    %v3645 = vadd.s32 %v3644, 536870912
    %v3646 = vshrl.u32 %v3645, 30
    %v3647 = vshll.u32 %v3646, 30
    %v3648 = vsub.s32 %v3644, %v3647
    %vm3649 = vcmp.lt.s32.totalorder %v3648, 0
    %v3650 = vsub.s32 0, %v3648
    %v3651 = vsel %vm3649, %v3650, %v3648
    %v3652 = vclz %v3651
    %v3653 = vsub.s32 %v3652, 2
    %vm3654 = vcmp.gt.s32.totalorder 0, %v3653
    %v3655 = vsel %vm3654, 0, %v3653
    %v3656 = vsub.s32 32, %v3655
    %v3657 = vshll.u32 %v3648, %v3655
    %v3658 = vshrl.u32 %v3640, %v3656
    %v3659 = vor.u32 %v3657, %v3658
    %v3660 = vsub.s32 4294967266, %v3655
    %v3661 = vadd.s32 %v3660, 127
    %v3662 = vshll.u32 %v3661, 23
    %v3663 = vor.u32 4788187, %v3662
    %v3664 = vand.u32 2147483647, %v3663
    %v3666 = vcvt.s32.f32 %v3659
    %v3667 = vmul.f32 %v3666, %v3664
    %v3668 = vxor.u32 %v3667, 2147483648
    %v3669 = vsel %vm3586, %v3668, %v3667
    %v3670 = vsub.s32 4, %v3646
    %v3671 = vsel %vm3586, %v3670, %v3646
    %v3672 = vsel %vm3585, %v3480, %v3669
    %v3673 = vsel %vm3585, 0, %v3671
    %v3674 = vcosq.f32.pop %v3672
    %v3675 = vsinq.f32.pop %v3672
    %vm3676 = vweird.f32 %v3480
    %v3677 = vadd.s32 %v3673, 3
    %v3678 = vand.u32 %v3677, 3
    %vm3679 = vcmp.lt.s32.totalorder %v3678, 2
    %vm3680 = vcmp.eq.s32.totalorder %v3678, 0
    %v3681 = vxor.u32 %v3675, 2147483648
    %v3682 = vsel %vm3680, %v3674, %v3681
    %vm3683 = vcmp.eq.s32.totalorder %v3678, 2
    %v3684 = vxor.u32 %v3674, 2147483648
    %v3685 = vsel %vm3683, %v3684, %v3675
    %v3686 = vsel %vm3679, %v3682, %v3685
    %v3687 = vsel %vm3676, nan, %v3686
    %vm3688 = vcmp.eq.s32.totalorder %v39, 16
    %v3689 = vsel %vm3688, %v3583, 0.0
    %v3690 = vmul.f32 %v3687, %v3468
    %v3691 = vsub.f32 %v3689, %v3690
    %3692 = vst [vmem:[#allocation5 + $0x10] sm:$0x1] %v3691
    %v3693 = vmul.f32 %v3583, %v3468
    %v3694 = vsel %vm3688, %v3687, 0.0
    %v3695 = vadd.f32 %v3693, %v3694
    %3696 = vst [vmem:[#allocation5] sm:$0x1] %v3695
    // Predicated region
    $region10: #{tpu_custom_call.1} parent=1 // pred_check
      _
    $region11: #{tpu_custom_call.1} parent=1 // pred_check_branch
      %3698 = sbr.rel (0) target = $region13
    $region12: #{tpu_custom_call.1} parent=1 // pred_region
      %s3700 = ssub.s32 512, 512
      %3701 = vsyncadd [#allocation3], %s3700
      %s3702 = sshll.u32 [#allocation5], 4
      %s3703 = int_to_ptr.vmem [resolvable:$true] %s3702
      %3708 = dma.vmem_to_hbm [thread:$0]  %s3703, 512, %s1, [#allocation3], 128, 128, 8
    $region13: #{tpu_custom_call.1} parent=1 // pred_fallthru
      _
    // Predicated region
    $region14: #{tpu_custom_call.1} parent=1 // pred_check
      _
    $region15: #{tpu_custom_call.1} parent=1 // pred_check_branch
      %3710 = sbr.rel (0) target = $region17
    $region16: #{tpu_custom_call.1} parent=1 // pred_region
      %3711 = dma.done [#allocation3], 512
    $region17: #{tpu_custom_call.1} parent=1 // pred_fallthru
      _
    %3712 = vsyncpa [#allocation3], 1
    %3713 = vsyncpa [#allocation4], 1

</llo_original>
